<compile_context>
chip_gen: v5e
topology: v5e:2x2
jax: 0.10.0
libtpu: 0.0.40
codegen_flags: <defaults>
</compile_context>

<pallas_src>
import math

import jax
import jax.numpy as jnp
from jax.experimental import pallas as pl
from jax.experimental.pallas import tpu as pltpu

# ----------------------------- config (small, consistent with the module) ----
SRC_VOCAB = 16
TGT_VOCAB = 18
D_MODEL = 32
N_HEADS = 4
N_LAYERS = 2
D_FF = 64
MAX_SEQ = 16
D_HEAD = D_MODEL // N_HEADS
LN_EPS = 1e-5
V_PAD = 128  # lane-dense padded vocab width for the final projection


# ----------------------------- in-kernel helpers (pure jnp on loaded arrays) --


def _residual_layer_norm(residual, sub, ln_gb):
    # LayerNorm(residual + sublayer);  ln_gb: (2, D) = [gamma; beta]
    y = residual + sub
    mu = jnp.mean(y, axis=-1, keepdims=True)
    var = jnp.mean((y - mu) ** 2, axis=-1, keepdims=True)
    g = ln_gb[0:1, :]
    b = ln_gb[1:2, :]
    return (y - mu) * jax.lax.rsqrt(var + LN_EPS) * g + b


def _attend(q, k, v, mask_keep):
    # q: (Sq, D), k/v: (Sk, D), mask_keep: bool, broadcastable to (Sq, Sk), True = keep.
    # Heads are unrolled statically (N_HEADS=4) with lane slices; all compute stays in VMEM.
    scale = 1.0 / math.sqrt(D_HEAD)
    outs = []
    for h in range(N_HEADS):
        sl = slice(h * D_HEAD, (h + 1) * D_HEAD)
        qh = q[:, sl]
        kh = k[:, sl]
        vh = v[:, sl]
        s = jax.lax.dot_general(
            qh, kh, (((1,), (1,)), ((), ())), preferred_element_type=jnp.float32
        ) * scale
        s = jnp.where(mask_keep, s, -1e9)  # masked_fill(mask == 0, -1e9)
        s = s - jnp.max(s, axis=-1, keepdims=True)
        p = jnp.exp(s)
        p = p * pl.reciprocal(jnp.sum(p, axis=-1, keepdims=True), approx=True)
        outs.append(jnp.dot(p, vh, preferred_element_type=jnp.float32))
    return jnp.concatenate(outs, axis=-1)  # (Sq, D)


def _mha_self(x, mask_keep, w_qkv, b_qkv, w_o, b_o):
    # fused QKV projection: one (S, D) @ (D, 3D) matmul
    qkv = jnp.dot(x, w_qkv, preferred_element_type=jnp.float32) + b_qkv
    q = qkv[:, :D_MODEL]
    k = qkv[:, D_MODEL:2 * D_MODEL]
    v = qkv[:, 2 * D_MODEL:]
    o = _attend(q, k, v, mask_keep)
    return jnp.dot(o, w_o, preferred_element_type=jnp.float32) + b_o


def _mha_cross(xq, xkv, mask_keep, w_qkv, b_qkv, w_o, b_o):
    # Q from decoder stream, fused K/V projection from encoder output
    q = jnp.dot(xq, w_qkv[:, :D_MODEL], preferred_element_type=jnp.float32) + b_qkv[:, :D_MODEL]
    kv = jnp.dot(xkv, w_qkv[:, D_MODEL:], preferred_element_type=jnp.float32) + b_qkv[:, D_MODEL:]
    k = kv[:, :D_MODEL]
    v = kv[:, D_MODEL:]
    o = _attend(q, k, v, mask_keep)
    return jnp.dot(o, w_o, preferred_element_type=jnp.float32) + b_o


def _ffn(x, w1, b1, w2, b2):
    h = jnp.dot(x, w1, preferred_element_type=jnp.float32) + b1
    h = jnp.maximum(h, 0.0)
    return jnp.dot(h, w2, preferred_element_type=jnp.float32) + b2


# ----------------------------- the single fused kernel ------------------------


def _transformer_kernel(*refs):
    (src_emb_ref, tgt_emb_ref, pe_src_ref, pe_tgt_ref, src_keep_ref, tgt_keep_ref,
     e_wqkv, e_bqkv, e_wo, e_bo, e_ln1, e_w1, e_b1, e_w2, e_b2, e_ln2,
     d_sa_wqkv, d_sa_bqkv, d_sa_wo, d_sa_bo, d_ln1,
     d_ca_wqkv, d_ca_bqkv, d_ca_wo, d_ca_bo, d_ln2,
     d_w1, d_b1, d_w2, d_b2, d_ln3,
     fc_w_ref, fc_b_ref,
     out_ref) = refs

    St = tgt_emb_ref.shape[0]
    emb_scale = math.sqrt(D_MODEL)

    # ---- masks built in-kernel (no dense fp32 masks from HBM) ----
    src_keep = src_keep_ref[...] > 0.0                   # (1, Ss)  key-padding keep mask
    tgt_keep = tgt_keep_ref[...] > 0.0                   # (St, 1)  query-padding keep mask
    row = jax.lax.broadcasted_iota(jnp.int32, (St, St), 0)
    col = jax.lax.broadcasted_iota(jnp.int32, (St, St), 1)
    dec_self_mask = jnp.logical_and(tgt_keep, row >= col)  # (St, St)

    # ---- encoder stack ----
    x = src_emb_ref[...] * emb_scale + pe_src_ref[...]   # embed*sqrt(D) + PE (dropout = id)
    for l in range(N_LAYERS):
        attn = _mha_self(x, src_keep, e_wqkv[l], e_bqkv[l], e_wo[l], e_bo[l])
        x = _residual_layer_norm(x, attn, e_ln1[l])
        ff = _ffn(x, e_w1[l], e_b1[l], e_w2[l], e_b2[l])
        x = _residual_layer_norm(x, ff, e_ln2[l])
    enc_out = x                                           # (Ss, D)

    # ---- decoder stack ----
    y = tgt_emb_ref[...] * emb_scale + pe_tgt_ref[...]
    for l in range(N_LAYERS):
        sa = _mha_self(y, dec_self_mask, d_sa_wqkv[l], d_sa_bqkv[l], d_sa_wo[l], d_sa_bo[l])
        y = _residual_layer_norm(y, sa, d_ln1[l])
        ca = _mha_cross(y, enc_out, src_keep, d_ca_wqkv[l], d_ca_bqkv[l], d_ca_wo[l], d_ca_bo[l])
        y = _residual_layer_norm(y, ca, d_ln2[l])
        ff = _ffn(y, d_w1[l], d_b1[l], d_w2[l], d_b2[l])
        y = _residual_layer_norm(y, ff, d_ln3[l])

    # ---- final projection, lane-dense (vocab padded to 128) ----
    out_ref[...] = (
        jnp.dot(y, fc_w_ref[...], preferred_element_type=jnp.float32) + fc_b_ref[...]
    )


# ----------------------------- parameter init --------------------------------


def _xavier(key, shape):
    fan_in, fan_out = shape[-2], shape[-1]
    limit = math.sqrt(6.0 / (fan_in + fan_out))
    return jax.random.uniform(key, shape, jnp.float32, -limit, limit)


def init_params(key):
    keys = iter(jax.random.split(key, 256))

    def nk():
        return next(keys)

    def attn_stack():
        # fused Q/K/V weight: per-layer concat of three (D, D) xavier blocks -> (L, D, 3D)
        wqkv = jnp.stack([
            jnp.concatenate([_xavier(nk(), (D_MODEL, D_MODEL)) for _ in range(3)], axis=1)
            for _ in range(N_LAYERS)
        ])
        bqkv = jnp.zeros((N_LAYERS, 1, 3 * D_MODEL), jnp.float32)
        wo = jnp.stack([_xavier(nk(), (D_MODEL, D_MODEL)) for _ in range(N_LAYERS)])
        bo = jnp.zeros((N_LAYERS, 1, D_MODEL), jnp.float32)
        return wqkv, bqkv, wo, bo

    def ffn_stack():
        w1 = jnp.stack([_xavier(nk(), (D_MODEL, D_FF)) for _ in range(N_LAYERS)])
        b1 = jnp.zeros((N_LAYERS, 1, D_FF), jnp.float32)
        w2 = jnp.stack([_xavier(nk(), (D_FF, D_MODEL)) for _ in range(N_LAYERS)])
        b2 = jnp.zeros((N_LAYERS, 1, D_MODEL), jnp.float32)
        return w1, b1, w2, b2

    def ln_stack():
        # (L, 2, D): row 0 = gamma (ones), row 1 = beta (zeros)
        return jnp.concatenate(
            [jnp.ones((N_LAYERS, 1, D_MODEL), jnp.float32),
             jnp.zeros((N_LAYERS, 1, D_MODEL), jnp.float32)], axis=1)

    e_wqkv, e_bqkv, e_wo, e_bo = attn_stack()
    e_w1, e_b1, e_w2, e_b2 = ffn_stack()
    d_sa_wqkv, d_sa_bqkv, d_sa_wo, d_sa_bo = attn_stack()
    d_ca_wqkv, d_ca_bqkv, d_ca_wo, d_ca_bo = attn_stack()
    d_w1, d_b1, d_w2, d_b2 = ffn_stack()

    return {
        "enc_embed": _xavier(nk(), (SRC_VOCAB, D_MODEL)),
        "dec_embed": _xavier(nk(), (TGT_VOCAB, D_MODEL)),
        "enc": {
            "wqkv": e_wqkv, "bqkv": e_bqkv, "wo": e_wo, "bo": e_bo, "ln1": ln_stack(),
            "w1": e_w1, "b1": e_b1, "w2": e_w2, "b2": e_b2, "ln2": ln_stack(),
        },
        "dec": {
            "sa_wqkv": d_sa_wqkv, "sa_bqkv": d_sa_bqkv, "sa_wo": d_sa_wo, "sa_bo": d_sa_bo,
            "ln1": ln_stack(),
            "ca_wqkv": d_ca_wqkv, "ca_bqkv": d_ca_bqkv, "ca_wo": d_ca_wo, "ca_bo": d_ca_bo,
            "ln2": ln_stack(),
            "w1": d_w1, "b1": d_b1, "w2": d_w2, "b2": d_b2, "ln3": ln_stack(),
        },
        "fc_out_w": _xavier(nk(), (D_MODEL, TGT_VOCAB)),
        "fc_out_b": jnp.zeros((TGT_VOCAB,), jnp.float32),
    }


def make_pos_encoding(max_len, d_model):
    pos = jnp.arange(max_len, dtype=jnp.float32)[:, None]
    div = jnp.exp(
        jnp.arange(0, d_model, 2, dtype=jnp.float32) * (-math.log(10000.0) / d_model)
    )
    pe = jnp.zeros((max_len, d_model), dtype=jnp.float32)
    pe = pe.at[:, 0::2].set(jnp.sin(pos * div))
    pe = pe.at[:, 1::2].set(jnp.cos(pos * div))
    return pe


# ----------------------------- forward ----------------------------------------


def transformer_forward(params, src, tgt):
    B, Ss = src.shape
    _, St = tgt.shape

    pe = make_pos_encoding(MAX_SEQ, D_MODEL)
    pe_src = pe[:Ss]
    pe_tgt = pe[:St]

    # Row-gather embeddings in glue (XLA gather); scale + PE add is fused in-kernel.
    # TODO(synk): data-dependent embedding gather is done with jnp.take outside the kernel.
    src_emb = jnp.take(params["enc_embed"], src, axis=0)   # (B, Ss, D)
    tgt_emb = jnp.take(params["dec_embed"], tgt, axis=0)   # (B, St, D)

    # Tiny padding indicators; dense key/causal masks are built in-kernel with iota.
    src_keep = (src != 0).astype(jnp.float32).reshape(B, 1, Ss)   # key-padding (enc + cross)
    tgt_keep = (tgt != 0).astype(jnp.float32).reshape(B, St, 1)   # query-padding (dec self)

    # Lane-dense final projection: pad vocab (18) up to 128, slice back outside.
    fc_w = params["fc_out_w"]
    fc_b = params["fc_out_b"]
    V = fc_w.shape[1]
    fc_w_pad = jnp.zeros((D_MODEL, V_PAD), jnp.float32).at[:, :V].set(fc_w)
    fc_b_pad = jnp.zeros((1, V_PAD), jnp.float32).at[:, :V].set(fc_b)

    enc = params["enc"]
    dec = params["dec"]
    weight_inputs = (
        enc["wqkv"], enc["bqkv"], enc["wo"], enc["bo"], enc["ln1"],
        enc["w1"], enc["b1"], enc["w2"], enc["b2"], enc["ln2"],
        dec["sa_wqkv"], dec["sa_bqkv"], dec["sa_wo"], dec["sa_bo"], dec["ln1"],
        dec["ca_wqkv"], dec["ca_bqkv"], dec["ca_wo"], dec["ca_bo"], dec["ln2"],
        dec["w1"], dec["b1"], dec["w2"], dec["b2"], dec["ln3"],
        fc_w_pad, fc_b_pad,
    )
    inputs = (src_emb, tgt_emb, pe_src, pe_tgt, src_keep, tgt_keep) + weight_inputs

    def _batch_spec(a):
        # per-batch block (batch dim squeezed); grid axis b picks the batch element
        tail = (0,) * (a.ndim - 1)
        return pl.BlockSpec((None,) + tuple(a.shape[1:]), lambda b: (b,) + tail)

    def _full_spec(a):
        # full array resident in VMEM; constant index across the batch grid axis
        zeros = (0,) * a.ndim
        return pl.BlockSpec(tuple(a.shape), lambda b: zeros)

    in_specs = [
        _batch_spec(src_emb), _batch_spec(tgt_emb),
        _full_spec(pe_src), _full_spec(pe_tgt),
        _batch_spec(src_keep), _batch_spec(tgt_keep),
    ] + [_full_spec(a) for a in weight_inputs]

    logits_pad = pl.pallas_call(
        _transformer_kernel,
        grid=(B,),
        in_specs=in_specs,
        out_specs=pl.BlockSpec((None, St, V_PAD), lambda b: (b, 0, 0)),
        out_shape=jax.ShapeDtypeStruct((B, St, V_PAD), jnp.float32),
        compiler_params=pltpu.CompilerParams(dimension_semantics=("parallel",)),
    )(*inputs)

    return logits_pad[:, :, :V]


# ----------------------------- main -------------------------------------------

if __name__ == "__main__":
    key = jax.random.PRNGKey(0)
    pkey, skey, tkey = jax.random.split(key, 3)

    params = init_params(pkey)

    B, S_SRC, S_TGT = 2, 8, 8
    src = jax.random.randint(skey, (B, S_SRC), 1, SRC_VOCAB, dtype=jnp.int32)
    tgt = jax.random.randint(tkey, (B, S_TGT), 1, TGT_VOCAB, dtype=jnp.int32)
    # pad a few trailing tokens (id 0) to exercise the padding masks
    src = src.at[0, 6:].set(0)
    tgt = tgt.at[1, 5:].set(0)

    fwd = jax.jit(transformer_forward)
    logits = fwd(params, src, tgt)
    jax.block_until_ready(logits)

    assert logits.shape == (B, S_TGT, TGT_VOCAB)
    assert bool(jnp.all(jnp.isfinite(logits)))
    print("KERNEL_OK")
</pallas_src>

<mosaic_0001>
module attributes {stable_mosaic.version = 11 : i64} {
  func.func @_transformer_kernel(%arg0: i32, %arg1: memref<1x8x32xf32, #tpu.memory_space<vmem>>, %arg2: memref<1x8x32xf32, #tpu.memory_space<vmem>>, %arg3: memref<8x32xf32, #tpu.memory_space<vmem>>, %arg4: memref<8x32xf32, #tpu.memory_space<vmem>>, %arg5: memref<1x1x8xf32, #tpu.memory_space<vmem>>, %arg6: memref<1x8x1xf32, #tpu.memory_space<vmem>>, %arg7: memref<2x32x96xf32, #tpu.memory_space<vmem>>, %arg8: memref<2x1x96xf32, #tpu.memory_space<vmem>>, %arg9: memref<2x32x32xf32, #tpu.memory_space<vmem>>, %arg10: memref<2x1x32xf32, #tpu.memory_space<vmem>>, %arg11: memref<2x2x32xf32, #tpu.memory_space<vmem>>, %arg12: memref<2x32x64xf32, #tpu.memory_space<vmem>>, %arg13: memref<2x1x64xf32, #tpu.memory_space<vmem>>, %arg14: memref<2x64x32xf32, #tpu.memory_space<vmem>>, %arg15: memref<2x1x32xf32, #tpu.memory_space<vmem>>, %arg16: memref<2x2x32xf32, #tpu.memory_space<vmem>>, %arg17: memref<2x32x96xf32, #tpu.memory_space<vmem>>, %arg18: memref<2x1x96xf32, #tpu.memory_space<vmem>>, %arg19: memref<2x32x32xf32, #tpu.memory_space<vmem>>, %arg20: memref<2x1x32xf32, #tpu.memory_space<vmem>>, %arg21: memref<2x2x32xf32, #tpu.memory_space<vmem>>, %arg22: memref<2x32x96xf32, #tpu.memory_space<vmem>>, %arg23: memref<2x1x96xf32, #tpu.memory_space<vmem>>, %arg24: memref<2x32x32xf32, #tpu.memory_space<vmem>>, %arg25: memref<2x1x32xf32, #tpu.memory_space<vmem>>, %arg26: memref<2x2x32xf32, #tpu.memory_space<vmem>>, %arg27: memref<2x32x64xf32, #tpu.memory_space<vmem>>, %arg28: memref<2x1x64xf32, #tpu.memory_space<vmem>>, %arg29: memref<2x64x32xf32, #tpu.memory_space<vmem>>, %arg30: memref<2x1x32xf32, #tpu.memory_space<vmem>>, %arg31: memref<2x2x32xf32, #tpu.memory_space<vmem>>, %arg32: memref<32x128xf32, #tpu.memory_space<vmem>>, %arg33: memref<1x128xf32, #tpu.memory_space<vmem>>, %arg34: memref<1x8x128xf32, #tpu.memory_space<vmem>>) attributes {dimension_semantics = [#tpu.dimension_semantics<parallel>], iteration_bounds = array<i64: 2>, scalar_prefetch = 0 : i64, scratch_operands = 0 : i64, tpu.core_type = #tpu.core_type<tc>, window_params = [{transform_indices = @transform_0, window_bounds = array<i64: 1, 8, 32>}, {transform_indices = @transform_1, window_bounds = array<i64: 1, 8, 32>}, {pipeline_mode = #tpu.pipeline_mode<synchronous>, transform_indices = @transform_2, window_bounds = array<i64: 8, 32>}, {pipeline_mode = #tpu.pipeline_mode<synchronous>, transform_indices = @transform_3, window_bounds = array<i64: 8, 32>}, {transform_indices = @transform_4, window_bounds = array<i64: 1, 1, 8>}, {transform_indices = @transform_5, window_bounds = array<i64: 1, 8, 1>}, {pipeline_mode = #tpu.pipeline_mode<synchronous>, transform_indices = @transform_6, window_bounds = array<i64: 2, 32, 96>}, {pipeline_mode = #tpu.pipeline_mode<synchronous>, transform_indices = @transform_7, window_bounds = array<i64: 2, 1, 96>}, {pipeline_mode = #tpu.pipeline_mode<synchronous>, transform_indices = @transform_8, window_bounds = array<i64: 2, 32, 32>}, {pipeline_mode = #tpu.pipeline_mode<synchronous>, transform_indices = @transform_9, window_bounds = array<i64: 2, 1, 32>}, {pipeline_mode = #tpu.pipeline_mode<synchronous>, transform_indices = @transform_10, window_bounds = array<i64: 2, 2, 32>}, {pipeline_mode = #tpu.pipeline_mode<synchronous>, transform_indices = @transform_11, window_bounds = array<i64: 2, 32, 64>}, {pipeline_mode = #tpu.pipeline_mode<synchronous>, transform_indices = @transform_12, window_bounds = array<i64: 2, 1, 64>}, {pipeline_mode = #tpu.pipeline_mode<synchronous>, transform_indices = @transform_13, window_bounds = array<i64: 2, 64, 32>}, {pipeline_mode = #tpu.pipeline_mode<synchronous>, transform_indices = @transform_14, window_bounds = array<i64: 2, 1, 32>}, {pipeline_mode = #tpu.pipeline_mode<synchronous>, transform_indices = @transform_15, window_bounds = array<i64: 2, 2, 32>}, {pipeline_mode = #tpu.pipeline_mode<synchronous>, transform_indices = @transform_16, window_bounds = array<i64: 2, 32, 96>}, {pipeline_mode = #tpu.pipeline_mode<synchronous>, transform_indices = @transform_17, window_bounds = array<i64: 2, 1, 96>}, {pipeline_mode = #tpu.pipeline_mode<synchronous>, transform_indices = @transform_18, window_bounds = array<i64: 2, 32, 32>}, {pipeline_mode = #tpu.pipeline_mode<synchronous>, transform_indices = @transform_19, window_bounds = array<i64: 2, 1, 32>}, {pipeline_mode = #tpu.pipeline_mode<synchronous>, transform_indices = @transform_20, window_bounds = array<i64: 2, 2, 32>}, {pipeline_mode = #tpu.pipeline_mode<synchronous>, transform_indices = @transform_21, window_bounds = array<i64: 2, 32, 96>}, {pipeline_mode = #tpu.pipeline_mode<synchronous>, transform_indices = @transform_22, window_bounds = array<i64: 2, 1, 96>}, {pipeline_mode = #tpu.pipeline_mode<synchronous>, transform_indices = @transform_23, window_bounds = array<i64: 2, 32, 32>}, {pipeline_mode = #tpu.pipeline_mode<synchronous>, transform_indices = @transform_24, window_bounds = array<i64: 2, 1, 32>}, {pipeline_mode = #tpu.pipeline_mode<synchronous>, transform_indices = @transform_25, window_bounds = array<i64: 2, 2, 32>}, {pipeline_mode = #tpu.pipeline_mode<synchronous>, transform_indices = @transform_26, window_bounds = array<i64: 2, 32, 64>}, {pipeline_mode = #tpu.pipeline_mode<synchronous>, transform_indices = @transform_27, window_bounds = array<i64: 2, 1, 64>}, {pipeline_mode = #tpu.pipeline_mode<synchronous>, transform_indices = @transform_28, window_bounds = array<i64: 2, 64, 32>}, {pipeline_mode = #tpu.pipeline_mode<synchronous>, transform_indices = @transform_29, window_bounds = array<i64: 2, 1, 32>}, {pipeline_mode = #tpu.pipeline_mode<synchronous>, transform_indices = @transform_30, window_bounds = array<i64: 2, 2, 32>}, {pipeline_mode = #tpu.pipeline_mode<synchronous>, transform_indices = @transform_31, window_bounds = array<i64: 32, 128>}, {pipeline_mode = #tpu.pipeline_mode<synchronous>, transform_indices = @transform_32, window_bounds = array<i64: 1, 128>}, {transform_indices = @transform_33, window_bounds = array<i64: 1, 8, 128>}]} {
    %c0 = arith.constant 0 : index
    %c0_0 = arith.constant 0 : index
    %c0_1 = arith.constant 0 : index
    %0 = vector.load %arg5[%c0, %c0_0, %c0_1] : memref<1x1x8xf32, #tpu.memory_space<vmem>>, vector<1x1x8xf32>
    %1 = vector.shape_cast %0 : vector<1x1x8xf32> to vector<1x8xf32>
    %cst = arith.constant 0.000000e+00 : f32
    %2 = vector.broadcast %cst : f32 to vector<1x8xf32>
    %3 = arith.cmpf ogt, %1, %2 : vector<1x8xf32>
    %c0_2 = arith.constant 0 : index
    %c0_3 = arith.constant 0 : index
    %c0_4 = arith.constant 0 : index
    %4 = vector.load %arg6[%c0_2, %c0_3, %c0_4] : memref<1x8x1xf32, #tpu.memory_space<vmem>>, vector<1x8x1xf32>
    %5 = vector.shape_cast %4 : vector<1x8x1xf32> to vector<8x1xf32>
    %cst_5 = arith.constant 0.000000e+00 : f32
    %6 = vector.broadcast %cst_5 : f32 to vector<8x1xf32>
    %7 = arith.cmpf ogt, %5, %6 : vector<8x1xf32>
    %8 = tpu.iota {dimensions = array<i32: 0>} : vector<8x8xi32>
    %9 = tpu.iota {dimensions = array<i32: 1>} : vector<8x8xi32>
    %10 = arith.cmpi sge, %8, %9 : vector<8x8xi32>
    %11 = vector.broadcast %7 : vector<8x1xi1> to vector<8x8xi1>
    %12 = arith.andi %11, %10 : vector<8x8xi1>
    %c0_6 = arith.constant 0 : index
    %c0_7 = arith.constant 0 : index
    %c0_8 = arith.constant 0 : index
    %13 = vector.load %arg1[%c0_6, %c0_7, %c0_8] : memref<1x8x32xf32, #tpu.memory_space<vmem>>, vector<1x8x32xf32>
    %14 = vector.shape_cast %13 : vector<1x8x32xf32> to vector<8x32xf32>
    %cst_9 = arith.constant 5.65685415 : f32
    %15 = vector.broadcast %cst_9 : f32 to vector<8x32xf32>
    %16 = arith.mulf %14, %15 : vector<8x32xf32>
    %c0_10 = arith.constant 0 : index
    %c0_11 = arith.constant 0 : index
    %17 = vector.load %arg3[%c0_10, %c0_11] : memref<8x32xf32, #tpu.memory_space<vmem>>, vector<8x32xf32>
    %18 = arith.addf %16, %17 : vector<8x32xf32>
    %c0_12 = arith.constant 0 : index
    %c0_13 = arith.constant 0 : index
    %c0_14 = arith.constant 0 : index
    %19 = vector.load %arg7[%c0_12, %c0_13, %c0_14] : memref<2x32x96xf32, #tpu.memory_space<vmem>>, vector<1x32x96xf32>
    %20 = vector.shape_cast %19 : vector<1x32x96xf32> to vector<32x96xf32>
    %c0_15 = arith.constant 0 : index
    %c0_16 = arith.constant 0 : index
    %c0_17 = arith.constant 0 : index
    %21 = vector.load %arg8[%c0_15, %c0_16, %c0_17] : memref<2x1x96xf32, #tpu.memory_space<vmem>>, vector<1x1x96xf32>
    %22 = vector.shape_cast %21 : vector<1x1x96xf32> to vector<1x96xf32>
    %c0_18 = arith.constant 0 : index
    %c0_19 = arith.constant 0 : index
    %c0_20 = arith.constant 0 : index
    %23 = vector.load %arg9[%c0_18, %c0_19, %c0_20] : memref<2x32x32xf32, #tpu.memory_space<vmem>>, vector<1x32x32xf32>
    %24 = vector.shape_cast %23 : vector<1x32x32xf32> to vector<32x32xf32>
    %c0_21 = arith.constant 0 : index
    %c0_22 = arith.constant 0 : index
    %c0_23 = arith.constant 0 : index
    %25 = vector.load %arg10[%c0_21, %c0_22, %c0_23] : memref<2x1x32xf32, #tpu.memory_space<vmem>>, vector<1x1x32xf32>
    %26 = vector.shape_cast %25 : vector<1x1x32xf32> to vector<1x32xf32>
    %cst_24 = arith.constant dense<0.000000e+00> : vector<8x96xf32>
    %27 = tpu.matmul %18, %20, %cst_24 {dimension_numbers = #tpu.dot_dimension_numbers<[1], [0], [0], [1], [0, 0, 1, 1], [], []>} : vector<8x32xf32>, vector<32x96xf32>, vector<8x96xf32> -> vector<8x96xf32>
    %28 = vector.broadcast %22 : vector<1x96xf32> to vector<8x96xf32>
    %29 = arith.addf %27, %28 : vector<8x96xf32>
    %30 = vector.extract_strided_slice %29 {offsets = [0, 0], sizes = [8, 32], strides = [1, 1]} : vector<8x96xf32> to vector<8x32xf32>
    %31 = vector.extract_strided_slice %29 {offsets = [0, 32], sizes = [8, 32], strides = [1, 1]} : vector<8x96xf32> to vector<8x32xf32>
    %32 = vector.extract_strided_slice %29 {offsets = [0, 64], sizes = [8, 32], strides = [1, 1]} : vector<8x96xf32> to vector<8x32xf32>
    %33 = vector.extract_strided_slice %30 {offsets = [0, 0], sizes = [8, 8], strides = [1, 1]} : vector<8x32xf32> to vector<8x8xf32>
    %34 = vector.extract_strided_slice %31 {offsets = [0, 0], sizes = [8, 8], strides = [1, 1]} : vector<8x32xf32> to vector<8x8xf32>
    %35 = vector.extract_strided_slice %32 {offsets = [0, 0], sizes = [8, 8], strides = [1, 1]} : vector<8x32xf32> to vector<8x8xf32>
    %cst_25 = arith.constant dense<0.000000e+00> : vector<8x8xf32>
    %36 = tpu.matmul %33, %34, %cst_25 {dimension_numbers = #tpu.dot_dimension_numbers<[1], [1], [0], [0], [0, 0, 1, 0], [], []>} : vector<8x8xf32>, vector<8x8xf32>, vector<8x8xf32> -> vector<8x8xf32>
    %cst_26 = arith.constant 0.353553385 : f32
    %37 = vector.broadcast %cst_26 : f32 to vector<8x8xf32>
    %38 = arith.mulf %36, %37 : vector<8x8xf32>
    %cst_27 = arith.constant -1.000000e+09 : f32
    %39 = vector.shape_cast %3 : vector<1x8xi1> to vector<1x8xi1>
    %40 = vector.broadcast %39 : vector<1x8xi1> to vector<8x8xi1>
    %41 = vector.broadcast %cst_27 : f32 to vector<8x8xf32>
    %42 = arith.select %40, %38, %41 : vector<8x8xi1>, vector<8x8xf32>
    %cst_28 = arith.constant dense<0xFF800000> : vector<8xf32>
    %43 = vector.multi_reduction <maximumf>, %42, %cst_28 [1] : vector<8x8xf32> to vector<8xf32>
    %44 = vector.shape_cast %43 : vector<8xf32> to vector<8x1xf32>
    %45 = vector.broadcast %44 : vector<8x1xf32> to vector<8x8xf32>
    %46 = arith.subf %42, %45 : vector<8x8xf32>
    %47 = math.exp %46 : vector<8x8xf32>
    %cst_29 = arith.constant dense<0.000000e+00> : vector<8xf32>
    %48 = vector.multi_reduction <add>, %47, %cst_29 [1] : vector<8x8xf32> to vector<8xf32>
    %49 = vector.shape_cast %48 : vector<8xf32> to vector<8x1xf32>
    %50 = tpu.reciprocal %49 {approx = true} : vector<8x1xf32> -> vector<8x1xf32>
    %51 = vector.broadcast %50 : vector<8x1xf32> to vector<8x8xf32>
    %52 = arith.mulf %47, %51 : vector<8x8xf32>
    %cst_30 = arith.constant dense<0.000000e+00> : vector<8x8xf32>
    %53 = tpu.matmul %52, %35, %cst_30 {dimension_numbers = #tpu.dot_dimension_numbers<[1], [0], [0], [1], [0, 0, 1, 1], [], []>} : vector<8x8xf32>, vector<8x8xf32>, vector<8x8xf32> -> vector<8x8xf32>
    %54 = vector.extract_strided_slice %30 {offsets = [0, 8], sizes = [8, 8], strides = [1, 1]} : vector<8x32xf32> to vector<8x8xf32>
    %55 = vector.extract_strided_slice %31 {offsets = [0, 8], sizes = [8, 8], strides = [1, 1]} : vector<8x32xf32> to vector<8x8xf32>
    %56 = vector.extract_strided_slice %32 {offsets = [0, 8], sizes = [8, 8], strides = [1, 1]} : vector<8x32xf32> to vector<8x8xf32>
    %cst_31 = arith.constant dense<0.000000e+00> : vector<8x8xf32>
    %57 = tpu.matmul %54, %55, %cst_31 {dimension_numbers = #tpu.dot_dimension_numbers<[1], [1], [0], [0], [0, 0, 1, 0], [], []>} : vector<8x8xf32>, vector<8x8xf32>, vector<8x8xf32> -> vector<8x8xf32>
    %cst_32 = arith.constant 0.353553385 : f32
    %58 = vector.broadcast %cst_32 : f32 to vector<8x8xf32>
    %59 = arith.mulf %57, %58 : vector<8x8xf32>
    %cst_33 = arith.constant -1.000000e+09 : f32
    %60 = vector.shape_cast %3 : vector<1x8xi1> to vector<1x8xi1>
    %61 = vector.broadcast %60 : vector<1x8xi1> to vector<8x8xi1>
    %62 = vector.broadcast %cst_33 : f32 to vector<8x8xf32>
    %63 = arith.select %61, %59, %62 : vector<8x8xi1>, vector<8x8xf32>
    %cst_34 = arith.constant dense<0xFF800000> : vector<8xf32>
    %64 = vector.multi_reduction <maximumf>, %63, %cst_34 [1] : vector<8x8xf32> to vector<8xf32>
    %65 = vector.shape_cast %64 : vector<8xf32> to vector<8x1xf32>
    %66 = vector.broadcast %65 : vector<8x1xf32> to vector<8x8xf32>
    %67 = arith.subf %63, %66 : vector<8x8xf32>
    %68 = math.exp %67 : vector<8x8xf32>
    %cst_35 = arith.constant dense<0.000000e+00> : vector<8xf32>
    %69 = vector.multi_reduction <add>, %68, %cst_35 [1] : vector<8x8xf32> to vector<8xf32>
    %70 = vector.shape_cast %69 : vector<8xf32> to vector<8x1xf32>
    %71 = tpu.reciprocal %70 {approx = true} : vector<8x1xf32> -> vector<8x1xf32>
    %72 = vector.broadcast %71 : vector<8x1xf32> to vector<8x8xf32>
    %73 = arith.mulf %68, %72 : vector<8x8xf32>
    %cst_36 = arith.constant dense<0.000000e+00> : vector<8x8xf32>
    %74 = tpu.matmul %73, %56, %cst_36 {dimension_numbers = #tpu.dot_dimension_numbers<[1], [0], [0], [1], [0, 0, 1, 1], [], []>} : vector<8x8xf32>, vector<8x8xf32>, vector<8x8xf32> -> vector<8x8xf32>
    %75 = vector.extract_strided_slice %30 {offsets = [0, 16], sizes = [8, 8], strides = [1, 1]} : vector<8x32xf32> to vector<8x8xf32>
    %76 = vector.extract_strided_slice %31 {offsets = [0, 16], sizes = [8, 8], strides = [1, 1]} : vector<8x32xf32> to vector<8x8xf32>
    %77 = vector.extract_strided_slice %32 {offsets = [0, 16], sizes = [8, 8], strides = [1, 1]} : vector<8x32xf32> to vector<8x8xf32>
    %cst_37 = arith.constant dense<0.000000e+00> : vector<8x8xf32>
    %78 = tpu.matmul %75, %76, %cst_37 {dimension_numbers = #tpu.dot_dimension_numbers<[1], [1], [0], [0], [0, 0, 1, 0], [], []>} : vector<8x8xf32>, vector<8x8xf32>, vector<8x8xf32> -> vector<8x8xf32>
    %cst_38 = arith.constant 0.353553385 : f32
    %79 = vector.broadcast %cst_38 : f32 to vector<8x8xf32>
    %80 = arith.mulf %78, %79 : vector<8x8xf32>
    %cst_39 = arith.constant -1.000000e+09 : f32
    %81 = vector.shape_cast %3 : vector<1x8xi1> to vector<1x8xi1>
    %82 = vector.broadcast %81 : vector<1x8xi1> to vector<8x8xi1>
    %83 = vector.broadcast %cst_39 : f32 to vector<8x8xf32>
    %84 = arith.select %82, %80, %83 : vector<8x8xi1>, vector<8x8xf32>
    %cst_40 = arith.constant dense<0xFF800000> : vector<8xf32>
    %85 = vector.multi_reduction <maximumf>, %84, %cst_40 [1] : vector<8x8xf32> to vector<8xf32>
    %86 = vector.shape_cast %85 : vector<8xf32> to vector<8x1xf32>
    %87 = vector.broadcast %86 : vector<8x1xf32> to vector<8x8xf32>
    %88 = arith.subf %84, %87 : vector<8x8xf32>
    %89 = math.exp %88 : vector<8x8xf32>
    %cst_41 = arith.constant dense<0.000000e+00> : vector<8xf32>
    %90 = vector.multi_reduction <add>, %89, %cst_41 [1] : vector<8x8xf32> to vector<8xf32>
    %91 = vector.shape_cast %90 : vector<8xf32> to vector<8x1xf32>
    %92 = tpu.reciprocal %91 {approx = true} : vector<8x1xf32> -> vector<8x1xf32>
    %93 = vector.broadcast %92 : vector<8x1xf32> to vector<8x8xf32>
    %94 = arith.mulf %89, %93 : vector<8x8xf32>
    %cst_42 = arith.constant dense<0.000000e+00> : vector<8x8xf32>
    %95 = tpu.matmul %94, %77, %cst_42 {dimension_numbers = #tpu.dot_dimension_numbers<[1], [0], [0], [1], [0, 0, 1, 1], [], []>} : vector<8x8xf32>, vector<8x8xf32>, vector<8x8xf32> -> vector<8x8xf32>
    %96 = vector.extract_strided_slice %30 {offsets = [0, 24], sizes = [8, 8], strides = [1, 1]} : vector<8x32xf32> to vector<8x8xf32>
    %97 = vector.extract_strided_slice %31 {offsets = [0, 24], sizes = [8, 8], strides = [1, 1]} : vector<8x32xf32> to vector<8x8xf32>
    %98 = vector.extract_strided_slice %32 {offsets = [0, 24], sizes = [8, 8], strides = [1, 1]} : vector<8x32xf32> to vector<8x8xf32>
    %cst_43 = arith.constant dense<0.000000e+00> : vector<8x8xf32>
    %99 = tpu.matmul %96, %97, %cst_43 {dimension_numbers = #tpu.dot_dimension_numbers<[1], [1], [0], [0], [0, 0, 1, 0], [], []>} : vector<8x8xf32>, vector<8x8xf32>, vector<8x8xf32> -> vector<8x8xf32>
    %cst_44 = arith.constant 0.353553385 : f32
    %100 = vector.broadcast %cst_44 : f32 to vector<8x8xf32>
    %101 = arith.mulf %99, %100 : vector<8x8xf32>
    %cst_45 = arith.constant -1.000000e+09 : f32
    %102 = vector.shape_cast %3 : vector<1x8xi1> to vector<1x8xi1>
    %103 = vector.broadcast %102 : vector<1x8xi1> to vector<8x8xi1>
    %104 = vector.broadcast %cst_45 : f32 to vector<8x8xf32>
    %105 = arith.select %103, %101, %104 : vector<8x8xi1>, vector<8x8xf32>
    %cst_46 = arith.constant dense<0xFF800000> : vector<8xf32>
    %106 = vector.multi_reduction <maximumf>, %105, %cst_46 [1] : vector<8x8xf32> to vector<8xf32>
    %107 = vector.shape_cast %106 : vector<8xf32> to vector<8x1xf32>
    %108 = vector.broadcast %107 : vector<8x1xf32> to vector<8x8xf32>
    %109 = arith.subf %105, %108 : vector<8x8xf32>
    %110 = math.exp %109 : vector<8x8xf32>
    %cst_47 = arith.constant dense<0.000000e+00> : vector<8xf32>
    %111 = vector.multi_reduction <add>, %110, %cst_47 [1] : vector<8x8xf32> to vector<8xf32>
    %112 = vector.shape_cast %111 : vector<8xf32> to vector<8x1xf32>
    %113 = tpu.reciprocal %112 {approx = true} : vector<8x1xf32> -> vector<8x1xf32>
    %114 = vector.broadcast %113 : vector<8x1xf32> to vector<8x8xf32>
    %115 = arith.mulf %110, %114 : vector<8x8xf32>
    %cst_48 = arith.constant dense<0.000000e+00> : vector<8x8xf32>
    %116 = tpu.matmul %115, %98, %cst_48 {dimension_numbers = #tpu.dot_dimension_numbers<[1], [0], [0], [1], [0, 0, 1, 1], [], []>} : vector<8x8xf32>, vector<8x8xf32>, vector<8x8xf32> -> vector<8x8xf32>
    %117 = tpu.concatenate %53, %74, %95, %116 in 1 : vector<8x8xf32>, vector<8x8xf32>, vector<8x8xf32>, vector<8x8xf32> -> vector<8x32xf32>
    %cst_49 = arith.constant dense<0.000000e+00> : vector<8x32xf32>
    %118 = tpu.matmul %117, %24, %cst_49 {dimension_numbers = #tpu.dot_dimension_numbers<[1], [0], [0], [1], [0, 0, 1, 1], [], []>} : vector<8x32xf32>, vector<32x32xf32>, vector<8x32xf32> -> vector<8x32xf32>
    %119 = vector.broadcast %26 : vector<1x32xf32> to vector<8x32xf32>
    %120 = arith.addf %118, %119 : vector<8x32xf32>
    %c0_50 = arith.constant 0 : index
    %c0_51 = arith.constant 0 : index
    %c0_52 = arith.constant 0 : index
    %121 = vector.load %arg11[%c0_50, %c0_51, %c0_52] : memref<2x2x32xf32, #tpu.memory_space<vmem>>, vector<1x2x32xf32>
    %122 = vector.shape_cast %121 : vector<1x2x32xf32> to vector<2x32xf32>
    %123 = arith.addf %18, %120 : vector<8x32xf32>
    %cst_53 = arith.constant dense<0.000000e+00> : vector<8xf32>
    %124 = vector.multi_reduction <add>, %123, %cst_53 [1] : vector<8x32xf32> to vector<8xf32>
    %125 = vector.shape_cast %124 : vector<8xf32> to vector<8x1xf32>
    %cst_54 = arith.constant 3.200000e+01 : f32
    %126 = vector.broadcast %cst_54 : f32 to vector<8x1xf32>
    %127 = arith.divf %125, %126 : vector<8x1xf32>
    %128 = vector.broadcast %127 : vector<8x1xf32> to vector<8x32xf32>
    %129 = arith.subf %123, %128 : vector<8x32xf32>
    %130 = arith.mulf %129, %129 : vector<8x32xf32>
    %cst_55 = arith.constant dense<0.000000e+00> : vector<8xf32>
    %131 = vector.multi_reduction <add>, %130, %cst_55 [1] : vector<8x32xf32> to vector<8xf32>
    %132 = vector.shape_cast %131 : vector<8xf32> to vector<8x1xf32>
    %cst_56 = arith.constant 3.200000e+01 : f32
    %133 = vector.broadcast %cst_56 : f32 to vector<8x1xf32>
    %134 = arith.divf %132, %133 : vector<8x1xf32>
    %135 = vector.extract_strided_slice %122 {offsets = [0, 0], sizes = [1, 32], strides = [1, 1]} : vector<2x32xf32> to vector<1x32xf32>
    %136 = vector.extract_strided_slice %122 {offsets = [1, 0], sizes = [1, 32], strides = [1, 1]} : vector<2x32xf32> to vector<1x32xf32>
    %137 = vector.broadcast %127 : vector<8x1xf32> to vector<8x32xf32>
    %138 = arith.subf %123, %137 : vector<8x32xf32>
    %cst_57 = arith.constant 9.99999974E-6 : f32
    %139 = vector.broadcast %cst_57 : f32 to vector<8x1xf32>
    %140 = arith.addf %134, %139 : vector<8x1xf32>
    %141 = math.rsqrt %140 : vector<8x1xf32>
    %142 = vector.broadcast %141 : vector<8x1xf32> to vector<8x32xf32>
    %143 = arith.mulf %138, %142 : vector<8x32xf32>
    %144 = vector.broadcast %135 : vector<1x32xf32> to vector<8x32xf32>
    %145 = arith.mulf %143, %144 : vector<8x32xf32>
    %146 = vector.broadcast %136 : vector<1x32xf32> to vector<8x32xf32>
    %147 = arith.addf %145, %146 : vector<8x32xf32>
    %c0_58 = arith.constant 0 : index
    %c0_59 = arith.constant 0 : index
    %c0_60 = arith.constant 0 : index
    %148 = vector.load %arg12[%c0_58, %c0_59, %c0_60] : memref<2x32x64xf32, #tpu.memory_space<vmem>>, vector<1x32x64xf32>
    %149 = vector.shape_cast %148 : vector<1x32x64xf32> to vector<32x64xf32>
    %c0_61 = arith.constant 0 : index
    %c0_62 = arith.constant 0 : index
    %c0_63 = arith.constant 0 : index
    %150 = vector.load %arg13[%c0_61, %c0_62, %c0_63] : memref<2x1x64xf32, #tpu.memory_space<vmem>>, vector<1x1x64xf32>
    %151 = vector.shape_cast %150 : vector<1x1x64xf32> to vector<1x64xf32>
    %c0_64 = arith.constant 0 : index
    %c0_65 = arith.constant 0 : index
    %c0_66 = arith.constant 0 : index
    %152 = vector.load %arg14[%c0_64, %c0_65, %c0_66] : memref<2x64x32xf32, #tpu.memory_space<vmem>>, vector<1x64x32xf32>
    %153 = vector.shape_cast %152 : vector<1x64x32xf32> to vector<64x32xf32>
    %c0_67 = arith.constant 0 : index
    %c0_68 = arith.constant 0 : index
    %c0_69 = arith.constant 0 : index
    %154 = vector.load %arg15[%c0_67, %c0_68, %c0_69] : memref<2x1x32xf32, #tpu.memory_space<vmem>>, vector<1x1x32xf32>
    %155 = vector.shape_cast %154 : vector<1x1x32xf32> to vector<1x32xf32>
    %cst_70 = arith.constant dense<0.000000e+00> : vector<8x64xf32>
    %156 = tpu.matmul %147, %149, %cst_70 {dimension_numbers = #tpu.dot_dimension_numbers<[1], [0], [0], [1], [0, 0, 1, 1], [], []>} : vector<8x32xf32>, vector<32x64xf32>, vector<8x64xf32> -> vector<8x64xf32>
    %157 = vector.broadcast %151 : vector<1x64xf32> to vector<8x64xf32>
    %158 = arith.addf %156, %157 : vector<8x64xf32>
    %cst_71 = arith.constant 0.000000e+00 : f32
    %159 = vector.broadcast %cst_71 : f32 to vector<8x64xf32>
    %160 = arith.maximumf %158, %159 : vector<8x64xf32>
    %cst_72 = arith.constant dense<0.000000e+00> : vector<8x32xf32>
    %161 = tpu.matmul %160, %153, %cst_72 {dimension_numbers = #tpu.dot_dimension_numbers<[1], [0], [0], [1], [0, 0, 1, 1], [], []>} : vector<8x64xf32>, vector<64x32xf32>, vector<8x32xf32> -> vector<8x32xf32>
    %162 = vector.broadcast %155 : vector<1x32xf32> to vector<8x32xf32>
    %163 = arith.addf %161, %162 : vector<8x32xf32>
    %c0_73 = arith.constant 0 : index
    %c0_74 = arith.constant 0 : index
    %c0_75 = arith.constant 0 : index
    %164 = vector.load %arg16[%c0_73, %c0_74, %c0_75] : memref<2x2x32xf32, #tpu.memory_space<vmem>>, vector<1x2x32xf32>
    %165 = vector.shape_cast %164 : vector<1x2x32xf32> to vector<2x32xf32>
    %166 = arith.addf %147, %163 : vector<8x32xf32>
    %cst_76 = arith.constant dense<0.000000e+00> : vector<8xf32>
    %167 = vector.multi_reduction <add>, %166, %cst_76 [1] : vector<8x32xf32> to vector<8xf32>
    %168 = vector.shape_cast %167 : vector<8xf32> to vector<8x1xf32>
    %cst_77 = arith.constant 3.200000e+01 : f32
    %169 = vector.broadcast %cst_77 : f32 to vector<8x1xf32>
    %170 = arith.divf %168, %169 : vector<8x1xf32>
    %171 = vector.broadcast %170 : vector<8x1xf32> to vector<8x32xf32>
    %172 = arith.subf %166, %171 : vector<8x32xf32>
    %173 = arith.mulf %172, %172 : vector<8x32xf32>
    %cst_78 = arith.constant dense<0.000000e+00> : vector<8xf32>
    %174 = vector.multi_reduction <add>, %173, %cst_78 [1] : vector<8x32xf32> to vector<8xf32>
    %175 = vector.shape_cast %174 : vector<8xf32> to vector<8x1xf32>
    %cst_79 = arith.constant 3.200000e+01 : f32
    %176 = vector.broadcast %cst_79 : f32 to vector<8x1xf32>
    %177 = arith.divf %175, %176 : vector<8x1xf32>
    %178 = vector.extract_strided_slice %165 {offsets = [0, 0], sizes = [1, 32], strides = [1, 1]} : vector<2x32xf32> to vector<1x32xf32>
    %179 = vector.extract_strided_slice %165 {offsets = [1, 0], sizes = [1, 32], strides = [1, 1]} : vector<2x32xf32> to vector<1x32xf32>
    %180 = vector.broadcast %170 : vector<8x1xf32> to vector<8x32xf32>
    %181 = arith.subf %166, %180 : vector<8x32xf32>
    %cst_80 = arith.constant 9.99999974E-6 : f32
    %182 = vector.broadcast %cst_80 : f32 to vector<8x1xf32>
    %183 = arith.addf %177, %182 : vector<8x1xf32>
    %184 = math.rsqrt %183 : vector<8x1xf32>
    %185 = vector.broadcast %184 : vector<8x1xf32> to vector<8x32xf32>
    %186 = arith.mulf %181, %185 : vector<8x32xf32>
    %187 = vector.broadcast %178 : vector<1x32xf32> to vector<8x32xf32>
    %188 = arith.mulf %186, %187 : vector<8x32xf32>
    %189 = vector.broadcast %179 : vector<1x32xf32> to vector<8x32xf32>
    %190 = arith.addf %188, %189 : vector<8x32xf32>
    %c1 = arith.constant 1 : index
    %c0_81 = arith.constant 0 : index
    %c0_82 = arith.constant 0 : index
    %191 = vector.load %arg7[%c1, %c0_81, %c0_82] : memref<2x32x96xf32, #tpu.memory_space<vmem>>, vector<1x32x96xf32>
    %192 = vector.shape_cast %191 : vector<1x32x96xf32> to vector<32x96xf32>
    %c1_83 = arith.constant 1 : index
    %c0_84 = arith.constant 0 : index
    %c0_85 = arith.constant 0 : index
    %193 = vector.load %arg8[%c1_83, %c0_84, %c0_85] : memref<2x1x96xf32, #tpu.memory_space<vmem>>, vector<1x1x96xf32>
    %194 = vector.shape_cast %193 : vector<1x1x96xf32> to vector<1x96xf32>
    %c1_86 = arith.constant 1 : index
    %c0_87 = arith.constant 0 : index
    %c0_88 = arith.constant 0 : index
    %195 = vector.load %arg9[%c1_86, %c0_87, %c0_88] : memref<2x32x32xf32, #tpu.memory_space<vmem>>, vector<1x32x32xf32>
    %196 = vector.shape_cast %195 : vector<1x32x32xf32> to vector<32x32xf32>
    %c1_89 = arith.constant 1 : index
    %c0_90 = arith.constant 0 : index
    %c0_91 = arith.constant 0 : index
    %197 = vector.load %arg10[%c1_89, %c0_90, %c0_91] : memref<2x1x32xf32, #tpu.memory_space<vmem>>, vector<1x1x32xf32>
    %198 = vector.shape_cast %197 : vector<1x1x32xf32> to vector<1x32xf32>
    %cst_92 = arith.constant dense<0.000000e+00> : vector<8x96xf32>
    %199 = tpu.matmul %190, %192, %cst_92 {dimension_numbers = #tpu.dot_dimension_numbers<[1], [0], [0], [1], [0, 0, 1, 1], [], []>} : vector<8x32xf32>, vector<32x96xf32>, vector<8x96xf32> -> vector<8x96xf32>
    %200 = vector.broadcast %194 : vector<1x96xf32> to vector<8x96xf32>
    %201 = arith.addf %199, %200 : vector<8x96xf32>
    %202 = vector.extract_strided_slice %201 {offsets = [0, 0], sizes = [8, 32], strides = [1, 1]} : vector<8x96xf32> to vector<8x32xf32>
    %203 = vector.extract_strided_slice %201 {offsets = [0, 32], sizes = [8, 32], strides = [1, 1]} : vector<8x96xf32> to vector<8x32xf32>
    %204 = vector.extract_strided_slice %201 {offsets = [0, 64], sizes = [8, 32], strides = [1, 1]} : vector<8x96xf32> to vector<8x32xf32>
    %205 = vector.extract_strided_slice %202 {offsets = [0, 0], sizes = [8, 8], strides = [1, 1]} : vector<8x32xf32> to vector<8x8xf32>
    %206 = vector.extract_strided_slice %203 {offsets = [0, 0], sizes = [8, 8], strides = [1, 1]} : vector<8x32xf32> to vector<8x8xf32>
    %207 = vector.extract_strided_slice %204 {offsets = [0, 0], sizes = [8, 8], strides = [1, 1]} : vector<8x32xf32> to vector<8x8xf32>
    %cst_93 = arith.constant dense<0.000000e+00> : vector<8x8xf32>
    %208 = tpu.matmul %205, %206, %cst_93 {dimension_numbers = #tpu.dot_dimension_numbers<[1], [1], [0], [0], [0, 0, 1, 0], [], []>} : vector<8x8xf32>, vector<8x8xf32>, vector<8x8xf32> -> vector<8x8xf32>
    %cst_94 = arith.constant 0.353553385 : f32
    %209 = vector.broadcast %cst_94 : f32 to vector<8x8xf32>
    %210 = arith.mulf %208, %209 : vector<8x8xf32>
    %cst_95 = arith.constant -1.000000e+09 : f32
    %211 = vector.shape_cast %3 : vector<1x8xi1> to vector<1x8xi1>
    %212 = vector.broadcast %211 : vector<1x8xi1> to vector<8x8xi1>
    %213 = vector.broadcast %cst_95 : f32 to vector<8x8xf32>
    %214 = arith.select %212, %210, %213 : vector<8x8xi1>, vector<8x8xf32>
    %cst_96 = arith.constant dense<0xFF800000> : vector<8xf32>
    %215 = vector.multi_reduction <maximumf>, %214, %cst_96 [1] : vector<8x8xf32> to vector<8xf32>
    %216 = vector.shape_cast %215 : vector<8xf32> to vector<8x1xf32>
    %217 = vector.broadcast %216 : vector<8x1xf32> to vector<8x8xf32>
    %218 = arith.subf %214, %217 : vector<8x8xf32>
    %219 = math.exp %218 : vector<8x8xf32>
    %cst_97 = arith.constant dense<0.000000e+00> : vector<8xf32>
    %220 = vector.multi_reduction <add>, %219, %cst_97 [1] : vector<8x8xf32> to vector<8xf32>
    %221 = vector.shape_cast %220 : vector<8xf32> to vector<8x1xf32>
    %222 = tpu.reciprocal %221 {approx = true} : vector<8x1xf32> -> vector<8x1xf32>
    %223 = vector.broadcast %222 : vector<8x1xf32> to vector<8x8xf32>
    %224 = arith.mulf %219, %223 : vector<8x8xf32>
    %cst_98 = arith.constant dense<0.000000e+00> : vector<8x8xf32>
    %225 = tpu.matmul %224, %207, %cst_98 {dimension_numbers = #tpu.dot_dimension_numbers<[1], [0], [0], [1], [0, 0, 1, 1], [], []>} : vector<8x8xf32>, vector<8x8xf32>, vector<8x8xf32> -> vector<8x8xf32>
    %226 = vector.extract_strided_slice %202 {offsets = [0, 8], sizes = [8, 8], strides = [1, 1]} : vector<8x32xf32> to vector<8x8xf32>
    %227 = vector.extract_strided_slice %203 {offsets = [0, 8], sizes = [8, 8], strides = [1, 1]} : vector<8x32xf32> to vector<8x8xf32>
    %228 = vector.extract_strided_slice %204 {offsets = [0, 8], sizes = [8, 8], strides = [1, 1]} : vector<8x32xf32> to vector<8x8xf32>
    %cst_99 = arith.constant dense<0.000000e+00> : vector<8x8xf32>
    %229 = tpu.matmul %226, %227, %cst_99 {dimension_numbers = #tpu.dot_dimension_numbers<[1], [1], [0], [0], [0, 0, 1, 0], [], []>} : vector<8x8xf32>, vector<8x8xf32>, vector<8x8xf32> -> vector<8x8xf32>
    %cst_100 = arith.constant 0.353553385 : f32
    %230 = vector.broadcast %cst_100 : f32 to vector<8x8xf32>
    %231 = arith.mulf %229, %230 : vector<8x8xf32>
    %cst_101 = arith.constant -1.000000e+09 : f32
    %232 = vector.shape_cast %3 : vector<1x8xi1> to vector<1x8xi1>
    %233 = vector.broadcast %232 : vector<1x8xi1> to vector<8x8xi1>
    %234 = vector.broadcast %cst_101 : f32 to vector<8x8xf32>
    %235 = arith.select %233, %231, %234 : vector<8x8xi1>, vector<8x8xf32>
    %cst_102 = arith.constant dense<0xFF800000> : vector<8xf32>
    %236 = vector.multi_reduction <maximumf>, %235, %cst_102 [1] : vector<8x8xf32> to vector<8xf32>
    %237 = vector.shape_cast %236 : vector<8xf32> to vector<8x1xf32>
    %238 = vector.broadcast %237 : vector<8x1xf32> to vector<8x8xf32>
    %239 = arith.subf %235, %238 : vector<8x8xf32>
    %240 = math.exp %239 : vector<8x8xf32>
    %cst_103 = arith.constant dense<0.000000e+00> : vector<8xf32>
    %241 = vector.multi_reduction <add>, %240, %cst_103 [1] : vector<8x8xf32> to vector<8xf32>
    %242 = vector.shape_cast %241 : vector<8xf32> to vector<8x1xf32>
    %243 = tpu.reciprocal %242 {approx = true} : vector<8x1xf32> -> vector<8x1xf32>
    %244 = vector.broadcast %243 : vector<8x1xf32> to vector<8x8xf32>
    %245 = arith.mulf %240, %244 : vector<8x8xf32>
    %cst_104 = arith.constant dense<0.000000e+00> : vector<8x8xf32>
    %246 = tpu.matmul %245, %228, %cst_104 {dimension_numbers = #tpu.dot_dimension_numbers<[1], [0], [0], [1], [0, 0, 1, 1], [], []>} : vector<8x8xf32>, vector<8x8xf32>, vector<8x8xf32> -> vector<8x8xf32>
    %247 = vector.extract_strided_slice %202 {offsets = [0, 16], sizes = [8, 8], strides = [1, 1]} : vector<8x32xf32> to vector<8x8xf32>
    %248 = vector.extract_strided_slice %203 {offsets = [0, 16], sizes = [8, 8], strides = [1, 1]} : vector<8x32xf32> to vector<8x8xf32>
    %249 = vector.extract_strided_slice %204 {offsets = [0, 16], sizes = [8, 8], strides = [1, 1]} : vector<8x32xf32> to vector<8x8xf32>
    %cst_105 = arith.constant dense<0.000000e+00> : vector<8x8xf32>
    %250 = tpu.matmul %247, %248, %cst_105 {dimension_numbers = #tpu.dot_dimension_numbers<[1], [1], [0], [0], [0, 0, 1, 0], [], []>} : vector<8x8xf32>, vector<8x8xf32>, vector<8x8xf32> -> vector<8x8xf32>
    %cst_106 = arith.constant 0.353553385 : f32
    %251 = vector.broadcast %cst_106 : f32 to vector<8x8xf32>
    %252 = arith.mulf %250, %251 : vector<8x8xf32>
    %cst_107 = arith.constant -1.000000e+09 : f32
    %253 = vector.shape_cast %3 : vector<1x8xi1> to vector<1x8xi1>
    %254 = vector.broadcast %253 : vector<1x8xi1> to vector<8x8xi1>
    %255 = vector.broadcast %cst_107 : f32 to vector<8x8xf32>
    %256 = arith.select %254, %252, %255 : vector<8x8xi1>, vector<8x8xf32>
    %cst_108 = arith.constant dense<0xFF800000> : vector<8xf32>
    %257 = vector.multi_reduction <maximumf>, %256, %cst_108 [1] : vector<8x8xf32> to vector<8xf32>
    %258 = vector.shape_cast %257 : vector<8xf32> to vector<8x1xf32>
    %259 = vector.broadcast %258 : vector<8x1xf32> to vector<8x8xf32>
    %260 = arith.subf %256, %259 : vector<8x8xf32>
    %261 = math.exp %260 : vector<8x8xf32>
    %cst_109 = arith.constant dense<0.000000e+00> : vector<8xf32>
    %262 = vector.multi_reduction <add>, %261, %cst_109 [1] : vector<8x8xf32> to vector<8xf32>
    %263 = vector.shape_cast %262 : vector<8xf32> to vector<8x1xf32>
    %264 = tpu.reciprocal %263 {approx = true} : vector<8x1xf32> -> vector<8x1xf32>
    %265 = vector.broadcast %264 : vector<8x1xf32> to vector<8x8xf32>
    %266 = arith.mulf %261, %265 : vector<8x8xf32>
    %cst_110 = arith.constant dense<0.000000e+00> : vector<8x8xf32>
    %267 = tpu.matmul %266, %249, %cst_110 {dimension_numbers = #tpu.dot_dimension_numbers<[1], [0], [0], [1], [0, 0, 1, 1], [], []>} : vector<8x8xf32>, vector<8x8xf32>, vector<8x8xf32> -> vector<8x8xf32>
    %268 = vector.extract_strided_slice %202 {offsets = [0, 24], sizes = [8, 8], strides = [1, 1]} : vector<8x32xf32> to vector<8x8xf32>
    %269 = vector.extract_strided_slice %203 {offsets = [0, 24], sizes = [8, 8], strides = [1, 1]} : vector<8x32xf32> to vector<8x8xf32>
    %270 = vector.extract_strided_slice %204 {offsets = [0, 24], sizes = [8, 8], strides = [1, 1]} : vector<8x32xf32> to vector<8x8xf32>
    %cst_111 = arith.constant dense<0.000000e+00> : vector<8x8xf32>
    %271 = tpu.matmul %268, %269, %cst_111 {dimension_numbers = #tpu.dot_dimension_numbers<[1], [1], [0], [0], [0, 0, 1, 0], [], []>} : vector<8x8xf32>, vector<8x8xf32>, vector<8x8xf32> -> vector<8x8xf32>
    %cst_112 = arith.constant 0.353553385 : f32
    %272 = vector.broadcast %cst_112 : f32 to vector<8x8xf32>
    %273 = arith.mulf %271, %272 : vector<8x8xf32>
    %cst_113 = arith.constant -1.000000e+09 : f32
    %274 = vector.shape_cast %3 : vector<1x8xi1> to vector<1x8xi1>
    %275 = vector.broadcast %274 : vector<1x8xi1> to vector<8x8xi1>
    %276 = vector.broadcast %cst_113 : f32 to vector<8x8xf32>
    %277 = arith.select %275, %273, %276 : vector<8x8xi1>, vector<8x8xf32>
    %cst_114 = arith.constant dense<0xFF800000> : vector<8xf32>
    %278 = vector.multi_reduction <maximumf>, %277, %cst_114 [1] : vector<8x8xf32> to vector<8xf32>
    %279 = vector.shape_cast %278 : vector<8xf32> to vector<8x1xf32>
    %280 = vector.broadcast %279 : vector<8x1xf32> to vector<8x8xf32>
    %281 = arith.subf %277, %280 : vector<8x8xf32>
    %282 = math.exp %281 : vector<8x8xf32>
    %cst_115 = arith.constant dense<0.000000e+00> : vector<8xf32>
    %283 = vector.multi_reduction <add>, %282, %cst_115 [1] : vector<8x8xf32> to vector<8xf32>
    %284 = vector.shape_cast %283 : vector<8xf32> to vector<8x1xf32>
    %285 = tpu.reciprocal %284 {approx = true} : vector<8x1xf32> -> vector<8x1xf32>
    %286 = vector.broadcast %285 : vector<8x1xf32> to vector<8x8xf32>
    %287 = arith.mulf %282, %286 : vector<8x8xf32>
    %cst_116 = arith.constant dense<0.000000e+00> : vector<8x8xf32>
    %288 = tpu.matmul %287, %270, %cst_116 {dimension_numbers = #tpu.dot_dimension_numbers<[1], [0], [0], [1], [0, 0, 1, 1], [], []>} : vector<8x8xf32>, vector<8x8xf32>, vector<8x8xf32> -> vector<8x8xf32>
    %289 = tpu.concatenate %225, %246, %267, %288 in 1 : vector<8x8xf32>, vector<8x8xf32>, vector<8x8xf32>, vector<8x8xf32> -> vector<8x32xf32>
    %cst_117 = arith.constant dense<0.000000e+00> : vector<8x32xf32>
    %290 = tpu.matmul %289, %196, %cst_117 {dimension_numbers = #tpu.dot_dimension_numbers<[1], [0], [0], [1], [0, 0, 1, 1], [], []>} : vector<8x32xf32>, vector<32x32xf32>, vector<8x32xf32> -> vector<8x32xf32>
    %291 = vector.broadcast %198 : vector<1x32xf32> to vector<8x32xf32>
    %292 = arith.addf %290, %291 : vector<8x32xf32>
    %c1_118 = arith.constant 1 : index
    %c0_119 = arith.constant 0 : index
    %c0_120 = arith.constant 0 : index
    %293 = vector.load %arg11[%c1_118, %c0_119, %c0_120] : memref<2x2x32xf32, #tpu.memory_space<vmem>>, vector<1x2x32xf32>
    %294 = vector.shape_cast %293 : vector<1x2x32xf32> to vector<2x32xf32>
    %295 = arith.addf %190, %292 : vector<8x32xf32>
    %cst_121 = arith.constant dense<0.000000e+00> : vector<8xf32>
    %296 = vector.multi_reduction <add>, %295, %cst_121 [1] : vector<8x32xf32> to vector<8xf32>
    %297 = vector.shape_cast %296 : vector<8xf32> to vector<8x1xf32>
    %cst_122 = arith.constant 3.200000e+01 : f32
    %298 = vector.broadcast %cst_122 : f32 to vector<8x1xf32>
    %299 = arith.divf %297, %298 : vector<8x1xf32>
    %300 = vector.broadcast %299 : vector<8x1xf32> to vector<8x32xf32>
    %301 = arith.subf %295, %300 : vector<8x32xf32>
    %302 = arith.mulf %301, %301 : vector<8x32xf32>
    %cst_123 = arith.constant dense<0.000000e+00> : vector<8xf32>
    %303 = vector.multi_reduction <add>, %302, %cst_123 [1] : vector<8x32xf32> to vector<8xf32>
    %304 = vector.shape_cast %303 : vector<8xf32> to vector<8x1xf32>
    %cst_124 = arith.constant 3.200000e+01 : f32
    %305 = vector.broadcast %cst_124 : f32 to vector<8x1xf32>
    %306 = arith.divf %304, %305 : vector<8x1xf32>
    %307 = vector.extract_strided_slice %294 {offsets = [0, 0], sizes = [1, 32], strides = [1, 1]} : vector<2x32xf32> to vector<1x32xf32>
    %308 = vector.extract_strided_slice %294 {offsets = [1, 0], sizes = [1, 32], strides = [1, 1]} : vector<2x32xf32> to vector<1x32xf32>
    %309 = vector.broadcast %299 : vector<8x1xf32> to vector<8x32xf32>
    %310 = arith.subf %295, %309 : vector<8x32xf32>
    %cst_125 = arith.constant 9.99999974E-6 : f32
    %311 = vector.broadcast %cst_125 : f32 to vector<8x1xf32>
    %312 = arith.addf %306, %311 : vector<8x1xf32>
    %313 = math.rsqrt %312 : vector<8x1xf32>
    %314 = vector.broadcast %313 : vector<8x1xf32> to vector<8x32xf32>
    %315 = arith.mulf %310, %314 : vector<8x32xf32>
    %316 = vector.broadcast %307 : vector<1x32xf32> to vector<8x32xf32>
    %317 = arith.mulf %315, %316 : vector<8x32xf32>
    %318 = vector.broadcast %308 : vector<1x32xf32> to vector<8x32xf32>
    %319 = arith.addf %317, %318 : vector<8x32xf32>
    %c1_126 = arith.constant 1 : index
    %c0_127 = arith.constant 0 : index
    %c0_128 = arith.constant 0 : index
    %320 = vector.load %arg12[%c1_126, %c0_127, %c0_128] : memref<2x32x64xf32, #tpu.memory_space<vmem>>, vector<1x32x64xf32>
    %321 = vector.shape_cast %320 : vector<1x32x64xf32> to vector<32x64xf32>
    %c1_129 = arith.constant 1 : index
    %c0_130 = arith.constant 0 : index
    %c0_131 = arith.constant 0 : index
    %322 = vector.load %arg13[%c1_129, %c0_130, %c0_131] : memref<2x1x64xf32, #tpu.memory_space<vmem>>, vector<1x1x64xf32>
    %323 = vector.shape_cast %322 : vector<1x1x64xf32> to vector<1x64xf32>
    %c1_132 = arith.constant 1 : index
    %c0_133 = arith.constant 0 : index
    %c0_134 = arith.constant 0 : index
    %324 = vector.load %arg14[%c1_132, %c0_133, %c0_134] : memref<2x64x32xf32, #tpu.memory_space<vmem>>, vector<1x64x32xf32>
    %325 = vector.shape_cast %324 : vector<1x64x32xf32> to vector<64x32xf32>
    %c1_135 = arith.constant 1 : index
    %c0_136 = arith.constant 0 : index
    %c0_137 = arith.constant 0 : index
    %326 = vector.load %arg15[%c1_135, %c0_136, %c0_137] : memref<2x1x32xf32, #tpu.memory_space<vmem>>, vector<1x1x32xf32>
    %327 = vector.shape_cast %326 : vector<1x1x32xf32> to vector<1x32xf32>
    %cst_138 = arith.constant dense<0.000000e+00> : vector<8x64xf32>
    %328 = tpu.matmul %319, %321, %cst_138 {dimension_numbers = #tpu.dot_dimension_numbers<[1], [0], [0], [1], [0, 0, 1, 1], [], []>} : vector<8x32xf32>, vector<32x64xf32>, vector<8x64xf32> -> vector<8x64xf32>
    %329 = vector.broadcast %323 : vector<1x64xf32> to vector<8x64xf32>
    %330 = arith.addf %328, %329 : vector<8x64xf32>
    %cst_139 = arith.constant 0.000000e+00 : f32
    %331 = vector.broadcast %cst_139 : f32 to vector<8x64xf32>
    %332 = arith.maximumf %330, %331 : vector<8x64xf32>
    %cst_140 = arith.constant dense<0.000000e+00> : vector<8x32xf32>
    %333 = tpu.matmul %332, %325, %cst_140 {dimension_numbers = #tpu.dot_dimension_numbers<[1], [0], [0], [1], [0, 0, 1, 1], [], []>} : vector<8x64xf32>, vector<64x32xf32>, vector<8x32xf32> -> vector<8x32xf32>
    %334 = vector.broadcast %327 : vector<1x32xf32> to vector<8x32xf32>
    %335 = arith.addf %333, %334 : vector<8x32xf32>
    %c1_141 = arith.constant 1 : index
    %c0_142 = arith.constant 0 : index
    %c0_143 = arith.constant 0 : index
    %336 = vector.load %arg16[%c1_141, %c0_142, %c0_143] : memref<2x2x32xf32, #tpu.memory_space<vmem>>, vector<1x2x32xf32>
    %337 = vector.shape_cast %336 : vector<1x2x32xf32> to vector<2x32xf32>
    %338 = arith.addf %319, %335 : vector<8x32xf32>
    %cst_144 = arith.constant dense<0.000000e+00> : vector<8xf32>
    %339 = vector.multi_reduction <add>, %338, %cst_144 [1] : vector<8x32xf32> to vector<8xf32>
    %340 = vector.shape_cast %339 : vector<8xf32> to vector<8x1xf32>
    %cst_145 = arith.constant 3.200000e+01 : f32
    %341 = vector.broadcast %cst_145 : f32 to vector<8x1xf32>
    %342 = arith.divf %340, %341 : vector<8x1xf32>
    %343 = vector.broadcast %342 : vector<8x1xf32> to vector<8x32xf32>
    %344 = arith.subf %338, %343 : vector<8x32xf32>
    %345 = arith.mulf %344, %344 : vector<8x32xf32>
    %cst_146 = arith.constant dense<0.000000e+00> : vector<8xf32>
    %346 = vector.multi_reduction <add>, %345, %cst_146 [1] : vector<8x32xf32> to vector<8xf32>
    %347 = vector.shape_cast %346 : vector<8xf32> to vector<8x1xf32>
    %cst_147 = arith.constant 3.200000e+01 : f32
    %348 = vector.broadcast %cst_147 : f32 to vector<8x1xf32>
    %349 = arith.divf %347, %348 : vector<8x1xf32>
    %350 = vector.extract_strided_slice %337 {offsets = [0, 0], sizes = [1, 32], strides = [1, 1]} : vector<2x32xf32> to vector<1x32xf32>
    %351 = vector.extract_strided_slice %337 {offsets = [1, 0], sizes = [1, 32], strides = [1, 1]} : vector<2x32xf32> to vector<1x32xf32>
    %352 = vector.broadcast %342 : vector<8x1xf32> to vector<8x32xf32>
    %353 = arith.subf %338, %352 : vector<8x32xf32>
    %cst_148 = arith.constant 9.99999974E-6 : f32
    %354 = vector.broadcast %cst_148 : f32 to vector<8x1xf32>
    %355 = arith.addf %349, %354 : vector<8x1xf32>
    %356 = math.rsqrt %355 : vector<8x1xf32>
    %357 = vector.broadcast %356 : vector<8x1xf32> to vector<8x32xf32>
    %358 = arith.mulf %353, %357 : vector<8x32xf32>
    %359 = vector.broadcast %350 : vector<1x32xf32> to vector<8x32xf32>
    %360 = arith.mulf %358, %359 : vector<8x32xf32>
    %361 = vector.broadcast %351 : vector<1x32xf32> to vector<8x32xf32>
    %362 = arith.addf %360, %361 : vector<8x32xf32>
    %c0_149 = arith.constant 0 : index
    %c0_150 = arith.constant 0 : index
    %c0_151 = arith.constant 0 : index
    %363 = vector.load %arg2[%c0_149, %c0_150, %c0_151] : memref<1x8x32xf32, #tpu.memory_space<vmem>>, vector<1x8x32xf32>
    %364 = vector.shape_cast %363 : vector<1x8x32xf32> to vector<8x32xf32>
    %cst_152 = arith.constant 5.65685415 : f32
    %365 = vector.broadcast %cst_152 : f32 to vector<8x32xf32>
    %366 = arith.mulf %364, %365 : vector<8x32xf32>
    %c0_153 = arith.constant 0 : index
    %c0_154 = arith.constant 0 : index
    %367 = vector.load %arg4[%c0_153, %c0_154] : memref<8x32xf32, #tpu.memory_space<vmem>>, vector<8x32xf32>
    %368 = arith.addf %366, %367 : vector<8x32xf32>
    %c0_155 = arith.constant 0 : index
    %c0_156 = arith.constant 0 : index
    %c0_157 = arith.constant 0 : index
    %369 = vector.load %arg17[%c0_155, %c0_156, %c0_157] : memref<2x32x96xf32, #tpu.memory_space<vmem>>, vector<1x32x96xf32>
    %370 = vector.shape_cast %369 : vector<1x32x96xf32> to vector<32x96xf32>
    %c0_158 = arith.constant 0 : index
    %c0_159 = arith.constant 0 : index
    %c0_160 = arith.constant 0 : index
    %371 = vector.load %arg18[%c0_158, %c0_159, %c0_160] : memref<2x1x96xf32, #tpu.memory_space<vmem>>, vector<1x1x96xf32>
    %372 = vector.shape_cast %371 : vector<1x1x96xf32> to vector<1x96xf32>
    %c0_161 = arith.constant 0 : index
    %c0_162 = arith.constant 0 : index
    %c0_163 = arith.constant 0 : index
    %373 = vector.load %arg19[%c0_161, %c0_162, %c0_163] : memref<2x32x32xf32, #tpu.memory_space<vmem>>, vector<1x32x32xf32>
    %374 = vector.shape_cast %373 : vector<1x32x32xf32> to vector<32x32xf32>
    %c0_164 = arith.constant 0 : index
    %c0_165 = arith.constant 0 : index
    %c0_166 = arith.constant 0 : index
    %375 = vector.load %arg20[%c0_164, %c0_165, %c0_166] : memref<2x1x32xf32, #tpu.memory_space<vmem>>, vector<1x1x32xf32>
    %376 = vector.shape_cast %375 : vector<1x1x32xf32> to vector<1x32xf32>
    %cst_167 = arith.constant dense<0.000000e+00> : vector<8x96xf32>
    %377 = tpu.matmul %368, %370, %cst_167 {dimension_numbers = #tpu.dot_dimension_numbers<[1], [0], [0], [1], [0, 0, 1, 1], [], []>} : vector<8x32xf32>, vector<32x96xf32>, vector<8x96xf32> -> vector<8x96xf32>
    %378 = vector.broadcast %372 : vector<1x96xf32> to vector<8x96xf32>
    %379 = arith.addf %377, %378 : vector<8x96xf32>
    %380 = vector.extract_strided_slice %379 {offsets = [0, 0], sizes = [8, 32], strides = [1, 1]} : vector<8x96xf32> to vector<8x32xf32>
    %381 = vector.extract_strided_slice %379 {offsets = [0, 32], sizes = [8, 32], strides = [1, 1]} : vector<8x96xf32> to vector<8x32xf32>
    %382 = vector.extract_strided_slice %379 {offsets = [0, 64], sizes = [8, 32], strides = [1, 1]} : vector<8x96xf32> to vector<8x32xf32>
    %383 = vector.extract_strided_slice %380 {offsets = [0, 0], sizes = [8, 8], strides = [1, 1]} : vector<8x32xf32> to vector<8x8xf32>
    %384 = vector.extract_strided_slice %381 {offsets = [0, 0], sizes = [8, 8], strides = [1, 1]} : vector<8x32xf32> to vector<8x8xf32>
    %385 = vector.extract_strided_slice %382 {offsets = [0, 0], sizes = [8, 8], strides = [1, 1]} : vector<8x32xf32> to vector<8x8xf32>
    %cst_168 = arith.constant dense<0.000000e+00> : vector<8x8xf32>
    %386 = tpu.matmul %383, %384, %cst_168 {dimension_numbers = #tpu.dot_dimension_numbers<[1], [1], [0], [0], [0, 0, 1, 0], [], []>} : vector<8x8xf32>, vector<8x8xf32>, vector<8x8xf32> -> vector<8x8xf32>
    %cst_169 = arith.constant 0.353553385 : f32
    %387 = vector.broadcast %cst_169 : f32 to vector<8x8xf32>
    %388 = arith.mulf %386, %387 : vector<8x8xf32>
    %cst_170 = arith.constant -1.000000e+09 : f32
    %389 = vector.broadcast %cst_170 : f32 to vector<8x8xf32>
    %390 = arith.select %12, %388, %389 : vector<8x8xi1>, vector<8x8xf32>
    %cst_171 = arith.constant dense<0xFF800000> : vector<8xf32>
    %391 = vector.multi_reduction <maximumf>, %390, %cst_171 [1] : vector<8x8xf32> to vector<8xf32>
    %392 = vector.shape_cast %391 : vector<8xf32> to vector<8x1xf32>
    %393 = vector.broadcast %392 : vector<8x1xf32> to vector<8x8xf32>
    %394 = arith.subf %390, %393 : vector<8x8xf32>
    %395 = math.exp %394 : vector<8x8xf32>
    %cst_172 = arith.constant dense<0.000000e+00> : vector<8xf32>
    %396 = vector.multi_reduction <add>, %395, %cst_172 [1] : vector<8x8xf32> to vector<8xf32>
    %397 = vector.shape_cast %396 : vector<8xf32> to vector<8x1xf32>
    %398 = tpu.reciprocal %397 {approx = true} : vector<8x1xf32> -> vector<8x1xf32>
    %399 = vector.broadcast %398 : vector<8x1xf32> to vector<8x8xf32>
    %400 = arith.mulf %395, %399 : vector<8x8xf32>
    %cst_173 = arith.constant dense<0.000000e+00> : vector<8x8xf32>
    %401 = tpu.matmul %400, %385, %cst_173 {dimension_numbers = #tpu.dot_dimension_numbers<[1], [0], [0], [1], [0, 0, 1, 1], [], []>} : vector<8x8xf32>, vector<8x8xf32>, vector<8x8xf32> -> vector<8x8xf32>
    %402 = vector.extract_strided_slice %380 {offsets = [0, 8], sizes = [8, 8], strides = [1, 1]} : vector<8x32xf32> to vector<8x8xf32>
    %403 = vector.extract_strided_slice %381 {offsets = [0, 8], sizes = [8, 8], strides = [1, 1]} : vector<8x32xf32> to vector<8x8xf32>
    %404 = vector.extract_strided_slice %382 {offsets = [0, 8], sizes = [8, 8], strides = [1, 1]} : vector<8x32xf32> to vector<8x8xf32>
    %cst_174 = arith.constant dense<0.000000e+00> : vector<8x8xf32>
    %405 = tpu.matmul %402, %403, %cst_174 {dimension_numbers = #tpu.dot_dimension_numbers<[1], [1], [0], [0], [0, 0, 1, 0], [], []>} : vector<8x8xf32>, vector<8x8xf32>, vector<8x8xf32> -> vector<8x8xf32>
    %cst_175 = arith.constant 0.353553385 : f32
    %406 = vector.broadcast %cst_175 : f32 to vector<8x8xf32>
    %407 = arith.mulf %405, %406 : vector<8x8xf32>
    %cst_176 = arith.constant -1.000000e+09 : f32
    %408 = vector.broadcast %cst_176 : f32 to vector<8x8xf32>
    %409 = arith.select %12, %407, %408 : vector<8x8xi1>, vector<8x8xf32>
    %cst_177 = arith.constant dense<0xFF800000> : vector<8xf32>
    %410 = vector.multi_reduction <maximumf>, %409, %cst_177 [1] : vector<8x8xf32> to vector<8xf32>
    %411 = vector.shape_cast %410 : vector<8xf32> to vector<8x1xf32>
    %412 = vector.broadcast %411 : vector<8x1xf32> to vector<8x8xf32>
    %413 = arith.subf %409, %412 : vector<8x8xf32>
    %414 = math.exp %413 : vector<8x8xf32>
    %cst_178 = arith.constant dense<0.000000e+00> : vector<8xf32>
    %415 = vector.multi_reduction <add>, %414, %cst_178 [1] : vector<8x8xf32> to vector<8xf32>
    %416 = vector.shape_cast %415 : vector<8xf32> to vector<8x1xf32>
    %417 = tpu.reciprocal %416 {approx = true} : vector<8x1xf32> -> vector<8x1xf32>
    %418 = vector.broadcast %417 : vector<8x1xf32> to vector<8x8xf32>
    %419 = arith.mulf %414, %418 : vector<8x8xf32>
    %cst_179 = arith.constant dense<0.000000e+00> : vector<8x8xf32>
    %420 = tpu.matmul %419, %404, %cst_179 {dimension_numbers = #tpu.dot_dimension_numbers<[1], [0], [0], [1], [0, 0, 1, 1], [], []>} : vector<8x8xf32>, vector<8x8xf32>, vector<8x8xf32> -> vector<8x8xf32>
    %421 = vector.extract_strided_slice %380 {offsets = [0, 16], sizes = [8, 8], strides = [1, 1]} : vector<8x32xf32> to vector<8x8xf32>
    %422 = vector.extract_strided_slice %381 {offsets = [0, 16], sizes = [8, 8], strides = [1, 1]} : vector<8x32xf32> to vector<8x8xf32>
    %423 = vector.extract_strided_slice %382 {offsets = [0, 16], sizes = [8, 8], strides = [1, 1]} : vector<8x32xf32> to vector<8x8xf32>
    %cst_180 = arith.constant dense<0.000000e+00> : vector<8x8xf32>
    %424 = tpu.matmul %421, %422, %cst_180 {dimension_numbers = #tpu.dot_dimension_numbers<[1], [1], [0], [0], [0, 0, 1, 0], [], []>} : vector<8x8xf32>, vector<8x8xf32>, vector<8x8xf32> -> vector<8x8xf32>
    %cst_181 = arith.constant 0.353553385 : f32
    %425 = vector.broadcast %cst_181 : f32 to vector<8x8xf32>
    %426 = arith.mulf %424, %425 : vector<8x8xf32>
    %cst_182 = arith.constant -1.000000e+09 : f32
    %427 = vector.broadcast %cst_182 : f32 to vector<8x8xf32>
    %428 = arith.select %12, %426, %427 : vector<8x8xi1>, vector<8x8xf32>
    %cst_183 = arith.constant dense<0xFF800000> : vector<8xf32>
    %429 = vector.multi_reduction <maximumf>, %428, %cst_183 [1] : vector<8x8xf32> to vector<8xf32>
    %430 = vector.shape_cast %429 : vector<8xf32> to vector<8x1xf32>
    %431 = vector.broadcast %430 : vector<8x1xf32> to vector<8x8xf32>
    %432 = arith.subf %428, %431 : vector<8x8xf32>
    %433 = math.exp %432 : vector<8x8xf32>
    %cst_184 = arith.constant dense<0.000000e+00> : vector<8xf32>
    %434 = vector.multi_reduction <add>, %433, %cst_184 [1] : vector<8x8xf32> to vector<8xf32>
    %435 = vector.shape_cast %434 : vector<8xf32> to vector<8x1xf32>
    %436 = tpu.reciprocal %435 {approx = true} : vector<8x1xf32> -> vector<8x1xf32>
    %437 = vector.broadcast %436 : vector<8x1xf32> to vector<8x8xf32>
    %438 = arith.mulf %433, %437 : vector<8x8xf32>
    %cst_185 = arith.constant dense<0.000000e+00> : vector<8x8xf32>
    %439 = tpu.matmul %438, %423, %cst_185 {dimension_numbers = #tpu.dot_dimension_numbers<[1], [0], [0], [1], [0, 0, 1, 1], [], []>} : vector<8x8xf32>, vector<8x8xf32>, vector<8x8xf32> -> vector<8x8xf32>
    %440 = vector.extract_strided_slice %380 {offsets = [0, 24], sizes = [8, 8], strides = [1, 1]} : vector<8x32xf32> to vector<8x8xf32>
    %441 = vector.extract_strided_slice %381 {offsets = [0, 24], sizes = [8, 8], strides = [1, 1]} : vector<8x32xf32> to vector<8x8xf32>
    %442 = vector.extract_strided_slice %382 {offsets = [0, 24], sizes = [8, 8], strides = [1, 1]} : vector<8x32xf32> to vector<8x8xf32>
    %cst_186 = arith.constant dense<0.000000e+00> : vector<8x8xf32>
    %443 = tpu.matmul %440, %441, %cst_186 {dimension_numbers = #tpu.dot_dimension_numbers<[1], [1], [0], [0], [0, 0, 1, 0], [], []>} : vector<8x8xf32>, vector<8x8xf32>, vector<8x8xf32> -> vector<8x8xf32>
    %cst_187 = arith.constant 0.353553385 : f32
    %444 = vector.broadcast %cst_187 : f32 to vector<8x8xf32>
    %445 = arith.mulf %443, %444 : vector<8x8xf32>
    %cst_188 = arith.constant -1.000000e+09 : f32
    %446 = vector.broadcast %cst_188 : f32 to vector<8x8xf32>
    %447 = arith.select %12, %445, %446 : vector<8x8xi1>, vector<8x8xf32>
    %cst_189 = arith.constant dense<0xFF800000> : vector<8xf32>
    %448 = vector.multi_reduction <maximumf>, %447, %cst_189 [1] : vector<8x8xf32> to vector<8xf32>
    %449 = vector.shape_cast %448 : vector<8xf32> to vector<8x1xf32>
    %450 = vector.broadcast %449 : vector<8x1xf32> to vector<8x8xf32>
    %451 = arith.subf %447, %450 : vector<8x8xf32>
    %452 = math.exp %451 : vector<8x8xf32>
    %cst_190 = arith.constant dense<0.000000e+00> : vector<8xf32>
    %453 = vector.multi_reduction <add>, %452, %cst_190 [1] : vector<8x8xf32> to vector<8xf32>
    %454 = vector.shape_cast %453 : vector<8xf32> to vector<8x1xf32>
    %455 = tpu.reciprocal %454 {approx = true} : vector<8x1xf32> -> vector<8x1xf32>
    %456 = vector.broadcast %455 : vector<8x1xf32> to vector<8x8xf32>
    %457 = arith.mulf %452, %456 : vector<8x8xf32>
    %cst_191 = arith.constant dense<0.000000e+00> : vector<8x8xf32>
    %458 = tpu.matmul %457, %442, %cst_191 {dimension_numbers = #tpu.dot_dimension_numbers<[1], [0], [0], [1], [0, 0, 1, 1], [], []>} : vector<8x8xf32>, vector<8x8xf32>, vector<8x8xf32> -> vector<8x8xf32>
    %459 = tpu.concatenate %401, %420, %439, %458 in 1 : vector<8x8xf32>, vector<8x8xf32>, vector<8x8xf32>, vector<8x8xf32> -> vector<8x32xf32>
    %cst_192 = arith.constant dense<0.000000e+00> : vector<8x32xf32>
    %460 = tpu.matmul %459, %374, %cst_192 {dimension_numbers = #tpu.dot_dimension_numbers<[1], [0], [0], [1], [0, 0, 1, 1], [], []>} : vector<8x32xf32>, vector<32x32xf32>, vector<8x32xf32> -> vector<8x32xf32>
    %461 = vector.broadcast %376 : vector<1x32xf32> to vector<8x32xf32>
    %462 = arith.addf %460, %461 : vector<8x32xf32>
    %c0_193 = arith.constant 0 : index
    %c0_194 = arith.constant 0 : index
    %c0_195 = arith.constant 0 : index
    %463 = vector.load %arg21[%c0_193, %c0_194, %c0_195] : memref<2x2x32xf32, #tpu.memory_space<vmem>>, vector<1x2x32xf32>
    %464 = vector.shape_cast %463 : vector<1x2x32xf32> to vector<2x32xf32>
    %465 = arith.addf %368, %462 : vector<8x32xf32>
    %cst_196 = arith.constant dense<0.000000e+00> : vector<8xf32>
    %466 = vector.multi_reduction <add>, %465, %cst_196 [1] : vector<8x32xf32> to vector<8xf32>
    %467 = vector.shape_cast %466 : vector<8xf32> to vector<8x1xf32>
    %cst_197 = arith.constant 3.200000e+01 : f32
    %468 = vector.broadcast %cst_197 : f32 to vector<8x1xf32>
    %469 = arith.divf %467, %468 : vector<8x1xf32>
    %470 = vector.broadcast %469 : vector<8x1xf32> to vector<8x32xf32>
    %471 = arith.subf %465, %470 : vector<8x32xf32>
    %472 = arith.mulf %471, %471 : vector<8x32xf32>
    %cst_198 = arith.constant dense<0.000000e+00> : vector<8xf32>
    %473 = vector.multi_reduction <add>, %472, %cst_198 [1] : vector<8x32xf32> to vector<8xf32>
    %474 = vector.shape_cast %473 : vector<8xf32> to vector<8x1xf32>
    %cst_199 = arith.constant 3.200000e+01 : f32
    %475 = vector.broadcast %cst_199 : f32 to vector<8x1xf32>
    %476 = arith.divf %474, %475 : vector<8x1xf32>
    %477 = vector.extract_strided_slice %464 {offsets = [0, 0], sizes = [1, 32], strides = [1, 1]} : vector<2x32xf32> to vector<1x32xf32>
    %478 = vector.extract_strided_slice %464 {offsets = [1, 0], sizes = [1, 32], strides = [1, 1]} : vector<2x32xf32> to vector<1x32xf32>
    %479 = vector.broadcast %469 : vector<8x1xf32> to vector<8x32xf32>
    %480 = arith.subf %465, %479 : vector<8x32xf32>
    %cst_200 = arith.constant 9.99999974E-6 : f32
    %481 = vector.broadcast %cst_200 : f32 to vector<8x1xf32>
    %482 = arith.addf %476, %481 : vector<8x1xf32>
    %483 = math.rsqrt %482 : vector<8x1xf32>
    %484 = vector.broadcast %483 : vector<8x1xf32> to vector<8x32xf32>
    %485 = arith.mulf %480, %484 : vector<8x32xf32>
    %486 = vector.broadcast %477 : vector<1x32xf32> to vector<8x32xf32>
    %487 = arith.mulf %485, %486 : vector<8x32xf32>
    %488 = vector.broadcast %478 : vector<1x32xf32> to vector<8x32xf32>
    %489 = arith.addf %487, %488 : vector<8x32xf32>
    %c0_201 = arith.constant 0 : index
    %c0_202 = arith.constant 0 : index
    %c0_203 = arith.constant 0 : index
    %490 = vector.load %arg22[%c0_201, %c0_202, %c0_203] : memref<2x32x96xf32, #tpu.memory_space<vmem>>, vector<1x32x96xf32>
    %491 = vector.shape_cast %490 : vector<1x32x96xf32> to vector<32x96xf32>
    %c0_204 = arith.constant 0 : index
    %c0_205 = arith.constant 0 : index
    %c0_206 = arith.constant 0 : index
    %492 = vector.load %arg23[%c0_204, %c0_205, %c0_206] : memref<2x1x96xf32, #tpu.memory_space<vmem>>, vector<1x1x96xf32>
    %493 = vector.shape_cast %492 : vector<1x1x96xf32> to vector<1x96xf32>
    %c0_207 = arith.constant 0 : index
    %c0_208 = arith.constant 0 : index
    %c0_209 = arith.constant 0 : index
    %494 = vector.load %arg24[%c0_207, %c0_208, %c0_209] : memref<2x32x32xf32, #tpu.memory_space<vmem>>, vector<1x32x32xf32>
    %495 = vector.shape_cast %494 : vector<1x32x32xf32> to vector<32x32xf32>
    %c0_210 = arith.constant 0 : index
    %c0_211 = arith.constant 0 : index
    %c0_212 = arith.constant 0 : index
    %496 = vector.load %arg25[%c0_210, %c0_211, %c0_212] : memref<2x1x32xf32, #tpu.memory_space<vmem>>, vector<1x1x32xf32>
    %497 = vector.shape_cast %496 : vector<1x1x32xf32> to vector<1x32xf32>
    %498 = vector.extract_strided_slice %491 {offsets = [0, 0], sizes = [32, 32], strides = [1, 1]} : vector<32x96xf32> to vector<32x32xf32>
    %cst_213 = arith.constant dense<0.000000e+00> : vector<8x32xf32>
    %499 = tpu.matmul %489, %498, %cst_213 {dimension_numbers = #tpu.dot_dimension_numbers<[1], [0], [0], [1], [0, 0, 1, 1], [], []>} : vector<8x32xf32>, vector<32x32xf32>, vector<8x32xf32> -> vector<8x32xf32>
    %500 = vector.extract_strided_slice %493 {offsets = [0, 0], sizes = [1, 32], strides = [1, 1]} : vector<1x96xf32> to vector<1x32xf32>
    %501 = vector.broadcast %500 : vector<1x32xf32> to vector<8x32xf32>
    %502 = arith.addf %499, %501 : vector<8x32xf32>
    %503 = vector.extract_strided_slice %491 {offsets = [0, 32], sizes = [32, 64], strides = [1, 1]} : vector<32x96xf32> to vector<32x64xf32>
    %cst_214 = arith.constant dense<0.000000e+00> : vector<8x64xf32>
    %504 = tpu.matmul %362, %503, %cst_214 {dimension_numbers = #tpu.dot_dimension_numbers<[1], [0], [0], [1], [0, 0, 1, 1], [], []>} : vector<8x32xf32>, vector<32x64xf32>, vector<8x64xf32> -> vector<8x64xf32>
    %505 = vector.extract_strided_slice %493 {offsets = [0, 32], sizes = [1, 64], strides = [1, 1]} : vector<1x96xf32> to vector<1x64xf32>
    %506 = vector.broadcast %505 : vector<1x64xf32> to vector<8x64xf32>
    %507 = arith.addf %504, %506 : vector<8x64xf32>
    %508 = vector.extract_strided_slice %507 {offsets = [0, 0], sizes = [8, 32], strides = [1, 1]} : vector<8x64xf32> to vector<8x32xf32>
    %509 = vector.extract_strided_slice %507 {offsets = [0, 32], sizes = [8, 32], strides = [1, 1]} : vector<8x64xf32> to vector<8x32xf32>
    %510 = vector.extract_strided_slice %502 {offsets = [0, 0], sizes = [8, 8], strides = [1, 1]} : vector<8x32xf32> to vector<8x8xf32>
    %511 = vector.extract_strided_slice %508 {offsets = [0, 0], sizes = [8, 8], strides = [1, 1]} : vector<8x32xf32> to vector<8x8xf32>
    %512 = vector.extract_strided_slice %509 {offsets = [0, 0], sizes = [8, 8], strides = [1, 1]} : vector<8x32xf32> to vector<8x8xf32>
    %cst_215 = arith.constant dense<0.000000e+00> : vector<8x8xf32>
    %513 = tpu.matmul %510, %511, %cst_215 {dimension_numbers = #tpu.dot_dimension_numbers<[1], [1], [0], [0], [0, 0, 1, 0], [], []>} : vector<8x8xf32>, vector<8x8xf32>, vector<8x8xf32> -> vector<8x8xf32>
    %cst_216 = arith.constant 0.353553385 : f32
    %514 = vector.broadcast %cst_216 : f32 to vector<8x8xf32>
    %515 = arith.mulf %513, %514 : vector<8x8xf32>
    %cst_217 = arith.constant -1.000000e+09 : f32
    %516 = vector.shape_cast %3 : vector<1x8xi1> to vector<1x8xi1>
    %517 = vector.broadcast %516 : vector<1x8xi1> to vector<8x8xi1>
    %518 = vector.broadcast %cst_217 : f32 to vector<8x8xf32>
    %519 = arith.select %517, %515, %518 : vector<8x8xi1>, vector<8x8xf32>
    %cst_218 = arith.constant dense<0xFF800000> : vector<8xf32>
    %520 = vector.multi_reduction <maximumf>, %519, %cst_218 [1] : vector<8x8xf32> to vector<8xf32>
    %521 = vector.shape_cast %520 : vector<8xf32> to vector<8x1xf32>
    %522 = vector.broadcast %521 : vector<8x1xf32> to vector<8x8xf32>
    %523 = arith.subf %519, %522 : vector<8x8xf32>
    %524 = math.exp %523 : vector<8x8xf32>
    %cst_219 = arith.constant dense<0.000000e+00> : vector<8xf32>
    %525 = vector.multi_reduction <add>, %524, %cst_219 [1] : vector<8x8xf32> to vector<8xf32>
    %526 = vector.shape_cast %525 : vector<8xf32> to vector<8x1xf32>
    %527 = tpu.reciprocal %526 {approx = true} : vector<8x1xf32> -> vector<8x1xf32>
    %528 = vector.broadcast %527 : vector<8x1xf32> to vector<8x8xf32>
    %529 = arith.mulf %524, %528 : vector<8x8xf32>
    %cst_220 = arith.constant dense<0.000000e+00> : vector<8x8xf32>
    %530 = tpu.matmul %529, %512, %cst_220 {dimension_numbers = #tpu.dot_dimension_numbers<[1], [0], [0], [1], [0, 0, 1, 1], [], []>} : vector<8x8xf32>, vector<8x8xf32>, vector<8x8xf32> -> vector<8x8xf32>
    %531 = vector.extract_strided_slice %502 {offsets = [0, 8], sizes = [8, 8], strides = [1, 1]} : vector<8x32xf32> to vector<8x8xf32>
    %532 = vector.extract_strided_slice %508 {offsets = [0, 8], sizes = [8, 8], strides = [1, 1]} : vector<8x32xf32> to vector<8x8xf32>
    %533 = vector.extract_strided_slice %509 {offsets = [0, 8], sizes = [8, 8], strides = [1, 1]} : vector<8x32xf32> to vector<8x8xf32>
    %cst_221 = arith.constant dense<0.000000e+00> : vector<8x8xf32>
    %534 = tpu.matmul %531, %532, %cst_221 {dimension_numbers = #tpu.dot_dimension_numbers<[1], [1], [0], [0], [0, 0, 1, 0], [], []>} : vector<8x8xf32>, vector<8x8xf32>, vector<8x8xf32> -> vector<8x8xf32>
    %cst_222 = arith.constant 0.353553385 : f32
    %535 = vector.broadcast %cst_222 : f32 to vector<8x8xf32>
    %536 = arith.mulf %534, %535 : vector<8x8xf32>
    %cst_223 = arith.constant -1.000000e+09 : f32
    %537 = vector.shape_cast %3 : vector<1x8xi1> to vector<1x8xi1>
    %538 = vector.broadcast %537 : vector<1x8xi1> to vector<8x8xi1>
    %539 = vector.broadcast %cst_223 : f32 to vector<8x8xf32>
    %540 = arith.select %538, %536, %539 : vector<8x8xi1>, vector<8x8xf32>
    %cst_224 = arith.constant dense<0xFF800000> : vector<8xf32>
    %541 = vector.multi_reduction <maximumf>, %540, %cst_224 [1] : vector<8x8xf32> to vector<8xf32>
    %542 = vector.shape_cast %541 : vector<8xf32> to vector<8x1xf32>
    %543 = vector.broadcast %542 : vector<8x1xf32> to vector<8x8xf32>
    %544 = arith.subf %540, %543 : vector<8x8xf32>
    %545 = math.exp %544 : vector<8x8xf32>
    %cst_225 = arith.constant dense<0.000000e+00> : vector<8xf32>
    %546 = vector.multi_reduction <add>, %545, %cst_225 [1] : vector<8x8xf32> to vector<8xf32>
    %547 = vector.shape_cast %546 : vector<8xf32> to vector<8x1xf32>
    %548 = tpu.reciprocal %547 {approx = true} : vector<8x1xf32> -> vector<8x1xf32>
    %549 = vector.broadcast %548 : vector<8x1xf32> to vector<8x8xf32>
    %550 = arith.mulf %545, %549 : vector<8x8xf32>
    %cst_226 = arith.constant dense<0.000000e+00> : vector<8x8xf32>
    %551 = tpu.matmul %550, %533, %cst_226 {dimension_numbers = #tpu.dot_dimension_numbers<[1], [0], [0], [1], [0, 0, 1, 1], [], []>} : vector<8x8xf32>, vector<8x8xf32>, vector<8x8xf32> -> vector<8x8xf32>
    %552 = vector.extract_strided_slice %502 {offsets = [0, 16], sizes = [8, 8], strides = [1, 1]} : vector<8x32xf32> to vector<8x8xf32>
    %553 = vector.extract_strided_slice %508 {offsets = [0, 16], sizes = [8, 8], strides = [1, 1]} : vector<8x32xf32> to vector<8x8xf32>
    %554 = vector.extract_strided_slice %509 {offsets = [0, 16], sizes = [8, 8], strides = [1, 1]} : vector<8x32xf32> to vector<8x8xf32>
    %cst_227 = arith.constant dense<0.000000e+00> : vector<8x8xf32>
    %555 = tpu.matmul %552, %553, %cst_227 {dimension_numbers = #tpu.dot_dimension_numbers<[1], [1], [0], [0], [0, 0, 1, 0], [], []>} : vector<8x8xf32>, vector<8x8xf32>, vector<8x8xf32> -> vector<8x8xf32>
    %cst_228 = arith.constant 0.353553385 : f32
    %556 = vector.broadcast %cst_228 : f32 to vector<8x8xf32>
    %557 = arith.mulf %555, %556 : vector<8x8xf32>
    %cst_229 = arith.constant -1.000000e+09 : f32
    %558 = vector.shape_cast %3 : vector<1x8xi1> to vector<1x8xi1>
    %559 = vector.broadcast %558 : vector<1x8xi1> to vector<8x8xi1>
    %560 = vector.broadcast %cst_229 : f32 to vector<8x8xf32>
    %561 = arith.select %559, %557, %560 : vector<8x8xi1>, vector<8x8xf32>
    %cst_230 = arith.constant dense<0xFF800000> : vector<8xf32>
    %562 = vector.multi_reduction <maximumf>, %561, %cst_230 [1] : vector<8x8xf32> to vector<8xf32>
    %563 = vector.shape_cast %562 : vector<8xf32> to vector<8x1xf32>
    %564 = vector.broadcast %563 : vector<8x1xf32> to vector<8x8xf32>
    %565 = arith.subf %561, %564 : vector<8x8xf32>
    %566 = math.exp %565 : vector<8x8xf32>
    %cst_231 = arith.constant dense<0.000000e+00> : vector<8xf32>
    %567 = vector.multi_reduction <add>, %566, %cst_231 [1] : vector<8x8xf32> to vector<8xf32>
    %568 = vector.shape_cast %567 : vector<8xf32> to vector<8x1xf32>
    %569 = tpu.reciprocal %568 {approx = true} : vector<8x1xf32> -> vector<8x1xf32>
    %570 = vector.broadcast %569 : vector<8x1xf32> to vector<8x8xf32>
    %571 = arith.mulf %566, %570 : vector<8x8xf32>
    %cst_232 = arith.constant dense<0.000000e+00> : vector<8x8xf32>
    %572 = tpu.matmul %571, %554, %cst_232 {dimension_numbers = #tpu.dot_dimension_numbers<[1], [0], [0], [1], [0, 0, 1, 1], [], []>} : vector<8x8xf32>, vector<8x8xf32>, vector<8x8xf32> -> vector<8x8xf32>
    %573 = vector.extract_strided_slice %502 {offsets = [0, 24], sizes = [8, 8], strides = [1, 1]} : vector<8x32xf32> to vector<8x8xf32>
    %574 = vector.extract_strided_slice %508 {offsets = [0, 24], sizes = [8, 8], strides = [1, 1]} : vector<8x32xf32> to vector<8x8xf32>
    %575 = vector.extract_strided_slice %509 {offsets = [0, 24], sizes = [8, 8], strides = [1, 1]} : vector<8x32xf32> to vector<8x8xf32>
    %cst_233 = arith.constant dense<0.000000e+00> : vector<8x8xf32>
    %576 = tpu.matmul %573, %574, %cst_233 {dimension_numbers = #tpu.dot_dimension_numbers<[1], [1], [0], [0], [0, 0, 1, 0], [], []>} : vector<8x8xf32>, vector<8x8xf32>, vector<8x8xf32> -> vector<8x8xf32>
    %cst_234 = arith.constant 0.353553385 : f32
    %577 = vector.broadcast %cst_234 : f32 to vector<8x8xf32>
    %578 = arith.mulf %576, %577 : vector<8x8xf32>
    %cst_235 = arith.constant -1.000000e+09 : f32
    %579 = vector.shape_cast %3 : vector<1x8xi1> to vector<1x8xi1>
    %580 = vector.broadcast %579 : vector<1x8xi1> to vector<8x8xi1>
    %581 = vector.broadcast %cst_235 : f32 to vector<8x8xf32>
    %582 = arith.select %580, %578, %581 : vector<8x8xi1>, vector<8x8xf32>
    %cst_236 = arith.constant dense<0xFF800000> : vector<8xf32>
    %583 = vector.multi_reduction <maximumf>, %582, %cst_236 [1] : vector<8x8xf32> to vector<8xf32>
    %584 = vector.shape_cast %583 : vector<8xf32> to vector<8x1xf32>
    %585 = vector.broadcast %584 : vector<8x1xf32> to vector<8x8xf32>
    %586 = arith.subf %582, %585 : vector<8x8xf32>
    %587 = math.exp %586 : vector<8x8xf32>
    %cst_237 = arith.constant dense<0.000000e+00> : vector<8xf32>
    %588 = vector.multi_reduction <add>, %587, %cst_237 [1] : vector<8x8xf32> to vector<8xf32>
    %589 = vector.shape_cast %588 : vector<8xf32> to vector<8x1xf32>
    %590 = tpu.reciprocal %589 {approx = true} : vector<8x1xf32> -> vector<8x1xf32>
    %591 = vector.broadcast %590 : vector<8x1xf32> to vector<8x8xf32>
    %592 = arith.mulf %587, %591 : vector<8x8xf32>
    %cst_238 = arith.constant dense<0.000000e+00> : vector<8x8xf32>
    %593 = tpu.matmul %592, %575, %cst_238 {dimension_numbers = #tpu.dot_dimension_numbers<[1], [0], [0], [1], [0, 0, 1, 1], [], []>} : vector<8x8xf32>, vector<8x8xf32>, vector<8x8xf32> -> vector<8x8xf32>
    %594 = tpu.concatenate %530, %551, %572, %593 in 1 : vector<8x8xf32>, vector<8x8xf32>, vector<8x8xf32>, vector<8x8xf32> -> vector<8x32xf32>
    %cst_239 = arith.constant dense<0.000000e+00> : vector<8x32xf32>
    %595 = tpu.matmul %594, %495, %cst_239 {dimension_numbers = #tpu.dot_dimension_numbers<[1], [0], [0], [1], [0, 0, 1, 1], [], []>} : vector<8x32xf32>, vector<32x32xf32>, vector<8x32xf32> -> vector<8x32xf32>
    %596 = vector.broadcast %497 : vector<1x32xf32> to vector<8x32xf32>
    %597 = arith.addf %595, %596 : vector<8x32xf32>
    %c0_240 = arith.constant 0 : index
    %c0_241 = arith.constant 0 : index
    %c0_242 = arith.constant 0 : index
    %598 = vector.load %arg26[%c0_240, %c0_241, %c0_242] : memref<2x2x32xf32, #tpu.memory_space<vmem>>, vector<1x2x32xf32>
    %599 = vector.shape_cast %598 : vector<1x2x32xf32> to vector<2x32xf32>
    %600 = arith.addf %489, %597 : vector<8x32xf32>
    %cst_243 = arith.constant dense<0.000000e+00> : vector<8xf32>
    %601 = vector.multi_reduction <add>, %600, %cst_243 [1] : vector<8x32xf32> to vector<8xf32>
    %602 = vector.shape_cast %601 : vector<8xf32> to vector<8x1xf32>
    %cst_244 = arith.constant 3.200000e+01 : f32
    %603 = vector.broadcast %cst_244 : f32 to vector<8x1xf32>
    %604 = arith.divf %602, %603 : vector<8x1xf32>
    %605 = vector.broadcast %604 : vector<8x1xf32> to vector<8x32xf32>
    %606 = arith.subf %600, %605 : vector<8x32xf32>
    %607 = arith.mulf %606, %606 : vector<8x32xf32>
    %cst_245 = arith.constant dense<0.000000e+00> : vector<8xf32>
    %608 = vector.multi_reduction <add>, %607, %cst_245 [1] : vector<8x32xf32> to vector<8xf32>
    %609 = vector.shape_cast %608 : vector<8xf32> to vector<8x1xf32>
    %cst_246 = arith.constant 3.200000e+01 : f32
    %610 = vector.broadcast %cst_246 : f32 to vector<8x1xf32>
    %611 = arith.divf %609, %610 : vector<8x1xf32>
    %612 = vector.extract_strided_slice %599 {offsets = [0, 0], sizes = [1, 32], strides = [1, 1]} : vector<2x32xf32> to vector<1x32xf32>
    %613 = vector.extract_strided_slice %599 {offsets = [1, 0], sizes = [1, 32], strides = [1, 1]} : vector<2x32xf32> to vector<1x32xf32>
    %614 = vector.broadcast %604 : vector<8x1xf32> to vector<8x32xf32>
    %615 = arith.subf %600, %614 : vector<8x32xf32>
    %cst_247 = arith.constant 9.99999974E-6 : f32
    %616 = vector.broadcast %cst_247 : f32 to vector<8x1xf32>
    %617 = arith.addf %611, %616 : vector<8x1xf32>
    %618 = math.rsqrt %617 : vector<8x1xf32>
    %619 = vector.broadcast %618 : vector<8x1xf32> to vector<8x32xf32>
    %620 = arith.mulf %615, %619 : vector<8x32xf32>
    %621 = vector.broadcast %612 : vector<1x32xf32> to vector<8x32xf32>
    %622 = arith.mulf %620, %621 : vector<8x32xf32>
    %623 = vector.broadcast %613 : vector<1x32xf32> to vector<8x32xf32>
    %624 = arith.addf %622, %623 : vector<8x32xf32>
    %c0_248 = arith.constant 0 : index
    %c0_249 = arith.constant 0 : index
    %c0_250 = arith.constant 0 : index
    %625 = vector.load %arg27[%c0_248, %c0_249, %c0_250] : memref<2x32x64xf32, #tpu.memory_space<vmem>>, vector<1x32x64xf32>
    %626 = vector.shape_cast %625 : vector<1x32x64xf32> to vector<32x64xf32>
    %c0_251 = arith.constant 0 : index
    %c0_252 = arith.constant 0 : index
    %c0_253 = arith.constant 0 : index
    %627 = vector.load %arg28[%c0_251, %c0_252, %c0_253] : memref<2x1x64xf32, #tpu.memory_space<vmem>>, vector<1x1x64xf32>
    %628 = vector.shape_cast %627 : vector<1x1x64xf32> to vector<1x64xf32>
    %c0_254 = arith.constant 0 : index
    %c0_255 = arith.constant 0 : index
    %c0_256 = arith.constant 0 : index
    %629 = vector.load %arg29[%c0_254, %c0_255, %c0_256] : memref<2x64x32xf32, #tpu.memory_space<vmem>>, vector<1x64x32xf32>
    %630 = vector.shape_cast %629 : vector<1x64x32xf32> to vector<64x32xf32>
    %c0_257 = arith.constant 0 : index
    %c0_258 = arith.constant 0 : index
    %c0_259 = arith.constant 0 : index
    %631 = vector.load %arg30[%c0_257, %c0_258, %c0_259] : memref<2x1x32xf32, #tpu.memory_space<vmem>>, vector<1x1x32xf32>
    %632 = vector.shape_cast %631 : vector<1x1x32xf32> to vector<1x32xf32>
    %cst_260 = arith.constant dense<0.000000e+00> : vector<8x64xf32>
    %633 = tpu.matmul %624, %626, %cst_260 {dimension_numbers = #tpu.dot_dimension_numbers<[1], [0], [0], [1], [0, 0, 1, 1], [], []>} : vector<8x32xf32>, vector<32x64xf32>, vector<8x64xf32> -> vector<8x64xf32>
    %634 = vector.broadcast %628 : vector<1x64xf32> to vector<8x64xf32>
    %635 = arith.addf %633, %634 : vector<8x64xf32>
    %cst_261 = arith.constant 0.000000e+00 : f32
    %636 = vector.broadcast %cst_261 : f32 to vector<8x64xf32>
    %637 = arith.maximumf %635, %636 : vector<8x64xf32>
    %cst_262 = arith.constant dense<0.000000e+00> : vector<8x32xf32>
    %638 = tpu.matmul %637, %630, %cst_262 {dimension_numbers = #tpu.dot_dimension_numbers<[1], [0], [0], [1], [0, 0, 1, 1], [], []>} : vector<8x64xf32>, vector<64x32xf32>, vector<8x32xf32> -> vector<8x32xf32>
    %639 = vector.broadcast %632 : vector<1x32xf32> to vector<8x32xf32>
    %640 = arith.addf %638, %639 : vector<8x32xf32>
    %c0_263 = arith.constant 0 : index
    %c0_264 = arith.constant 0 : index
    %c0_265 = arith.constant 0 : index
    %641 = vector.load %arg31[%c0_263, %c0_264, %c0_265] : memref<2x2x32xf32, #tpu.memory_space<vmem>>, vector<1x2x32xf32>
    %642 = vector.shape_cast %641 : vector<1x2x32xf32> to vector<2x32xf32>
    %643 = arith.addf %624, %640 : vector<8x32xf32>
    %cst_266 = arith.constant dense<0.000000e+00> : vector<8xf32>
    %644 = vector.multi_reduction <add>, %643, %cst_266 [1] : vector<8x32xf32> to vector<8xf32>
    %645 = vector.shape_cast %644 : vector<8xf32> to vector<8x1xf32>
    %cst_267 = arith.constant 3.200000e+01 : f32
    %646 = vector.broadcast %cst_267 : f32 to vector<8x1xf32>
    %647 = arith.divf %645, %646 : vector<8x1xf32>
    %648 = vector.broadcast %647 : vector<8x1xf32> to vector<8x32xf32>
    %649 = arith.subf %643, %648 : vector<8x32xf32>
    %650 = arith.mulf %649, %649 : vector<8x32xf32>
    %cst_268 = arith.constant dense<0.000000e+00> : vector<8xf32>
    %651 = vector.multi_reduction <add>, %650, %cst_268 [1] : vector<8x32xf32> to vector<8xf32>
    %652 = vector.shape_cast %651 : vector<8xf32> to vector<8x1xf32>
    %cst_269 = arith.constant 3.200000e+01 : f32
    %653 = vector.broadcast %cst_269 : f32 to vector<8x1xf32>
    %654 = arith.divf %652, %653 : vector<8x1xf32>
    %655 = vector.extract_strided_slice %642 {offsets = [0, 0], sizes = [1, 32], strides = [1, 1]} : vector<2x32xf32> to vector<1x32xf32>
    %656 = vector.extract_strided_slice %642 {offsets = [1, 0], sizes = [1, 32], strides = [1, 1]} : vector<2x32xf32> to vector<1x32xf32>
    %657 = vector.broadcast %647 : vector<8x1xf32> to vector<8x32xf32>
    %658 = arith.subf %643, %657 : vector<8x32xf32>
    %cst_270 = arith.constant 9.99999974E-6 : f32
    %659 = vector.broadcast %cst_270 : f32 to vector<8x1xf32>
    %660 = arith.addf %654, %659 : vector<8x1xf32>
    %661 = math.rsqrt %660 : vector<8x1xf32>
    %662 = vector.broadcast %661 : vector<8x1xf32> to vector<8x32xf32>
    %663 = arith.mulf %658, %662 : vector<8x32xf32>
    %664 = vector.broadcast %655 : vector<1x32xf32> to vector<8x32xf32>
    %665 = arith.mulf %663, %664 : vector<8x32xf32>
    %666 = vector.broadcast %656 : vector<1x32xf32> to vector<8x32xf32>
    %667 = arith.addf %665, %666 : vector<8x32xf32>
    %c1_271 = arith.constant 1 : index
    %c0_272 = arith.constant 0 : index
    %c0_273 = arith.constant 0 : index
    %668 = vector.load %arg17[%c1_271, %c0_272, %c0_273] : memref<2x32x96xf32, #tpu.memory_space<vmem>>, vector<1x32x96xf32>
    %669 = vector.shape_cast %668 : vector<1x32x96xf32> to vector<32x96xf32>
    %c1_274 = arith.constant 1 : index
    %c0_275 = arith.constant 0 : index
    %c0_276 = arith.constant 0 : index
    %670 = vector.load %arg18[%c1_274, %c0_275, %c0_276] : memref<2x1x96xf32, #tpu.memory_space<vmem>>, vector<1x1x96xf32>
    %671 = vector.shape_cast %670 : vector<1x1x96xf32> to vector<1x96xf32>
    %c1_277 = arith.constant 1 : index
    %c0_278 = arith.constant 0 : index
    %c0_279 = arith.constant 0 : index
    %672 = vector.load %arg19[%c1_277, %c0_278, %c0_279] : memref<2x32x32xf32, #tpu.memory_space<vmem>>, vector<1x32x32xf32>
    %673 = vector.shape_cast %672 : vector<1x32x32xf32> to vector<32x32xf32>
    %c1_280 = arith.constant 1 : index
    %c0_281 = arith.constant 0 : index
    %c0_282 = arith.constant 0 : index
    %674 = vector.load %arg20[%c1_280, %c0_281, %c0_282] : memref<2x1x32xf32, #tpu.memory_space<vmem>>, vector<1x1x32xf32>
    %675 = vector.shape_cast %674 : vector<1x1x32xf32> to vector<1x32xf32>
    %cst_283 = arith.constant dense<0.000000e+00> : vector<8x96xf32>
    %676 = tpu.matmul %667, %669, %cst_283 {dimension_numbers = #tpu.dot_dimension_numbers<[1], [0], [0], [1], [0, 0, 1, 1], [], []>} : vector<8x32xf32>, vector<32x96xf32>, vector<8x96xf32> -> vector<8x96xf32>
    %677 = vector.broadcast %671 : vector<1x96xf32> to vector<8x96xf32>
    %678 = arith.addf %676, %677 : vector<8x96xf32>
    %679 = vector.extract_strided_slice %678 {offsets = [0, 0], sizes = [8, 32], strides = [1, 1]} : vector<8x96xf32> to vector<8x32xf32>
    %680 = vector.extract_strided_slice %678 {offsets = [0, 32], sizes = [8, 32], strides = [1, 1]} : vector<8x96xf32> to vector<8x32xf32>
    %681 = vector.extract_strided_slice %678 {offsets = [0, 64], sizes = [8, 32], strides = [1, 1]} : vector<8x96xf32> to vector<8x32xf32>
    %682 = vector.extract_strided_slice %679 {offsets = [0, 0], sizes = [8, 8], strides = [1, 1]} : vector<8x32xf32> to vector<8x8xf32>
    %683 = vector.extract_strided_slice %680 {offsets = [0, 0], sizes = [8, 8], strides = [1, 1]} : vector<8x32xf32> to vector<8x8xf32>
    %684 = vector.extract_strided_slice %681 {offsets = [0, 0], sizes = [8, 8], strides = [1, 1]} : vector<8x32xf32> to vector<8x8xf32>
    %cst_284 = arith.constant dense<0.000000e+00> : vector<8x8xf32>
    %685 = tpu.matmul %682, %683, %cst_284 {dimension_numbers = #tpu.dot_dimension_numbers<[1], [1], [0], [0], [0, 0, 1, 0], [], []>} : vector<8x8xf32>, vector<8x8xf32>, vector<8x8xf32> -> vector<8x8xf32>
    %cst_285 = arith.constant 0.353553385 : f32
    %686 = vector.broadcast %cst_285 : f32 to vector<8x8xf32>
    %687 = arith.mulf %685, %686 : vector<8x8xf32>
    %cst_286 = arith.constant -1.000000e+09 : f32
    %688 = vector.broadcast %cst_286 : f32 to vector<8x8xf32>
    %689 = arith.select %12, %687, %688 : vector<8x8xi1>, vector<8x8xf32>
    %cst_287 = arith.constant dense<0xFF800000> : vector<8xf32>
    %690 = vector.multi_reduction <maximumf>, %689, %cst_287 [1] : vector<8x8xf32> to vector<8xf32>
    %691 = vector.shape_cast %690 : vector<8xf32> to vector<8x1xf32>
    %692 = vector.broadcast %691 : vector<8x1xf32> to vector<8x8xf32>
    %693 = arith.subf %689, %692 : vector<8x8xf32>
    %694 = math.exp %693 : vector<8x8xf32>
    %cst_288 = arith.constant dense<0.000000e+00> : vector<8xf32>
    %695 = vector.multi_reduction <add>, %694, %cst_288 [1] : vector<8x8xf32> to vector<8xf32>
    %696 = vector.shape_cast %695 : vector<8xf32> to vector<8x1xf32>
    %697 = tpu.reciprocal %696 {approx = true} : vector<8x1xf32> -> vector<8x1xf32>
    %698 = vector.broadcast %697 : vector<8x1xf32> to vector<8x8xf32>
    %699 = arith.mulf %694, %698 : vector<8x8xf32>
    %cst_289 = arith.constant dense<0.000000e+00> : vector<8x8xf32>
    %700 = tpu.matmul %699, %684, %cst_289 {dimension_numbers = #tpu.dot_dimension_numbers<[1], [0], [0], [1], [0, 0, 1, 1], [], []>} : vector<8x8xf32>, vector<8x8xf32>, vector<8x8xf32> -> vector<8x8xf32>
    %701 = vector.extract_strided_slice %679 {offsets = [0, 8], sizes = [8, 8], strides = [1, 1]} : vector<8x32xf32> to vector<8x8xf32>
    %702 = vector.extract_strided_slice %680 {offsets = [0, 8], sizes = [8, 8], strides = [1, 1]} : vector<8x32xf32> to vector<8x8xf32>
    %703 = vector.extract_strided_slice %681 {offsets = [0, 8], sizes = [8, 8], strides = [1, 1]} : vector<8x32xf32> to vector<8x8xf32>
    %cst_290 = arith.constant dense<0.000000e+00> : vector<8x8xf32>
    %704 = tpu.matmul %701, %702, %cst_290 {dimension_numbers = #tpu.dot_dimension_numbers<[1], [1], [0], [0], [0, 0, 1, 0], [], []>} : vector<8x8xf32>, vector<8x8xf32>, vector<8x8xf32> -> vector<8x8xf32>
    %cst_291 = arith.constant 0.353553385 : f32
    %705 = vector.broadcast %cst_291 : f32 to vector<8x8xf32>
    %706 = arith.mulf %704, %705 : vector<8x8xf32>
    %cst_292 = arith.constant -1.000000e+09 : f32
    %707 = vector.broadcast %cst_292 : f32 to vector<8x8xf32>
    %708 = arith.select %12, %706, %707 : vector<8x8xi1>, vector<8x8xf32>
    %cst_293 = arith.constant dense<0xFF800000> : vector<8xf32>
    %709 = vector.multi_reduction <maximumf>, %708, %cst_293 [1] : vector<8x8xf32> to vector<8xf32>
    %710 = vector.shape_cast %709 : vector<8xf32> to vector<8x1xf32>
    %711 = vector.broadcast %710 : vector<8x1xf32> to vector<8x8xf32>
    %712 = arith.subf %708, %711 : vector<8x8xf32>
    %713 = math.exp %712 : vector<8x8xf32>
    %cst_294 = arith.constant dense<0.000000e+00> : vector<8xf32>
    %714 = vector.multi_reduction <add>, %713, %cst_294 [1] : vector<8x8xf32> to vector<8xf32>
    %715 = vector.shape_cast %714 : vector<8xf32> to vector<8x1xf32>
    %716 = tpu.reciprocal %715 {approx = true} : vector<8x1xf32> -> vector<8x1xf32>
    %717 = vector.broadcast %716 : vector<8x1xf32> to vector<8x8xf32>
    %718 = arith.mulf %713, %717 : vector<8x8xf32>
    %cst_295 = arith.constant dense<0.000000e+00> : vector<8x8xf32>
    %719 = tpu.matmul %718, %703, %cst_295 {dimension_numbers = #tpu.dot_dimension_numbers<[1], [0], [0], [1], [0, 0, 1, 1], [], []>} : vector<8x8xf32>, vector<8x8xf32>, vector<8x8xf32> -> vector<8x8xf32>
    %720 = vector.extract_strided_slice %679 {offsets = [0, 16], sizes = [8, 8], strides = [1, 1]} : vector<8x32xf32> to vector<8x8xf32>
    %721 = vector.extract_strided_slice %680 {offsets = [0, 16], sizes = [8, 8], strides = [1, 1]} : vector<8x32xf32> to vector<8x8xf32>
    %722 = vector.extract_strided_slice %681 {offsets = [0, 16], sizes = [8, 8], strides = [1, 1]} : vector<8x32xf32> to vector<8x8xf32>
    %cst_296 = arith.constant dense<0.000000e+00> : vector<8x8xf32>
    %723 = tpu.matmul %720, %721, %cst_296 {dimension_numbers = #tpu.dot_dimension_numbers<[1], [1], [0], [0], [0, 0, 1, 0], [], []>} : vector<8x8xf32>, vector<8x8xf32>, vector<8x8xf32> -> vector<8x8xf32>
    %cst_297 = arith.constant 0.353553385 : f32
    %724 = vector.broadcast %cst_297 : f32 to vector<8x8xf32>
    %725 = arith.mulf %723, %724 : vector<8x8xf32>
    %cst_298 = arith.constant -1.000000e+09 : f32
    %726 = vector.broadcast %cst_298 : f32 to vector<8x8xf32>
    %727 = arith.select %12, %725, %726 : vector<8x8xi1>, vector<8x8xf32>
    %cst_299 = arith.constant dense<0xFF800000> : vector<8xf32>
    %728 = vector.multi_reduction <maximumf>, %727, %cst_299 [1] : vector<8x8xf32> to vector<8xf32>
    %729 = vector.shape_cast %728 : vector<8xf32> to vector<8x1xf32>
    %730 = vector.broadcast %729 : vector<8x1xf32> to vector<8x8xf32>
    %731 = arith.subf %727, %730 : vector<8x8xf32>
    %732 = math.exp %731 : vector<8x8xf32>
    %cst_300 = arith.constant dense<0.000000e+00> : vector<8xf32>
    %733 = vector.multi_reduction <add>, %732, %cst_300 [1] : vector<8x8xf32> to vector<8xf32>
    %734 = vector.shape_cast %733 : vector<8xf32> to vector<8x1xf32>
    %735 = tpu.reciprocal %734 {approx = true} : vector<8x1xf32> -> vector<8x1xf32>
    %736 = vector.broadcast %735 : vector<8x1xf32> to vector<8x8xf32>
    %737 = arith.mulf %732, %736 : vector<8x8xf32>
    %cst_301 = arith.constant dense<0.000000e+00> : vector<8x8xf32>
    %738 = tpu.matmul %737, %722, %cst_301 {dimension_numbers = #tpu.dot_dimension_numbers<[1], [0], [0], [1], [0, 0, 1, 1], [], []>} : vector<8x8xf32>, vector<8x8xf32>, vector<8x8xf32> -> vector<8x8xf32>
    %739 = vector.extract_strided_slice %679 {offsets = [0, 24], sizes = [8, 8], strides = [1, 1]} : vector<8x32xf32> to vector<8x8xf32>
    %740 = vector.extract_strided_slice %680 {offsets = [0, 24], sizes = [8, 8], strides = [1, 1]} : vector<8x32xf32> to vector<8x8xf32>
    %741 = vector.extract_strided_slice %681 {offsets = [0, 24], sizes = [8, 8], strides = [1, 1]} : vector<8x32xf32> to vector<8x8xf32>
    %cst_302 = arith.constant dense<0.000000e+00> : vector<8x8xf32>
    %742 = tpu.matmul %739, %740, %cst_302 {dimension_numbers = #tpu.dot_dimension_numbers<[1], [1], [0], [0], [0, 0, 1, 0], [], []>} : vector<8x8xf32>, vector<8x8xf32>, vector<8x8xf32> -> vector<8x8xf32>
    %cst_303 = arith.constant 0.353553385 : f32
    %743 = vector.broadcast %cst_303 : f32 to vector<8x8xf32>
    %744 = arith.mulf %742, %743 : vector<8x8xf32>
    %cst_304 = arith.constant -1.000000e+09 : f32
    %745 = vector.broadcast %cst_304 : f32 to vector<8x8xf32>
    %746 = arith.select %12, %744, %745 : vector<8x8xi1>, vector<8x8xf32>
    %cst_305 = arith.constant dense<0xFF800000> : vector<8xf32>
    %747 = vector.multi_reduction <maximumf>, %746, %cst_305 [1] : vector<8x8xf32> to vector<8xf32>
    %748 = vector.shape_cast %747 : vector<8xf32> to vector<8x1xf32>
    %749 = vector.broadcast %748 : vector<8x1xf32> to vector<8x8xf32>
    %750 = arith.subf %746, %749 : vector<8x8xf32>
    %751 = math.exp %750 : vector<8x8xf32>
    %cst_306 = arith.constant dense<0.000000e+00> : vector<8xf32>
    %752 = vector.multi_reduction <add>, %751, %cst_306 [1] : vector<8x8xf32> to vector<8xf32>
    %753 = vector.shape_cast %752 : vector<8xf32> to vector<8x1xf32>
    %754 = tpu.reciprocal %753 {approx = true} : vector<8x1xf32> -> vector<8x1xf32>
    %755 = vector.broadcast %754 : vector<8x1xf32> to vector<8x8xf32>
    %756 = arith.mulf %751, %755 : vector<8x8xf32>
    %cst_307 = arith.constant dense<0.000000e+00> : vector<8x8xf32>
    %757 = tpu.matmul %756, %741, %cst_307 {dimension_numbers = #tpu.dot_dimension_numbers<[1], [0], [0], [1], [0, 0, 1, 1], [], []>} : vector<8x8xf32>, vector<8x8xf32>, vector<8x8xf32> -> vector<8x8xf32>
    %758 = tpu.concatenate %700, %719, %738, %757 in 1 : vector<8x8xf32>, vector<8x8xf32>, vector<8x8xf32>, vector<8x8xf32> -> vector<8x32xf32>
    %cst_308 = arith.constant dense<0.000000e+00> : vector<8x32xf32>
    %759 = tpu.matmul %758, %673, %cst_308 {dimension_numbers = #tpu.dot_dimension_numbers<[1], [0], [0], [1], [0, 0, 1, 1], [], []>} : vector<8x32xf32>, vector<32x32xf32>, vector<8x32xf32> -> vector<8x32xf32>
    %760 = vector.broadcast %675 : vector<1x32xf32> to vector<8x32xf32>
    %761 = arith.addf %759, %760 : vector<8x32xf32>
    %c1_309 = arith.constant 1 : index
    %c0_310 = arith.constant 0 : index
    %c0_311 = arith.constant 0 : index
    %762 = vector.load %arg21[%c1_309, %c0_310, %c0_311] : memref<2x2x32xf32, #tpu.memory_space<vmem>>, vector<1x2x32xf32>
    %763 = vector.shape_cast %762 : vector<1x2x32xf32> to vector<2x32xf32>
    %764 = arith.addf %667, %761 : vector<8x32xf32>
    %cst_312 = arith.constant dense<0.000000e+00> : vector<8xf32>
    %765 = vector.multi_reduction <add>, %764, %cst_312 [1] : vector<8x32xf32> to vector<8xf32>
    %766 = vector.shape_cast %765 : vector<8xf32> to vector<8x1xf32>
    %cst_313 = arith.constant 3.200000e+01 : f32
    %767 = vector.broadcast %cst_313 : f32 to vector<8x1xf32>
    %768 = arith.divf %766, %767 : vector<8x1xf32>
    %769 = vector.broadcast %768 : vector<8x1xf32> to vector<8x32xf32>
    %770 = arith.subf %764, %769 : vector<8x32xf32>
    %771 = arith.mulf %770, %770 : vector<8x32xf32>
    %cst_314 = arith.constant dense<0.000000e+00> : vector<8xf32>
    %772 = vector.multi_reduction <add>, %771, %cst_314 [1] : vector<8x32xf32> to vector<8xf32>
    %773 = vector.shape_cast %772 : vector<8xf32> to vector<8x1xf32>
    %cst_315 = arith.constant 3.200000e+01 : f32
    %774 = vector.broadcast %cst_315 : f32 to vector<8x1xf32>
    %775 = arith.divf %773, %774 : vector<8x1xf32>
    %776 = vector.extract_strided_slice %763 {offsets = [0, 0], sizes = [1, 32], strides = [1, 1]} : vector<2x32xf32> to vector<1x32xf32>
    %777 = vector.extract_strided_slice %763 {offsets = [1, 0], sizes = [1, 32], strides = [1, 1]} : vector<2x32xf32> to vector<1x32xf32>
    %778 = vector.broadcast %768 : vector<8x1xf32> to vector<8x32xf32>
    %779 = arith.subf %764, %778 : vector<8x32xf32>
    %cst_316 = arith.constant 9.99999974E-6 : f32
    %780 = vector.broadcast %cst_316 : f32 to vector<8x1xf32>
    %781 = arith.addf %775, %780 : vector<8x1xf32>
    %782 = math.rsqrt %781 : vector<8x1xf32>
    %783 = vector.broadcast %782 : vector<8x1xf32> to vector<8x32xf32>
    %784 = arith.mulf %779, %783 : vector<8x32xf32>
    %785 = vector.broadcast %776 : vector<1x32xf32> to vector<8x32xf32>
    %786 = arith.mulf %784, %785 : vector<8x32xf32>
    %787 = vector.broadcast %777 : vector<1x32xf32> to vector<8x32xf32>
    %788 = arith.addf %786, %787 : vector<8x32xf32>
    %c1_317 = arith.constant 1 : index
    %c0_318 = arith.constant 0 : index
    %c0_319 = arith.constant 0 : index
    %789 = vector.load %arg22[%c1_317, %c0_318, %c0_319] : memref<2x32x96xf32, #tpu.memory_space<vmem>>, vector<1x32x96xf32>
    %790 = vector.shape_cast %789 : vector<1x32x96xf32> to vector<32x96xf32>
    %c1_320 = arith.constant 1 : index
    %c0_321 = arith.constant 0 : index
    %c0_322 = arith.constant 0 : index
    %791 = vector.load %arg23[%c1_320, %c0_321, %c0_322] : memref<2x1x96xf32, #tpu.memory_space<vmem>>, vector<1x1x96xf32>
    %792 = vector.shape_cast %791 : vector<1x1x96xf32> to vector<1x96xf32>
    %c1_323 = arith.constant 1 : index
    %c0_324 = arith.constant 0 : index
    %c0_325 = arith.constant 0 : index
    %793 = vector.load %arg24[%c1_323, %c0_324, %c0_325] : memref<2x32x32xf32, #tpu.memory_space<vmem>>, vector<1x32x32xf32>
    %794 = vector.shape_cast %793 : vector<1x32x32xf32> to vector<32x32xf32>
    %c1_326 = arith.constant 1 : index
    %c0_327 = arith.constant 0 : index
    %c0_328 = arith.constant 0 : index
    %795 = vector.load %arg25[%c1_326, %c0_327, %c0_328] : memref<2x1x32xf32, #tpu.memory_space<vmem>>, vector<1x1x32xf32>
    %796 = vector.shape_cast %795 : vector<1x1x32xf32> to vector<1x32xf32>
    %797 = vector.extract_strided_slice %790 {offsets = [0, 0], sizes = [32, 32], strides = [1, 1]} : vector<32x96xf32> to vector<32x32xf32>
    %cst_329 = arith.constant dense<0.000000e+00> : vector<8x32xf32>
    %798 = tpu.matmul %788, %797, %cst_329 {dimension_numbers = #tpu.dot_dimension_numbers<[1], [0], [0], [1], [0, 0, 1, 1], [], []>} : vector<8x32xf32>, vector<32x32xf32>, vector<8x32xf32> -> vector<8x32xf32>
    %799 = vector.extract_strided_slice %792 {offsets = [0, 0], sizes = [1, 32], strides = [1, 1]} : vector<1x96xf32> to vector<1x32xf32>
    %800 = vector.broadcast %799 : vector<1x32xf32> to vector<8x32xf32>
    %801 = arith.addf %798, %800 : vector<8x32xf32>
    %802 = vector.extract_strided_slice %790 {offsets = [0, 32], sizes = [32, 64], strides = [1, 1]} : vector<32x96xf32> to vector<32x64xf32>
    %cst_330 = arith.constant dense<0.000000e+00> : vector<8x64xf32>
    %803 = tpu.matmul %362, %802, %cst_330 {dimension_numbers = #tpu.dot_dimension_numbers<[1], [0], [0], [1], [0, 0, 1, 1], [], []>} : vector<8x32xf32>, vector<32x64xf32>, vector<8x64xf32> -> vector<8x64xf32>
    %804 = vector.extract_strided_slice %792 {offsets = [0, 32], sizes = [1, 64], strides = [1, 1]} : vector<1x96xf32> to vector<1x64xf32>
    %805 = vector.broadcast %804 : vector<1x64xf32> to vector<8x64xf32>
    %806 = arith.addf %803, %805 : vector<8x64xf32>
    %807 = vector.extract_strided_slice %806 {offsets = [0, 0], sizes = [8, 32], strides = [1, 1]} : vector<8x64xf32> to vector<8x32xf32>
    %808 = vector.extract_strided_slice %806 {offsets = [0, 32], sizes = [8, 32], strides = [1, 1]} : vector<8x64xf32> to vector<8x32xf32>
    %809 = vector.extract_strided_slice %801 {offsets = [0, 0], sizes = [8, 8], strides = [1, 1]} : vector<8x32xf32> to vector<8x8xf32>
    %810 = vector.extract_strided_slice %807 {offsets = [0, 0], sizes = [8, 8], strides = [1, 1]} : vector<8x32xf32> to vector<8x8xf32>
    %811 = vector.extract_strided_slice %808 {offsets = [0, 0], sizes = [8, 8], strides = [1, 1]} : vector<8x32xf32> to vector<8x8xf32>
    %cst_331 = arith.constant dense<0.000000e+00> : vector<8x8xf32>
    %812 = tpu.matmul %809, %810, %cst_331 {dimension_numbers = #tpu.dot_dimension_numbers<[1], [1], [0], [0], [0, 0, 1, 0], [], []>} : vector<8x8xf32>, vector<8x8xf32>, vector<8x8xf32> -> vector<8x8xf32>
    %cst_332 = arith.constant 0.353553385 : f32
    %813 = vector.broadcast %cst_332 : f32 to vector<8x8xf32>
    %814 = arith.mulf %812, %813 : vector<8x8xf32>
    %cst_333 = arith.constant -1.000000e+09 : f32
    %815 = vector.shape_cast %3 : vector<1x8xi1> to vector<1x8xi1>
    %816 = vector.broadcast %815 : vector<1x8xi1> to vector<8x8xi1>
    %817 = vector.broadcast %cst_333 : f32 to vector<8x8xf32>
    %818 = arith.select %816, %814, %817 : vector<8x8xi1>, vector<8x8xf32>
    %cst_334 = arith.constant dense<0xFF800000> : vector<8xf32>
    %819 = vector.multi_reduction <maximumf>, %818, %cst_334 [1] : vector<8x8xf32> to vector<8xf32>
    %820 = vector.shape_cast %819 : vector<8xf32> to vector<8x1xf32>
    %821 = vector.broadcast %820 : vector<8x1xf32> to vector<8x8xf32>
    %822 = arith.subf %818, %821 : vector<8x8xf32>
    %823 = math.exp %822 : vector<8x8xf32>
    %cst_335 = arith.constant dense<0.000000e+00> : vector<8xf32>
    %824 = vector.multi_reduction <add>, %823, %cst_335 [1] : vector<8x8xf32> to vector<8xf32>
    %825 = vector.shape_cast %824 : vector<8xf32> to vector<8x1xf32>
    %826 = tpu.reciprocal %825 {approx = true} : vector<8x1xf32> -> vector<8x1xf32>
    %827 = vector.broadcast %826 : vector<8x1xf32> to vector<8x8xf32>
    %828 = arith.mulf %823, %827 : vector<8x8xf32>
    %cst_336 = arith.constant dense<0.000000e+00> : vector<8x8xf32>
    %829 = tpu.matmul %828, %811, %cst_336 {dimension_numbers = #tpu.dot_dimension_numbers<[1], [0], [0], [1], [0, 0, 1, 1], [], []>} : vector<8x8xf32>, vector<8x8xf32>, vector<8x8xf32> -> vector<8x8xf32>
    %830 = vector.extract_strided_slice %801 {offsets = [0, 8], sizes = [8, 8], strides = [1, 1]} : vector<8x32xf32> to vector<8x8xf32>
    %831 = vector.extract_strided_slice %807 {offsets = [0, 8], sizes = [8, 8], strides = [1, 1]} : vector<8x32xf32> to vector<8x8xf32>
    %832 = vector.extract_strided_slice %808 {offsets = [0, 8], sizes = [8, 8], strides = [1, 1]} : vector<8x32xf32> to vector<8x8xf32>
    %cst_337 = arith.constant dense<0.000000e+00> : vector<8x8xf32>
    %833 = tpu.matmul %830, %831, %cst_337 {dimension_numbers = #tpu.dot_dimension_numbers<[1], [1], [0], [0], [0, 0, 1, 0], [], []>} : vector<8x8xf32>, vector<8x8xf32>, vector<8x8xf32> -> vector<8x8xf32>
    %cst_338 = arith.constant 0.353553385 : f32
    %834 = vector.broadcast %cst_338 : f32 to vector<8x8xf32>
    %835 = arith.mulf %833, %834 : vector<8x8xf32>
    %cst_339 = arith.constant -1.000000e+09 : f32
    %836 = vector.shape_cast %3 : vector<1x8xi1> to vector<1x8xi1>
    %837 = vector.broadcast %836 : vector<1x8xi1> to vector<8x8xi1>
    %838 = vector.broadcast %cst_339 : f32 to vector<8x8xf32>
    %839 = arith.select %837, %835, %838 : vector<8x8xi1>, vector<8x8xf32>
    %cst_340 = arith.constant dense<0xFF800000> : vector<8xf32>
    %840 = vector.multi_reduction <maximumf>, %839, %cst_340 [1] : vector<8x8xf32> to vector<8xf32>
    %841 = vector.shape_cast %840 : vector<8xf32> to vector<8x1xf32>
    %842 = vector.broadcast %841 : vector<8x1xf32> to vector<8x8xf32>
    %843 = arith.subf %839, %842 : vector<8x8xf32>
    %844 = math.exp %843 : vector<8x8xf32>
    %cst_341 = arith.constant dense<0.000000e+00> : vector<8xf32>
    %845 = vector.multi_reduction <add>, %844, %cst_341 [1] : vector<8x8xf32> to vector<8xf32>
    %846 = vector.shape_cast %845 : vector<8xf32> to vector<8x1xf32>
    %847 = tpu.reciprocal %846 {approx = true} : vector<8x1xf32> -> vector<8x1xf32>
    %848 = vector.broadcast %847 : vector<8x1xf32> to vector<8x8xf32>
    %849 = arith.mulf %844, %848 : vector<8x8xf32>
    %cst_342 = arith.constant dense<0.000000e+00> : vector<8x8xf32>
    %850 = tpu.matmul %849, %832, %cst_342 {dimension_numbers = #tpu.dot_dimension_numbers<[1], [0], [0], [1], [0, 0, 1, 1], [], []>} : vector<8x8xf32>, vector<8x8xf32>, vector<8x8xf32> -> vector<8x8xf32>
    %851 = vector.extract_strided_slice %801 {offsets = [0, 16], sizes = [8, 8], strides = [1, 1]} : vector<8x32xf32> to vector<8x8xf32>
    %852 = vector.extract_strided_slice %807 {offsets = [0, 16], sizes = [8, 8], strides = [1, 1]} : vector<8x32xf32> to vector<8x8xf32>
    %853 = vector.extract_strided_slice %808 {offsets = [0, 16], sizes = [8, 8], strides = [1, 1]} : vector<8x32xf32> to vector<8x8xf32>
    %cst_343 = arith.constant dense<0.000000e+00> : vector<8x8xf32>
    %854 = tpu.matmul %851, %852, %cst_343 {dimension_numbers = #tpu.dot_dimension_numbers<[1], [1], [0], [0], [0, 0, 1, 0], [], []>} : vector<8x8xf32>, vector<8x8xf32>, vector<8x8xf32> -> vector<8x8xf32>
    %cst_344 = arith.constant 0.353553385 : f32
    %855 = vector.broadcast %cst_344 : f32 to vector<8x8xf32>
    %856 = arith.mulf %854, %855 : vector<8x8xf32>
    %cst_345 = arith.constant -1.000000e+09 : f32
    %857 = vector.shape_cast %3 : vector<1x8xi1> to vector<1x8xi1>
    %858 = vector.broadcast %857 : vector<1x8xi1> to vector<8x8xi1>
    %859 = vector.broadcast %cst_345 : f32 to vector<8x8xf32>
    %860 = arith.select %858, %856, %859 : vector<8x8xi1>, vector<8x8xf32>
    %cst_346 = arith.constant dense<0xFF800000> : vector<8xf32>
    %861 = vector.multi_reduction <maximumf>, %860, %cst_346 [1] : vector<8x8xf32> to vector<8xf32>
    %862 = vector.shape_cast %861 : vector<8xf32> to vector<8x1xf32>
    %863 = vector.broadcast %862 : vector<8x1xf32> to vector<8x8xf32>
    %864 = arith.subf %860, %863 : vector<8x8xf32>
    %865 = math.exp %864 : vector<8x8xf32>
    %cst_347 = arith.constant dense<0.000000e+00> : vector<8xf32>
    %866 = vector.multi_reduction <add>, %865, %cst_347 [1] : vector<8x8xf32> to vector<8xf32>
    %867 = vector.shape_cast %866 : vector<8xf32> to vector<8x1xf32>
    %868 = tpu.reciprocal %867 {approx = true} : vector<8x1xf32> -> vector<8x1xf32>
    %869 = vector.broadcast %868 : vector<8x1xf32> to vector<8x8xf32>
    %870 = arith.mulf %865, %869 : vector<8x8xf32>
    %cst_348 = arith.constant dense<0.000000e+00> : vector<8x8xf32>
    %871 = tpu.matmul %870, %853, %cst_348 {dimension_numbers = #tpu.dot_dimension_numbers<[1], [0], [0], [1], [0, 0, 1, 1], [], []>} : vector<8x8xf32>, vector<8x8xf32>, vector<8x8xf32> -> vector<8x8xf32>
    %872 = vector.extract_strided_slice %801 {offsets = [0, 24], sizes = [8, 8], strides = [1, 1]} : vector<8x32xf32> to vector<8x8xf32>
    %873 = vector.extract_strided_slice %807 {offsets = [0, 24], sizes = [8, 8], strides = [1, 1]} : vector<8x32xf32> to vector<8x8xf32>
    %874 = vector.extract_strided_slice %808 {offsets = [0, 24], sizes = [8, 8], strides = [1, 1]} : vector<8x32xf32> to vector<8x8xf32>
    %cst_349 = arith.constant dense<0.000000e+00> : vector<8x8xf32>
    %875 = tpu.matmul %872, %873, %cst_349 {dimension_numbers = #tpu.dot_dimension_numbers<[1], [1], [0], [0], [0, 0, 1, 0], [], []>} : vector<8x8xf32>, vector<8x8xf32>, vector<8x8xf32> -> vector<8x8xf32>
    %cst_350 = arith.constant 0.353553385 : f32
    %876 = vector.broadcast %cst_350 : f32 to vector<8x8xf32>
    %877 = arith.mulf %875, %876 : vector<8x8xf32>
    %cst_351 = arith.constant -1.000000e+09 : f32
    %878 = vector.shape_cast %3 : vector<1x8xi1> to vector<1x8xi1>
    %879 = vector.broadcast %878 : vector<1x8xi1> to vector<8x8xi1>
    %880 = vector.broadcast %cst_351 : f32 to vector<8x8xf32>
    %881 = arith.select %879, %877, %880 : vector<8x8xi1>, vector<8x8xf32>
    %cst_352 = arith.constant dense<0xFF800000> : vector<8xf32>
    %882 = vector.multi_reduction <maximumf>, %881, %cst_352 [1] : vector<8x8xf32> to vector<8xf32>
    %883 = vector.shape_cast %882 : vector<8xf32> to vector<8x1xf32>
    %884 = vector.broadcast %883 : vector<8x1xf32> to vector<8x8xf32>
    %885 = arith.subf %881, %884 : vector<8x8xf32>
    %886 = math.exp %885 : vector<8x8xf32>
    %cst_353 = arith.constant dense<0.000000e+00> : vector<8xf32>
    %887 = vector.multi_reduction <add>, %886, %cst_353 [1] : vector<8x8xf32> to vector<8xf32>
    %888 = vector.shape_cast %887 : vector<8xf32> to vector<8x1xf32>
    %889 = tpu.reciprocal %888 {approx = true} : vector<8x1xf32> -> vector<8x1xf32>
    %890 = vector.broadcast %889 : vector<8x1xf32> to vector<8x8xf32>
    %891 = arith.mulf %886, %890 : vector<8x8xf32>
    %cst_354 = arith.constant dense<0.000000e+00> : vector<8x8xf32>
    %892 = tpu.matmul %891, %874, %cst_354 {dimension_numbers = #tpu.dot_dimension_numbers<[1], [0], [0], [1], [0, 0, 1, 1], [], []>} : vector<8x8xf32>, vector<8x8xf32>, vector<8x8xf32> -> vector<8x8xf32>
    %893 = tpu.concatenate %829, %850, %871, %892 in 1 : vector<8x8xf32>, vector<8x8xf32>, vector<8x8xf32>, vector<8x8xf32> -> vector<8x32xf32>
    %cst_355 = arith.constant dense<0.000000e+00> : vector<8x32xf32>
    %894 = tpu.matmul %893, %794, %cst_355 {dimension_numbers = #tpu.dot_dimension_numbers<[1], [0], [0], [1], [0, 0, 1, 1], [], []>} : vector<8x32xf32>, vector<32x32xf32>, vector<8x32xf32> -> vector<8x32xf32>
    %895 = vector.broadcast %796 : vector<1x32xf32> to vector<8x32xf32>
    %896 = arith.addf %894, %895 : vector<8x32xf32>
    %c1_356 = arith.constant 1 : index
    %c0_357 = arith.constant 0 : index
    %c0_358 = arith.constant 0 : index
    %897 = vector.load %arg26[%c1_356, %c0_357, %c0_358] : memref<2x2x32xf32, #tpu.memory_space<vmem>>, vector<1x2x32xf32>
    %898 = vector.shape_cast %897 : vector<1x2x32xf32> to vector<2x32xf32>
    %899 = arith.addf %788, %896 : vector<8x32xf32>
    %cst_359 = arith.constant dense<0.000000e+00> : vector<8xf32>
    %900 = vector.multi_reduction <add>, %899, %cst_359 [1] : vector<8x32xf32> to vector<8xf32>
    %901 = vector.shape_cast %900 : vector<8xf32> to vector<8x1xf32>
    %cst_360 = arith.constant 3.200000e+01 : f32
    %902 = vector.broadcast %cst_360 : f32 to vector<8x1xf32>
    %903 = arith.divf %901, %902 : vector<8x1xf32>
    %904 = vector.broadcast %903 : vector<8x1xf32> to vector<8x32xf32>
    %905 = arith.subf %899, %904 : vector<8x32xf32>
    %906 = arith.mulf %905, %905 : vector<8x32xf32>
    %cst_361 = arith.constant dense<0.000000e+00> : vector<8xf32>
    %907 = vector.multi_reduction <add>, %906, %cst_361 [1] : vector<8x32xf32> to vector<8xf32>
    %908 = vector.shape_cast %907 : vector<8xf32> to vector<8x1xf32>
    %cst_362 = arith.constant 3.200000e+01 : f32
    %909 = vector.broadcast %cst_362 : f32 to vector<8x1xf32>
    %910 = arith.divf %908, %909 : vector<8x1xf32>
    %911 = vector.extract_strided_slice %898 {offsets = [0, 0], sizes = [1, 32], strides = [1, 1]} : vector<2x32xf32> to vector<1x32xf32>
    %912 = vector.extract_strided_slice %898 {offsets = [1, 0], sizes = [1, 32], strides = [1, 1]} : vector<2x32xf32> to vector<1x32xf32>
    %913 = vector.broadcast %903 : vector<8x1xf32> to vector<8x32xf32>
    %914 = arith.subf %899, %913 : vector<8x32xf32>
    %cst_363 = arith.constant 9.99999974E-6 : f32
    %915 = vector.broadcast %cst_363 : f32 to vector<8x1xf32>
    %916 = arith.addf %910, %915 : vector<8x1xf32>
    %917 = math.rsqrt %916 : vector<8x1xf32>
    %918 = vector.broadcast %917 : vector<8x1xf32> to vector<8x32xf32>
    %919 = arith.mulf %914, %918 : vector<8x32xf32>
    %920 = vector.broadcast %911 : vector<1x32xf32> to vector<8x32xf32>
    %921 = arith.mulf %919, %920 : vector<8x32xf32>
    %922 = vector.broadcast %912 : vector<1x32xf32> to vector<8x32xf32>
    %923 = arith.addf %921, %922 : vector<8x32xf32>
    %c1_364 = arith.constant 1 : index
    %c0_365 = arith.constant 0 : index
    %c0_366 = arith.constant 0 : index
    %924 = vector.load %arg27[%c1_364, %c0_365, %c0_366] : memref<2x32x64xf32, #tpu.memory_space<vmem>>, vector<1x32x64xf32>
    %925 = vector.shape_cast %924 : vector<1x32x64xf32> to vector<32x64xf32>
    %c1_367 = arith.constant 1 : index
    %c0_368 = arith.constant 0 : index
    %c0_369 = arith.constant 0 : index
    %926 = vector.load %arg28[%c1_367, %c0_368, %c0_369] : memref<2x1x64xf32, #tpu.memory_space<vmem>>, vector<1x1x64xf32>
    %927 = vector.shape_cast %926 : vector<1x1x64xf32> to vector<1x64xf32>
    %c1_370 = arith.constant 1 : index
    %c0_371 = arith.constant 0 : index
    %c0_372 = arith.constant 0 : index
    %928 = vector.load %arg29[%c1_370, %c0_371, %c0_372] : memref<2x64x32xf32, #tpu.memory_space<vmem>>, vector<1x64x32xf32>
    %929 = vector.shape_cast %928 : vector<1x64x32xf32> to vector<64x32xf32>
    %c1_373 = arith.constant 1 : index
    %c0_374 = arith.constant 0 : index
    %c0_375 = arith.constant 0 : index
    %930 = vector.load %arg30[%c1_373, %c0_374, %c0_375] : memref<2x1x32xf32, #tpu.memory_space<vmem>>, vector<1x1x32xf32>
    %931 = vector.shape_cast %930 : vector<1x1x32xf32> to vector<1x32xf32>
    %cst_376 = arith.constant dense<0.000000e+00> : vector<8x64xf32>
    %932 = tpu.matmul %923, %925, %cst_376 {dimension_numbers = #tpu.dot_dimension_numbers<[1], [0], [0], [1], [0, 0, 1, 1], [], []>} : vector<8x32xf32>, vector<32x64xf32>, vector<8x64xf32> -> vector<8x64xf32>
    %933 = vector.broadcast %927 : vector<1x64xf32> to vector<8x64xf32>
    %934 = arith.addf %932, %933 : vector<8x64xf32>
    %cst_377 = arith.constant 0.000000e+00 : f32
    %935 = vector.broadcast %cst_377 : f32 to vector<8x64xf32>
    %936 = arith.maximumf %934, %935 : vector<8x64xf32>
    %cst_378 = arith.constant dense<0.000000e+00> : vector<8x32xf32>
    %937 = tpu.matmul %936, %929, %cst_378 {dimension_numbers = #tpu.dot_dimension_numbers<[1], [0], [0], [1], [0, 0, 1, 1], [], []>} : vector<8x64xf32>, vector<64x32xf32>, vector<8x32xf32> -> vector<8x32xf32>
    %938 = vector.broadcast %931 : vector<1x32xf32> to vector<8x32xf32>
    %939 = arith.addf %937, %938 : vector<8x32xf32>
    %c1_379 = arith.constant 1 : index
    %c0_380 = arith.constant 0 : index
    %c0_381 = arith.constant 0 : index
    %940 = vector.load %arg31[%c1_379, %c0_380, %c0_381] : memref<2x2x32xf32, #tpu.memory_space<vmem>>, vector<1x2x32xf32>
    %941 = vector.shape_cast %940 : vector<1x2x32xf32> to vector<2x32xf32>
    %942 = arith.addf %923, %939 : vector<8x32xf32>
    %cst_382 = arith.constant dense<0.000000e+00> : vector<8xf32>
    %943 = vector.multi_reduction <add>, %942, %cst_382 [1] : vector<8x32xf32> to vector<8xf32>
    %944 = vector.shape_cast %943 : vector<8xf32> to vector<8x1xf32>
    %cst_383 = arith.constant 3.200000e+01 : f32
    %945 = vector.broadcast %cst_383 : f32 to vector<8x1xf32>
    %946 = arith.divf %944, %945 : vector<8x1xf32>
    %947 = vector.broadcast %946 : vector<8x1xf32> to vector<8x32xf32>
    %948 = arith.subf %942, %947 : vector<8x32xf32>
    %949 = arith.mulf %948, %948 : vector<8x32xf32>
    %cst_384 = arith.constant dense<0.000000e+00> : vector<8xf32>
    %950 = vector.multi_reduction <add>, %949, %cst_384 [1] : vector<8x32xf32> to vector<8xf32>
    %951 = vector.shape_cast %950 : vector<8xf32> to vector<8x1xf32>
    %cst_385 = arith.constant 3.200000e+01 : f32
    %952 = vector.broadcast %cst_385 : f32 to vector<8x1xf32>
    %953 = arith.divf %951, %952 : vector<8x1xf32>
    %954 = vector.extract_strided_slice %941 {offsets = [0, 0], sizes = [1, 32], strides = [1, 1]} : vector<2x32xf32> to vector<1x32xf32>
    %955 = vector.extract_strided_slice %941 {offsets = [1, 0], sizes = [1, 32], strides = [1, 1]} : vector<2x32xf32> to vector<1x32xf32>
    %956 = vector.broadcast %946 : vector<8x1xf32> to vector<8x32xf32>
    %957 = arith.subf %942, %956 : vector<8x32xf32>
    %cst_386 = arith.constant 9.99999974E-6 : f32
    %958 = vector.broadcast %cst_386 : f32 to vector<8x1xf32>
    %959 = arith.addf %953, %958 : vector<8x1xf32>
    %960 = math.rsqrt %959 : vector<8x1xf32>
    %961 = vector.broadcast %960 : vector<8x1xf32> to vector<8x32xf32>
    %962 = arith.mulf %957, %961 : vector<8x32xf32>
    %963 = vector.broadcast %954 : vector<1x32xf32> to vector<8x32xf32>
    %964 = arith.mulf %962, %963 : vector<8x32xf32>
    %965 = vector.broadcast %955 : vector<1x32xf32> to vector<8x32xf32>
    %966 = arith.addf %964, %965 : vector<8x32xf32>
    %c0_387 = arith.constant 0 : index
    %c0_388 = arith.constant 0 : index
    %967 = vector.load %arg32[%c0_387, %c0_388] : memref<32x128xf32, #tpu.memory_space<vmem>>, vector<32x128xf32>
    %cst_389 = arith.constant dense<0.000000e+00> : vector<8x128xf32>
    %968 = tpu.matmul %966, %967, %cst_389 {dimension_numbers = #tpu.dot_dimension_numbers<[1], [0], [0], [1], [0, 0, 1, 1], [], []>} : vector<8x32xf32>, vector<32x128xf32>, vector<8x128xf32> -> vector<8x128xf32>
    %c0_390 = arith.constant 0 : index
    %c0_391 = arith.constant 0 : index
    %969 = vector.load %arg33[%c0_390, %c0_391] : memref<1x128xf32, #tpu.memory_space<vmem>>, vector<1x128xf32>
    %970 = vector.broadcast %969 : vector<1x128xf32> to vector<8x128xf32>
    %971 = arith.addf %968, %970 : vector<8x128xf32>
    %c0_392 = arith.constant 0 : index
    %c0_393 = arith.constant 0 : index
    %c0_394 = arith.constant 0 : index
    %972 = vector.load %arg34[%c0_392, %c0_393, %c0_394] : memref<1x8x128xf32, #tpu.memory_space<vmem>>, vector<1x8x128xf32>
    %973 = vector.shape_cast %972 : vector<1x8x128xf32> to vector<8x128xf32>
    %974 = vector.shape_cast %971 : vector<8x128xf32> to vector<1x8x128xf32>
    tpu.vector_store %arg34[%c0_392, %c0_393, %c0_394], %974 {strides = array<i32>} : memref<1x8x128xf32, #tpu.memory_space<vmem>>, vector<1x8x128xf32>,
    return
  }
  func.func @transform_0(%arg0: i32) -> (i32, i32, i32) {
    %c0_i32 = arith.constant 0 : i32
    %c0_i32_0 = arith.constant 0 : i32
    %c0_i32_1 = arith.constant 0 : i32
    return %arg0, %c0_i32, %c0_i32_0 : i32, i32, i32
  }
  func.func @transform_1(%arg0: i32) -> (i32, i32, i32) {
    %c0_i32 = arith.constant 0 : i32
    %c0_i32_0 = arith.constant 0 : i32
    %c0_i32_1 = arith.constant 0 : i32
    return %arg0, %c0_i32, %c0_i32_0 : i32, i32, i32
  }
  func.func @transform_2(%arg0: i32) -> (i32, i32) {
    %c0_i32 = arith.constant 0 : i32
    %c0_i32_0 = arith.constant 0 : i32
    %c0_i32_1 = arith.constant 0 : i32
    return %c0_i32, %c0_i32_0 : i32, i32
  }
  func.func @transform_3(%arg0: i32) -> (i32, i32) {
    %c0_i32 = arith.constant 0 : i32
    %c0_i32_0 = arith.constant 0 : i32
    %c0_i32_1 = arith.constant 0 : i32
    return %c0_i32, %c0_i32_0 : i32, i32
  }
  func.func @transform_4(%arg0: i32) -> (i32, i32, i32) {
    %c0_i32 = arith.constant 0 : i32
    %c0_i32_0 = arith.constant 0 : i32
    %c0_i32_1 = arith.constant 0 : i32
    return %arg0, %c0_i32, %c0_i32_0 : i32, i32, i32
  }
  func.func @transform_5(%arg0: i32) -> (i32, i32, i32) {
    %c0_i32 = arith.constant 0 : i32
    %c0_i32_0 = arith.constant 0 : i32
    %c0_i32_1 = arith.constant 0 : i32
    return %arg0, %c0_i32, %c0_i32_0 : i32, i32, i32
  }
  func.func @transform_6(%arg0: i32) -> (i32, i32, i32) {
    %c0_i32 = arith.constant 0 : i32
    %c0_i32_0 = arith.constant 0 : i32
    %c0_i32_1 = arith.constant 0 : i32
    %c0_i32_2 = arith.constant 0 : i32
    return %c0_i32, %c0_i32_0, %c0_i32_1 : i32, i32, i32
  }
  func.func @transform_7(%arg0: i32) -> (i32, i32, i32) {
    %c0_i32 = arith.constant 0 : i32
    %c0_i32_0 = arith.constant 0 : i32
    %c0_i32_1 = arith.constant 0 : i32
    %c0_i32_2 = arith.constant 0 : i32
    return %c0_i32, %c0_i32_0, %c0_i32_1 : i32, i32, i32
  }
  func.func @transform_8(%arg0: i32) -> (i32, i32, i32) {
    %c0_i32 = arith.constant 0 : i32
    %c0_i32_0 = arith.constant 0 : i32
    %c0_i32_1 = arith.constant 0 : i32
    %c0_i32_2 = arith.constant 0 : i32
    return %c0_i32, %c0_i32_0, %c0_i32_1 : i32, i32, i32
  }
  func.func @transform_9(%arg0: i32) -> (i32, i32, i32) {
    %c0_i32 = arith.constant 0 : i32
    %c0_i32_0 = arith.constant 0 : i32
    %c0_i32_1 = arith.constant 0 : i32
    %c0_i32_2 = arith.constant 0 : i32
    return %c0_i32, %c0_i32_0, %c0_i32_1 : i32, i32, i32
  }
  func.func @transform_10(%arg0: i32) -> (i32, i32, i32) {
    %c0_i32 = arith.constant 0 : i32
    %c0_i32_0 = arith.constant 0 : i32
    %c0_i32_1 = arith.constant 0 : i32
    %c0_i32_2 = arith.constant 0 : i32
    return %c0_i32, %c0_i32_0, %c0_i32_1 : i32, i32, i32
  }
  func.func @transform_11(%arg0: i32) -> (i32, i32, i32) {
    %c0_i32 = arith.constant 0 : i32
    %c0_i32_0 = arith.constant 0 : i32
    %c0_i32_1 = arith.constant 0 : i32
    %c0_i32_2 = arith.constant 0 : i32
    return %c0_i32, %c0_i32_0, %c0_i32_1 : i32, i32, i32
  }
  func.func @transform_12(%arg0: i32) -> (i32, i32, i32) {
    %c0_i32 = arith.constant 0 : i32
    %c0_i32_0 = arith.constant 0 : i32
    %c0_i32_1 = arith.constant 0 : i32
    %c0_i32_2 = arith.constant 0 : i32
    return %c0_i32, %c0_i32_0, %c0_i32_1 : i32, i32, i32
  }
  func.func @transform_13(%arg0: i32) -> (i32, i32, i32) {
    %c0_i32 = arith.constant 0 : i32
    %c0_i32_0 = arith.constant 0 : i32
    %c0_i32_1 = arith.constant 0 : i32
    %c0_i32_2 = arith.constant 0 : i32
    return %c0_i32, %c0_i32_0, %c0_i32_1 : i32, i32, i32
  }
  func.func @transform_14(%arg0: i32) -> (i32, i32, i32) {
    %c0_i32 = arith.constant 0 : i32
    %c0_i32_0 = arith.constant 0 : i32
    %c0_i32_1 = arith.constant 0 : i32
    %c0_i32_2 = arith.constant 0 : i32
    return %c0_i32, %c0_i32_0, %c0_i32_1 : i32, i32, i32
  }
  func.func @transform_15(%arg0: i32) -> (i32, i32, i32) {
    %c0_i32 = arith.constant 0 : i32
    %c0_i32_0 = arith.constant 0 : i32
    %c0_i32_1 = arith.constant 0 : i32
    %c0_i32_2 = arith.constant 0 : i32
    return %c0_i32, %c0_i32_0, %c0_i32_1 : i32, i32, i32
  }
  func.func @transform_16(%arg0: i32) -> (i32, i32, i32) {
    %c0_i32 = arith.constant 0 : i32
    %c0_i32_0 = arith.constant 0 : i32
    %c0_i32_1 = arith.constant 0 : i32
    %c0_i32_2 = arith.constant 0 : i32
    return %c0_i32, %c0_i32_0, %c0_i32_1 : i32, i32, i32
  }
  func.func @transform_17(%arg0: i32) -> (i32, i32, i32) {
    %c0_i32 = arith.constant 0 : i32
    %c0_i32_0 = arith.constant 0 : i32
    %c0_i32_1 = arith.constant 0 : i32
    %c0_i32_2 = arith.constant 0 : i32
    return %c0_i32, %c0_i32_0, %c0_i32_1 : i32, i32, i32
  }
  func.func @transform_18(%arg0: i32) -> (i32, i32, i32) {
    %c0_i32 = arith.constant 0 : i32
    %c0_i32_0 = arith.constant 0 : i32
    %c0_i32_1 = arith.constant 0 : i32
    %c0_i32_2 = arith.constant 0 : i32
    return %c0_i32, %c0_i32_0, %c0_i32_1 : i32, i32, i32
  }
  func.func @transform_19(%arg0: i32) -> (i32, i32, i32) {
    %c0_i32 = arith.constant 0 : i32
    %c0_i32_0 = arith.constant 0 : i32
    %c0_i32_1 = arith.constant 0 : i32
    %c0_i32_2 = arith.constant 0 : i32
    return %c0_i32, %c0_i32_0, %c0_i32_1 : i32, i32, i32
  }
  func.func @transform_20(%arg0: i32) -> (i32, i32, i32) {
    %c0_i32 = arith.constant 0 : i32
    %c0_i32_0 = arith.constant 0 : i32
    %c0_i32_1 = arith.constant 0 : i32
    %c0_i32_2 = arith.constant 0 : i32
    return %c0_i32, %c0_i32_0, %c0_i32_1 : i32, i32, i32
  }
  func.func @transform_21(%arg0: i32) -> (i32, i32, i32) {
    %c0_i32 = arith.constant 0 : i32
    %c0_i32_0 = arith.constant 0 : i32
    %c0_i32_1 = arith.constant 0 : i32
    %c0_i32_2 = arith.constant 0 : i32
    return %c0_i32, %c0_i32_0, %c0_i32_1 : i32, i32, i32
  }
  func.func @transform_22(%arg0: i32) -> (i32, i32, i32) {
    %c0_i32 = arith.constant 0 : i32
    %c0_i32_0 = arith.constant 0 : i32
    %c0_i32_1 = arith.constant 0 : i32
    %c0_i32_2 = arith.constant 0 : i32
    return %c0_i32, %c0_i32_0, %c0_i32_1 : i32, i32, i32
  }
  func.func @transform_23(%arg0: i32) -> (i32, i32, i32) {
    %c0_i32 = arith.constant 0 : i32
    %c0_i32_0 = arith.constant 0 : i32
    %c0_i32_1 = arith.constant 0 : i32
    %c0_i32_2 = arith.constant 0 : i32
    return %c0_i32, %c0_i32_0, %c0_i32_1 : i32, i32, i32
  }
  func.func @transform_24(%arg0: i32) -> (i32, i32, i32) {
    %c0_i32 = arith.constant 0 : i32
    %c0_i32_0 = arith.constant 0 : i32
    %c0_i32_1 = arith.constant 0 : i32
    %c0_i32_2 = arith.constant 0 : i32
    return %c0_i32, %c0_i32_0, %c0_i32_1 : i32, i32, i32
  }
  func.func @transform_25(%arg0: i32) -> (i32, i32, i32) {
    %c0_i32 = arith.constant 0 : i32
    %c0_i32_0 = arith.constant 0 : i32
    %c0_i32_1 = arith.constant 0 : i32
    %c0_i32_2 = arith.constant 0 : i32
    return %c0_i32, %c0_i32_0, %c0_i32_1 : i32, i32, i32
  }
  func.func @transform_26(%arg0: i32) -> (i32, i32, i32) {
    %c0_i32 = arith.constant 0 : i32
    %c0_i32_0 = arith.constant 0 : i32
    %c0_i32_1 = arith.constant 0 : i32
    %c0_i32_2 = arith.constant 0 : i32
    return %c0_i32, %c0_i32_0, %c0_i32_1 : i32, i32, i32
  }
  func.func @transform_27(%arg0: i32) -> (i32, i32, i32) {
    %c0_i32 = arith.constant 0 : i32
    %c0_i32_0 = arith.constant 0 : i32
    %c0_i32_1 = arith.constant 0 : i32
    %c0_i32_2 = arith.constant 0 : i32
    return %c0_i32, %c0_i32_0, %c0_i32_1 : i32, i32, i32
  }
  func.func @transform_28(%arg0: i32) -> (i32, i32, i32) {
    %c0_i32 = arith.constant 0 : i32
    %c0_i32_0 = arith.constant 0 : i32
    %c0_i32_1 = arith.constant 0 : i32
    %c0_i32_2 = arith.constant 0 : i32
    return %c0_i32, %c0_i32_0, %c0_i32_1 : i32, i32, i32
  }
  func.func @transform_29(%arg0: i32) -> (i32, i32, i32) {
    %c0_i32 = arith.constant 0 : i32
    %c0_i32_0 = arith.constant 0 : i32
    %c0_i32_1 = arith.constant 0 : i32
    %c0_i32_2 = arith.constant 0 : i32
    return %c0_i32, %c0_i32_0, %c0_i32_1 : i32, i32, i32
  }
  func.func @transform_30(%arg0: i32) -> (i32, i32, i32) {
    %c0_i32 = arith.constant 0 : i32
    %c0_i32_0 = arith.constant 0 : i32
    %c0_i32_1 = arith.constant 0 : i32
    %c0_i32_2 = arith.constant 0 : i32
    return %c0_i32, %c0_i32_0, %c0_i32_1 : i32, i32, i32
  }
  func.func @transform_31(%arg0: i32) -> (i32, i32) {
    %c0_i32 = arith.constant 0 : i32
    %c0_i32_0 = arith.constant 0 : i32
    %c0_i32_1 = arith.constant 0 : i32
    return %c0_i32, %c0_i32_0 : i32, i32
  }
  func.func @transform_32(%arg0: i32) -> (i32, i32) {
    %c0_i32 = arith.constant 0 : i32
    %c0_i32_0 = arith.constant 0 : i32
    %c0_i32_1 = arith.constant 0 : i32
    return %c0_i32, %c0_i32_0 : i32, i32
  }
  func.func @transform_33(%arg0: i32) -> (i32, i32, i32) {
    %c0_i32 = arith.constant 0 : i32
    %c0_i32_0 = arith.constant 0 : i32
    %c0_i32_1 = arith.constant 0 : i32
    return %arg0, %c0_i32, %c0_i32_0 : i32, i32, i32
  }
}

</mosaic_0001>

<llo_original>
// kernel: transformer_forward.1
$region0: #{transformer_forward.1}
  #allocation0 [shape = 'u32[]', space=smem, size = 0x4, offset = 0x4, fixed_abs, tag = 'smem constant byte address 0x4 - core index']
  #allocation1 [shape = 'u32[72,128]{1,0:T(1,128)}', space=vmem, size = 0x9000, scoped, tag = 'internal scratch']
  %s0 = inlined_call_operand.smem [shape: u32[34], index: -1, kind: input, shape index: {}]
  %s1 = sld [smem:[%s0]]
  %s2 = scalar_lea.smem %s0, 1
  %s3 = sld [smem:[%s2]]
  %s4 = scalar_lea.smem %s0, 2
  %s5 = sld [smem:[%s4]]
  %s6 = scalar_lea.smem %s0, 3
  %s7 = sld [smem:[%s6]]
  %s8 = scalar_lea.smem %s0, 4
  %s9 = sld [smem:[%s8]]
  %s10 = scalar_lea.smem %s0, 5
  %s11 = sld [smem:[%s10]]
  %s12 = scalar_lea.smem %s0, 6
  %s13 = sld [smem:[%s12]]
  %s14 = scalar_lea.smem %s0, 7
  %s15 = sld [smem:[%s14]]
  %s16 = scalar_lea.smem %s0, 8
  %s17 = sld [smem:[%s16]]
  %s18 = scalar_lea.smem %s0, 9
  %s19 = sld [smem:[%s18]]
  %s20 = scalar_lea.smem %s0, 10
  %s21 = sld [smem:[%s20]]
  %s22 = scalar_lea.smem %s0, 11
  %s23 = sld [smem:[%s22]]
  %s24 = scalar_lea.smem %s0, 12
  %s25 = sld [smem:[%s24]]
  %s26 = scalar_lea.smem %s0, 13
  %s27 = sld [smem:[%s26]]
  %s28 = scalar_lea.smem %s0, 14
  %s29 = sld [smem:[%s28]]
  %s30 = scalar_lea.smem %s0, 15
  %s31 = sld [smem:[%s30]]
  %s32 = scalar_lea.smem %s0, 16
  %s33 = sld [smem:[%s32]]
  %s34 = scalar_lea.smem %s0, 17
  %s35 = sld [smem:[%s34]]
  %s36 = scalar_lea.smem %s0, 18
  %s37 = sld [smem:[%s36]]
  %s38 = scalar_lea.smem %s0, 19
  %s39 = sld [smem:[%s38]]
  %s40 = scalar_lea.smem %s0, 20
  %s41 = sld [smem:[%s40]]
  %s42 = scalar_lea.smem %s0, 21
  %s43 = sld [smem:[%s42]]
  %s44 = scalar_lea.smem %s0, 22
  %s45 = sld [smem:[%s44]]
  %s46 = scalar_lea.smem %s0, 23
  %s47 = sld [smem:[%s46]]
  %s48 = scalar_lea.smem %s0, 24
  %s49 = sld [smem:[%s48]]
  %s50 = scalar_lea.smem %s0, 25
  %s51 = sld [smem:[%s50]]
  %s52 = scalar_lea.smem %s0, 26
  %s53 = sld [smem:[%s52]]
  %s54 = scalar_lea.smem %s0, 27
  %s55 = sld [smem:[%s54]]
  %s56 = scalar_lea.smem %s0, 28
  %s57 = sld [smem:[%s56]]
  %s58 = scalar_lea.smem %s0, 29
  %s59 = sld [smem:[%s58]]
  %s60 = scalar_lea.smem %s0, 30
  %s61 = sld [smem:[%s60]]
  %s62 = scalar_lea.smem %s0, 31
  %s63 = sld [smem:[%s62]]
  %s64 = scalar_lea.smem %s0, 32
  %s65 = sld [smem:[%s64]]
  %s66 = scalar_lea.smem %s0, 33
  %s67 = sld [smem:[%s66]]
  %s68 = sld [smem:[#allocation0]]
  $region165: #{transformer_forward.1} parent=0
    _
  %s70 = ssub.s32 1, %s68
  %s71 = scalar_select 0, %s70, %s68
  $region1: #{transformer_forward.1} parent=0
    #allocation2 [shape = 'u8[8192]{0}', space=vmem, size = 0x2000, scoped, tag = 'output window, operand 0']
    #allocation3 [shape = 's32[2]{0}', space=sflag, size = 0x8, scoped, tag = 'scoped memory for transformer_forward.1']
    %72 = vsyncpa [#allocation3], 0
    %s73 = scalar_lea.sflag [#allocation3], 1
    %74 = vsyncpa %s73, 0
    loop: start=0, step=1, limit=4
    $region2: #{transformer_forward.1} parent=1 // loop_pre_header
      _
    $region3: #{transformer_forward.1} parent=1 // loop_header
      %s76 = sphi 0, %s80
      %p77 = scmp.ge.s32.totalorder %s76, 4
      %s86 = sphi 0, %s88
      %s89 = sphi 0, %s86
      %s90 = sphi 0, %s89
      %s106 = sphi 0, %s90
      %s112 = sphi 0, %s114
      %s115 = sphi 0, %s112
      %s116 = sphi 0, %s115
      %s132 = sphi 0, %s116
      %s136 = sphi 0, %s136
      %s138 = sphi 0, %s136
      %s139 = sphi 0, %s138
      %s153 = sphi 0, %s139
      %s157 = sphi 0, %s157
      %s159 = sphi 0, %s157
      %s160 = sphi 0, %s159
      %s174 = sphi 0, %s160
      %s180 = sphi 0, %s182
      %s183 = sphi 0, %s180
      %s184 = sphi 0, %s183
      %s200 = sphi 0, %s184
      %s206 = sphi 0, %s208
      %s209 = sphi 0, %s206
      %s210 = sphi 0, %s209
      %s226 = sphi 0, %s210
      %s230 = sphi 0, %s230
      %s232 = sphi 0, %s230
      %s233 = sphi 0, %s232
      %s247 = sphi 0, %s233
      %s251 = sphi 0, %s251
      %s253 = sphi 0, %s251
      %s254 = sphi 0, %s253
      %s268 = sphi 0, %s254
      %s272 = sphi 0, %s272
      %s274 = sphi 0, %s272
      %s275 = sphi 0, %s274
      %s289 = sphi 0, %s275
      %s293 = sphi 0, %s293
      %s295 = sphi 0, %s293
      %s296 = sphi 0, %s295
      %s310 = sphi 0, %s296
      %s314 = sphi 0, %s314
      %s316 = sphi 0, %s314
      %s317 = sphi 0, %s316
      %s331 = sphi 0, %s317
      %s335 = sphi 0, %s335
      %s337 = sphi 0, %s335
      %s338 = sphi 0, %s337
      %s352 = sphi 0, %s338
      %s356 = sphi 0, %s356
      %s358 = sphi 0, %s356
      %s359 = sphi 0, %s358
      %s373 = sphi 0, %s359
      %s377 = sphi 0, %s377
      %s379 = sphi 0, %s377
      %s380 = sphi 0, %s379
      %s394 = sphi 0, %s380
      %s398 = sphi 0, %s398
      %s400 = sphi 0, %s398
      %s401 = sphi 0, %s400
      %s415 = sphi 0, %s401
      %s419 = sphi 0, %s419
      %s421 = sphi 0, %s419
      %s422 = sphi 0, %s421
      %s436 = sphi 0, %s422
      %s440 = sphi 0, %s440
      %s442 = sphi 0, %s440
      %s443 = sphi 0, %s442
      %s457 = sphi 0, %s443
      %s461 = sphi 0, %s461
      %s463 = sphi 0, %s461
      %s464 = sphi 0, %s463
      %s478 = sphi 0, %s464
      %s482 = sphi 0, %s482
      %s484 = sphi 0, %s482
      %s485 = sphi 0, %s484
      %s499 = sphi 0, %s485
      %s503 = sphi 0, %s503
      %s505 = sphi 0, %s503
      %s506 = sphi 0, %s505
      %s520 = sphi 0, %s506
      %s524 = sphi 0, %s524
      %s526 = sphi 0, %s524
      %s527 = sphi 0, %s526
      %s541 = sphi 0, %s527
      %s545 = sphi 0, %s545
      %s547 = sphi 0, %s545
      %s548 = sphi 0, %s547
      %s562 = sphi 0, %s548
      %s566 = sphi 0, %s566
      %s568 = sphi 0, %s566
      %s569 = sphi 0, %s568
      %s583 = sphi 0, %s569
      %s587 = sphi 0, %s587
      %s589 = sphi 0, %s587
      %s590 = sphi 0, %s589
      %s604 = sphi 0, %s590
      %s608 = sphi 0, %s608
      %s610 = sphi 0, %s608
      %s611 = sphi 0, %s610
      %s625 = sphi 0, %s611
      %s629 = sphi 0, %s629
      %s631 = sphi 0, %s629
      %s632 = sphi 0, %s631
      %s646 = sphi 0, %s632
      %s650 = sphi 0, %s650
      %s652 = sphi 0, %s650
      %s653 = sphi 0, %s652
      %s667 = sphi 0, %s653
      %s671 = sphi 0, %s671
      %s673 = sphi 0, %s671
      %s674 = sphi 0, %s673
      %s688 = sphi 0, %s674
      %s692 = sphi 0, %s692
      %s694 = sphi 0, %s692
      %s695 = sphi 0, %s694
      %s709 = sphi 0, %s695
      %s713 = sphi 0, %s713
      %s715 = sphi 0, %s713
      %s716 = sphi 0, %s715
      %s730 = sphi 0, %s716
      %s734 = sphi 0, %s734
      %s736 = sphi 0, %s734
      %s737 = sphi 0, %s736
      %s751 = sphi 0, %s737
      %s755 = sphi 0, %s755
      %s757 = sphi 0, %s755
      %s758 = sphi 0, %s757
      %s772 = sphi 0, %s758
      %s776 = sphi 0, %s776
      %s778 = sphi 0, %s776
      %s779 = sphi 0, %s778
      %s793 = sphi 0, %s779
      %s799 = sphi 0, %s801
      %s802 = sphi 0, %s799
      %s803 = sphi 0, %s802
      %s819 = sphi 0, %s803
    $region4: #{transformer_forward.1} parent=1 // loop_header_branch
      %79 = sbr.rel (%p77) target = $region8
    $region5: #{transformer_forward.1} parent=1 // loop_body
      %s81 = ssub.s32 %s76, 1
      %s82 = ssub.s32 %s76, 2
      %s83 = sadd.s32 %s76, 1
      %s84 = ssub.s32 %s76, %s83
      %p85 = scmp.eq.s32.totalorder %s84, 0
      %s87 = sadd.s32 %s86, 1
      %s88 = scalar_select %p85, %s86, %s87
      %p91 = pneg %p85
      %p92 = scmp.eq.s32.totalorder %s76, 1
      %p93 = por %p91, %p92
      %p94 = scmp.ne.s32.totalorder %s86, %s89
      %p95 = scmp.eq.s32.totalorder %s76, 0
      %p96 = por %p94, %p95
      %p97 = scmp.ne.s32.totalorder %s86, %s89
      %p98 = scmp.eq.s32.totalorder %s81, 1
      %p99 = por %p97, %p98
      %p100 = scmp.ne.s32.totalorder %s89, %s90
      %p101 = scmp.eq.s32.totalorder %s81, 0
      %p102 = por %p100, %p101
      %p103 = scmp.ne.s32.totalorder %s89, %s90
      %p104 = scmp.eq.s32.totalorder %s82, 1
      %p105 = por %p103, %p104
      %p107 = scmp.ne.s32.totalorder %s90, %s106
      %p108 = scmp.eq.s32.totalorder %s82, 0
      %p109 = por %p107, %p108
      %s110 = ssub.s32 %s76, %s83
      %p111 = scmp.eq.s32.totalorder %s110, 0
      %s113 = sadd.s32 %s112, 1
      %s114 = scalar_select %p111, %s112, %s113
      %p117 = pneg %p111
      %p118 = scmp.eq.s32.totalorder %s76, 1
      %p119 = por %p117, %p118
      %p120 = scmp.ne.s32.totalorder %s112, %s115
      %p121 = scmp.eq.s32.totalorder %s76, 0
      %p122 = por %p120, %p121
      %p123 = scmp.ne.s32.totalorder %s112, %s115
      %p124 = scmp.eq.s32.totalorder %s81, 1
      %p125 = por %p123, %p124
      %p126 = scmp.ne.s32.totalorder %s115, %s116
      %p127 = scmp.eq.s32.totalorder %s81, 0
      %p128 = por %p126, %p127
      %p129 = scmp.ne.s32.totalorder %s115, %s116
      %p130 = scmp.eq.s32.totalorder %s82, 1
      %p131 = por %p129, %p130
      %p133 = scmp.ne.s32.totalorder %s116, %s132
      %p134 = scmp.eq.s32.totalorder %s82, 0
      %p135 = por %p133, %p134
      %s137 = sadd.s32 %s136, 1
      %p140 = scmp.eq.s32.totalorder %s76, 1
      %p141 = scmp.ne.s32.totalorder %s136, %s138
      %p142 = scmp.eq.s32.totalorder %s76, 0
      %p143 = por %p141, %p142
      %p144 = scmp.ne.s32.totalorder %s136, %s138
      %p145 = scmp.eq.s32.totalorder %s81, 1
      %p146 = por %p144, %p145
      %p147 = scmp.ne.s32.totalorder %s138, %s139
      %p148 = scmp.eq.s32.totalorder %s81, 0
      %p149 = por %p147, %p148
      %p150 = scmp.ne.s32.totalorder %s138, %s139
      %p151 = scmp.eq.s32.totalorder %s82, 1
      %p152 = por %p150, %p151
      %p154 = scmp.ne.s32.totalorder %s139, %s153
      %p155 = scmp.eq.s32.totalorder %s82, 0
      %p156 = por %p154, %p155
      %s158 = sadd.s32 %s157, 1
      %p161 = scmp.eq.s32.totalorder %s76, 1
      %p162 = scmp.ne.s32.totalorder %s157, %s159
      %p163 = scmp.eq.s32.totalorder %s76, 0
      %p164 = por %p162, %p163
      %p165 = scmp.ne.s32.totalorder %s157, %s159
      %p166 = scmp.eq.s32.totalorder %s81, 1
      %p167 = por %p165, %p166
      %p168 = scmp.ne.s32.totalorder %s159, %s160
      %p169 = scmp.eq.s32.totalorder %s81, 0
      %p170 = por %p168, %p169
      %p171 = scmp.ne.s32.totalorder %s159, %s160
      %p172 = scmp.eq.s32.totalorder %s82, 1
      %p173 = por %p171, %p172
      %p175 = scmp.ne.s32.totalorder %s160, %s174
      %p176 = scmp.eq.s32.totalorder %s82, 0
      %p177 = por %p175, %p176
      %s178 = ssub.s32 %s76, %s83
      %p179 = scmp.eq.s32.totalorder %s178, 0
      %s181 = sadd.s32 %s180, 1
      %s182 = scalar_select %p179, %s180, %s181
      %p185 = pneg %p179
      %p186 = scmp.eq.s32.totalorder %s76, 1
      %p187 = por %p185, %p186
      %p188 = scmp.ne.s32.totalorder %s180, %s183
      %p189 = scmp.eq.s32.totalorder %s76, 0
      %p190 = por %p188, %p189
      %p191 = scmp.ne.s32.totalorder %s180, %s183
      %p192 = scmp.eq.s32.totalorder %s81, 1
      %p193 = por %p191, %p192
      %p194 = scmp.ne.s32.totalorder %s183, %s184
      %p195 = scmp.eq.s32.totalorder %s81, 0
      %p196 = por %p194, %p195
      %p197 = scmp.ne.s32.totalorder %s183, %s184
      %p198 = scmp.eq.s32.totalorder %s82, 1
      %p199 = por %p197, %p198
      %p201 = scmp.ne.s32.totalorder %s184, %s200
      %p202 = scmp.eq.s32.totalorder %s82, 0
      %p203 = por %p201, %p202
      %s204 = ssub.s32 %s76, %s83
      %p205 = scmp.eq.s32.totalorder %s204, 0
      %s207 = sadd.s32 %s206, 1
      %s208 = scalar_select %p205, %s206, %s207
      %p211 = pneg %p205
      %p212 = scmp.eq.s32.totalorder %s76, 1
      %p213 = por %p211, %p212
      %p214 = scmp.ne.s32.totalorder %s206, %s209
      %p215 = scmp.eq.s32.totalorder %s76, 0
      %p216 = por %p214, %p215
      %p217 = scmp.ne.s32.totalorder %s206, %s209
      %p218 = scmp.eq.s32.totalorder %s81, 1
      %p219 = por %p217, %p218
      %p220 = scmp.ne.s32.totalorder %s209, %s210
      %p221 = scmp.eq.s32.totalorder %s81, 0
      %p222 = por %p220, %p221
      %p223 = scmp.ne.s32.totalorder %s209, %s210
      %p224 = scmp.eq.s32.totalorder %s82, 1
      %p225 = por %p223, %p224
      %p227 = scmp.ne.s32.totalorder %s210, %s226
      %p228 = scmp.eq.s32.totalorder %s82, 0
      %p229 = por %p227, %p228
      %s231 = sadd.s32 %s230, 1
      %p234 = scmp.eq.s32.totalorder %s76, 1
      %p235 = scmp.ne.s32.totalorder %s230, %s232
      %p236 = scmp.eq.s32.totalorder %s76, 0
      %p237 = por %p235, %p236
      %p238 = scmp.ne.s32.totalorder %s230, %s232
      %p239 = scmp.eq.s32.totalorder %s81, 1
      %p240 = por %p238, %p239
      %p241 = scmp.ne.s32.totalorder %s232, %s233
      %p242 = scmp.eq.s32.totalorder %s81, 0
      %p243 = por %p241, %p242
      %p244 = scmp.ne.s32.totalorder %s232, %s233
      %p245 = scmp.eq.s32.totalorder %s82, 1
      %p246 = por %p244, %p245
      %p248 = scmp.ne.s32.totalorder %s233, %s247
      %p249 = scmp.eq.s32.totalorder %s82, 0
      %p250 = por %p248, %p249
      %s252 = sadd.s32 %s251, 1
      %p255 = scmp.eq.s32.totalorder %s76, 1
      %p256 = scmp.ne.s32.totalorder %s251, %s253
      %p257 = scmp.eq.s32.totalorder %s76, 0
      %p258 = por %p256, %p257
      %p259 = scmp.ne.s32.totalorder %s251, %s253
      %p260 = scmp.eq.s32.totalorder %s81, 1
      %p261 = por %p259, %p260
      %p262 = scmp.ne.s32.totalorder %s253, %s254
      %p263 = scmp.eq.s32.totalorder %s81, 0
      %p264 = por %p262, %p263
      %p265 = scmp.ne.s32.totalorder %s253, %s254
      %p266 = scmp.eq.s32.totalorder %s82, 1
      %p267 = por %p265, %p266
      %p269 = scmp.ne.s32.totalorder %s254, %s268
      %p270 = scmp.eq.s32.totalorder %s82, 0
      %p271 = por %p269, %p270
      %s273 = sadd.s32 %s272, 1
      %p276 = scmp.eq.s32.totalorder %s76, 1
      %p277 = scmp.ne.s32.totalorder %s272, %s274
      %p278 = scmp.eq.s32.totalorder %s76, 0
      %p279 = por %p277, %p278
      %p280 = scmp.ne.s32.totalorder %s272, %s274
      %p281 = scmp.eq.s32.totalorder %s81, 1
      %p282 = por %p280, %p281
      %p283 = scmp.ne.s32.totalorder %s274, %s275
      %p284 = scmp.eq.s32.totalorder %s81, 0
      %p285 = por %p283, %p284
      %p286 = scmp.ne.s32.totalorder %s274, %s275
      %p287 = scmp.eq.s32.totalorder %s82, 1
      %p288 = por %p286, %p287
      %p290 = scmp.ne.s32.totalorder %s275, %s289
      %p291 = scmp.eq.s32.totalorder %s82, 0
      %p292 = por %p290, %p291
      %s294 = sadd.s32 %s293, 1
      %p297 = scmp.eq.s32.totalorder %s76, 1
      %p298 = scmp.ne.s32.totalorder %s293, %s295
      %p299 = scmp.eq.s32.totalorder %s76, 0
      %p300 = por %p298, %p299
      %p301 = scmp.ne.s32.totalorder %s293, %s295
      %p302 = scmp.eq.s32.totalorder %s81, 1
      %p303 = por %p301, %p302
      %p304 = scmp.ne.s32.totalorder %s295, %s296
      %p305 = scmp.eq.s32.totalorder %s81, 0
      %p306 = por %p304, %p305
      %p307 = scmp.ne.s32.totalorder %s295, %s296
      %p308 = scmp.eq.s32.totalorder %s82, 1
      %p309 = por %p307, %p308
      %p311 = scmp.ne.s32.totalorder %s296, %s310
      %p312 = scmp.eq.s32.totalorder %s82, 0
      %p313 = por %p311, %p312
      %s315 = sadd.s32 %s314, 1
      %p318 = scmp.eq.s32.totalorder %s76, 1
      %p319 = scmp.ne.s32.totalorder %s314, %s316
      %p320 = scmp.eq.s32.totalorder %s76, 0
      %p321 = por %p319, %p320
      %p322 = scmp.ne.s32.totalorder %s314, %s316
      %p323 = scmp.eq.s32.totalorder %s81, 1
      %p324 = por %p322, %p323
      %p325 = scmp.ne.s32.totalorder %s316, %s317
      %p326 = scmp.eq.s32.totalorder %s81, 0
      %p327 = por %p325, %p326
      %p328 = scmp.ne.s32.totalorder %s316, %s317
      %p329 = scmp.eq.s32.totalorder %s82, 1
      %p330 = por %p328, %p329
      %p332 = scmp.ne.s32.totalorder %s317, %s331
      %p333 = scmp.eq.s32.totalorder %s82, 0
      %p334 = por %p332, %p333
      %s336 = sadd.s32 %s335, 1
      %p339 = scmp.eq.s32.totalorder %s76, 1
      %p340 = scmp.ne.s32.totalorder %s335, %s337
      %p341 = scmp.eq.s32.totalorder %s76, 0
      %p342 = por %p340, %p341
      %p343 = scmp.ne.s32.totalorder %s335, %s337
      %p344 = scmp.eq.s32.totalorder %s81, 1
      %p345 = por %p343, %p344
      %p346 = scmp.ne.s32.totalorder %s337, %s338
      %p347 = scmp.eq.s32.totalorder %s81, 0
      %p348 = por %p346, %p347
      %p349 = scmp.ne.s32.totalorder %s337, %s338
      %p350 = scmp.eq.s32.totalorder %s82, 1
      %p351 = por %p349, %p350
      %p353 = scmp.ne.s32.totalorder %s338, %s352
      %p354 = scmp.eq.s32.totalorder %s82, 0
      %p355 = por %p353, %p354
      %s357 = sadd.s32 %s356, 1
      %p360 = scmp.eq.s32.totalorder %s76, 1
      %p361 = scmp.ne.s32.totalorder %s356, %s358
      %p362 = scmp.eq.s32.totalorder %s76, 0
      %p363 = por %p361, %p362
      %p364 = scmp.ne.s32.totalorder %s356, %s358
      %p365 = scmp.eq.s32.totalorder %s81, 1
      %p366 = por %p364, %p365
      %p367 = scmp.ne.s32.totalorder %s358, %s359
      %p368 = scmp.eq.s32.totalorder %s81, 0
      %p369 = por %p367, %p368
      %p370 = scmp.ne.s32.totalorder %s358, %s359
      %p371 = scmp.eq.s32.totalorder %s82, 1
      %p372 = por %p370, %p371
      %p374 = scmp.ne.s32.totalorder %s359, %s373
      %p375 = scmp.eq.s32.totalorder %s82, 0
      %p376 = por %p374, %p375
      %s378 = sadd.s32 %s377, 1
      %p381 = scmp.eq.s32.totalorder %s76, 1
      %p382 = scmp.ne.s32.totalorder %s377, %s379
      %p383 = scmp.eq.s32.totalorder %s76, 0
      %p384 = por %p382, %p383
      %p385 = scmp.ne.s32.totalorder %s377, %s379
      %p386 = scmp.eq.s32.totalorder %s81, 1
      %p387 = por %p385, %p386
      %p388 = scmp.ne.s32.totalorder %s379, %s380
      %p389 = scmp.eq.s32.totalorder %s81, 0
      %p390 = por %p388, %p389
      %p391 = scmp.ne.s32.totalorder %s379, %s380
      %p392 = scmp.eq.s32.totalorder %s82, 1
      %p393 = por %p391, %p392
      %p395 = scmp.ne.s32.totalorder %s380, %s394
      %p396 = scmp.eq.s32.totalorder %s82, 0
      %p397 = por %p395, %p396
      %s399 = sadd.s32 %s398, 1
      %p402 = scmp.eq.s32.totalorder %s76, 1
      %p403 = scmp.ne.s32.totalorder %s398, %s400
      %p404 = scmp.eq.s32.totalorder %s76, 0
      %p405 = por %p403, %p404
      %p406 = scmp.ne.s32.totalorder %s398, %s400
      %p407 = scmp.eq.s32.totalorder %s81, 1
      %p408 = por %p406, %p407
      %p409 = scmp.ne.s32.totalorder %s400, %s401
      %p410 = scmp.eq.s32.totalorder %s81, 0
      %p411 = por %p409, %p410
      %p412 = scmp.ne.s32.totalorder %s400, %s401
      %p413 = scmp.eq.s32.totalorder %s82, 1
      %p414 = por %p412, %p413
      %p416 = scmp.ne.s32.totalorder %s401, %s415
      %p417 = scmp.eq.s32.totalorder %s82, 0
      %p418 = por %p416, %p417
      %s420 = sadd.s32 %s419, 1
      %p423 = scmp.eq.s32.totalorder %s76, 1
      %p424 = scmp.ne.s32.totalorder %s419, %s421
      %p425 = scmp.eq.s32.totalorder %s76, 0
      %p426 = por %p424, %p425
      %p427 = scmp.ne.s32.totalorder %s419, %s421
      %p428 = scmp.eq.s32.totalorder %s81, 1
      %p429 = por %p427, %p428
      %p430 = scmp.ne.s32.totalorder %s421, %s422
      %p431 = scmp.eq.s32.totalorder %s81, 0
      %p432 = por %p430, %p431
      %p433 = scmp.ne.s32.totalorder %s421, %s422
      %p434 = scmp.eq.s32.totalorder %s82, 1
      %p435 = por %p433, %p434
      %p437 = scmp.ne.s32.totalorder %s422, %s436
      %p438 = scmp.eq.s32.totalorder %s82, 0
      %p439 = por %p437, %p438
      %s441 = sadd.s32 %s440, 1
      %p444 = scmp.eq.s32.totalorder %s76, 1
      %p445 = scmp.ne.s32.totalorder %s440, %s442
      %p446 = scmp.eq.s32.totalorder %s76, 0
      %p447 = por %p445, %p446
      %p448 = scmp.ne.s32.totalorder %s440, %s442
      %p449 = scmp.eq.s32.totalorder %s81, 1
      %p450 = por %p448, %p449
      %p451 = scmp.ne.s32.totalorder %s442, %s443
      %p452 = scmp.eq.s32.totalorder %s81, 0
      %p453 = por %p451, %p452
      %p454 = scmp.ne.s32.totalorder %s442, %s443
      %p455 = scmp.eq.s32.totalorder %s82, 1
      %p456 = por %p454, %p455
      %p458 = scmp.ne.s32.totalorder %s443, %s457
      %p459 = scmp.eq.s32.totalorder %s82, 0
      %p460 = por %p458, %p459
      %s462 = sadd.s32 %s461, 1
      %p465 = scmp.eq.s32.totalorder %s76, 1
      %p466 = scmp.ne.s32.totalorder %s461, %s463
      %p467 = scmp.eq.s32.totalorder %s76, 0
      %p468 = por %p466, %p467
      %p469 = scmp.ne.s32.totalorder %s461, %s463
      %p470 = scmp.eq.s32.totalorder %s81, 1
      %p471 = por %p469, %p470
      %p472 = scmp.ne.s32.totalorder %s463, %s464
      %p473 = scmp.eq.s32.totalorder %s81, 0
      %p474 = por %p472, %p473
      %p475 = scmp.ne.s32.totalorder %s463, %s464
      %p476 = scmp.eq.s32.totalorder %s82, 1
      %p477 = por %p475, %p476
      %p479 = scmp.ne.s32.totalorder %s464, %s478
      %p480 = scmp.eq.s32.totalorder %s82, 0
      %p481 = por %p479, %p480
      %s483 = sadd.s32 %s482, 1
      %p486 = scmp.eq.s32.totalorder %s76, 1
      %p487 = scmp.ne.s32.totalorder %s482, %s484
      %p488 = scmp.eq.s32.totalorder %s76, 0
      %p489 = por %p487, %p488
      %p490 = scmp.ne.s32.totalorder %s482, %s484
      %p491 = scmp.eq.s32.totalorder %s81, 1
      %p492 = por %p490, %p491
      %p493 = scmp.ne.s32.totalorder %s484, %s485
      %p494 = scmp.eq.s32.totalorder %s81, 0
      %p495 = por %p493, %p494
      %p496 = scmp.ne.s32.totalorder %s484, %s485
      %p497 = scmp.eq.s32.totalorder %s82, 1
      %p498 = por %p496, %p497
      %p500 = scmp.ne.s32.totalorder %s485, %s499
      %p501 = scmp.eq.s32.totalorder %s82, 0
      %p502 = por %p500, %p501
      %s504 = sadd.s32 %s503, 1
      %p507 = scmp.eq.s32.totalorder %s76, 1
      %p508 = scmp.ne.s32.totalorder %s503, %s505
      %p509 = scmp.eq.s32.totalorder %s76, 0
      %p510 = por %p508, %p509
      %p511 = scmp.ne.s32.totalorder %s503, %s505
      %p512 = scmp.eq.s32.totalorder %s81, 1
      %p513 = por %p511, %p512
      %p514 = scmp.ne.s32.totalorder %s505, %s506
      %p515 = scmp.eq.s32.totalorder %s81, 0
      %p516 = por %p514, %p515
      %p517 = scmp.ne.s32.totalorder %s505, %s506
      %p518 = scmp.eq.s32.totalorder %s82, 1
      %p519 = por %p517, %p518
      %p521 = scmp.ne.s32.totalorder %s506, %s520
      %p522 = scmp.eq.s32.totalorder %s82, 0
      %p523 = por %p521, %p522
      %s525 = sadd.s32 %s524, 1
      %p528 = scmp.eq.s32.totalorder %s76, 1
      %p529 = scmp.ne.s32.totalorder %s524, %s526
      %p530 = scmp.eq.s32.totalorder %s76, 0
      %p531 = por %p529, %p530
      %p532 = scmp.ne.s32.totalorder %s524, %s526
      %p533 = scmp.eq.s32.totalorder %s81, 1
      %p534 = por %p532, %p533
      %p535 = scmp.ne.s32.totalorder %s526, %s527
      %p536 = scmp.eq.s32.totalorder %s81, 0
      %p537 = por %p535, %p536
      %p538 = scmp.ne.s32.totalorder %s526, %s527
      %p539 = scmp.eq.s32.totalorder %s82, 1
      %p540 = por %p538, %p539
      %p542 = scmp.ne.s32.totalorder %s527, %s541
      %p543 = scmp.eq.s32.totalorder %s82, 0
      %p544 = por %p542, %p543
      %s546 = sadd.s32 %s545, 1
      %p549 = scmp.eq.s32.totalorder %s76, 1
      %p550 = scmp.ne.s32.totalorder %s545, %s547
      %p551 = scmp.eq.s32.totalorder %s76, 0
      %p552 = por %p550, %p551
      %p553 = scmp.ne.s32.totalorder %s545, %s547
      %p554 = scmp.eq.s32.totalorder %s81, 1
      %p555 = por %p553, %p554
      %p556 = scmp.ne.s32.totalorder %s547, %s548
      %p557 = scmp.eq.s32.totalorder %s81, 0
      %p558 = por %p556, %p557
      %p559 = scmp.ne.s32.totalorder %s547, %s548
      %p560 = scmp.eq.s32.totalorder %s82, 1
      %p561 = por %p559, %p560
      %p563 = scmp.ne.s32.totalorder %s548, %s562
      %p564 = scmp.eq.s32.totalorder %s82, 0
      %p565 = por %p563, %p564
      %s567 = sadd.s32 %s566, 1
      %p570 = scmp.eq.s32.totalorder %s76, 1
      %p571 = scmp.ne.s32.totalorder %s566, %s568
      %p572 = scmp.eq.s32.totalorder %s76, 0
      %p573 = por %p571, %p572
      %p574 = scmp.ne.s32.totalorder %s566, %s568
      %p575 = scmp.eq.s32.totalorder %s81, 1
      %p576 = por %p574, %p575
      %p577 = scmp.ne.s32.totalorder %s568, %s569
      %p578 = scmp.eq.s32.totalorder %s81, 0
      %p579 = por %p577, %p578
      %p580 = scmp.ne.s32.totalorder %s568, %s569
      %p581 = scmp.eq.s32.totalorder %s82, 1
      %p582 = por %p580, %p581
      %p584 = scmp.ne.s32.totalorder %s569, %s583
      %p585 = scmp.eq.s32.totalorder %s82, 0
      %p586 = por %p584, %p585
      %s588 = sadd.s32 %s587, 1
      %p591 = scmp.eq.s32.totalorder %s76, 1
      %p592 = scmp.ne.s32.totalorder %s587, %s589
      %p593 = scmp.eq.s32.totalorder %s76, 0
      %p594 = por %p592, %p593
      %p595 = scmp.ne.s32.totalorder %s587, %s589
      %p596 = scmp.eq.s32.totalorder %s81, 1
      %p597 = por %p595, %p596
      %p598 = scmp.ne.s32.totalorder %s589, %s590
      %p599 = scmp.eq.s32.totalorder %s81, 0
      %p600 = por %p598, %p599
      %p601 = scmp.ne.s32.totalorder %s589, %s590
      %p602 = scmp.eq.s32.totalorder %s82, 1
      %p603 = por %p601, %p602
      %p605 = scmp.ne.s32.totalorder %s590, %s604
      %p606 = scmp.eq.s32.totalorder %s82, 0
      %p607 = por %p605, %p606
      %s609 = sadd.s32 %s608, 1
      %p612 = scmp.eq.s32.totalorder %s76, 1
      %p613 = scmp.ne.s32.totalorder %s608, %s610
      %p614 = scmp.eq.s32.totalorder %s76, 0
      %p615 = por %p613, %p614
      %p616 = scmp.ne.s32.totalorder %s608, %s610
      %p617 = scmp.eq.s32.totalorder %s81, 1
      %p618 = por %p616, %p617
      %p619 = scmp.ne.s32.totalorder %s610, %s611
      %p620 = scmp.eq.s32.totalorder %s81, 0
      %p621 = por %p619, %p620
      %p622 = scmp.ne.s32.totalorder %s610, %s611
      %p623 = scmp.eq.s32.totalorder %s82, 1
      %p624 = por %p622, %p623
      %p626 = scmp.ne.s32.totalorder %s611, %s625
      %p627 = scmp.eq.s32.totalorder %s82, 0
      %p628 = por %p626, %p627
      %s630 = sadd.s32 %s629, 1
      %p633 = scmp.eq.s32.totalorder %s76, 1
      %p634 = scmp.ne.s32.totalorder %s629, %s631
      %p635 = scmp.eq.s32.totalorder %s76, 0
      %p636 = por %p634, %p635
      %p637 = scmp.ne.s32.totalorder %s629, %s631
      %p638 = scmp.eq.s32.totalorder %s81, 1
      %p639 = por %p637, %p638
      %p640 = scmp.ne.s32.totalorder %s631, %s632
      %p641 = scmp.eq.s32.totalorder %s81, 0
      %p642 = por %p640, %p641
      %p643 = scmp.ne.s32.totalorder %s631, %s632
      %p644 = scmp.eq.s32.totalorder %s82, 1
      %p645 = por %p643, %p644
      %p647 = scmp.ne.s32.totalorder %s632, %s646
      %p648 = scmp.eq.s32.totalorder %s82, 0
      %p649 = por %p647, %p648
      %s651 = sadd.s32 %s650, 1
      %p654 = scmp.eq.s32.totalorder %s76, 1
      %p655 = scmp.ne.s32.totalorder %s650, %s652
      %p656 = scmp.eq.s32.totalorder %s76, 0
      %p657 = por %p655, %p656
      %p658 = scmp.ne.s32.totalorder %s650, %s652
      %p659 = scmp.eq.s32.totalorder %s81, 1
      %p660 = por %p658, %p659
      %p661 = scmp.ne.s32.totalorder %s652, %s653
      %p662 = scmp.eq.s32.totalorder %s81, 0
      %p663 = por %p661, %p662
      %p664 = scmp.ne.s32.totalorder %s652, %s653
      %p665 = scmp.eq.s32.totalorder %s82, 1
      %p666 = por %p664, %p665
      %p668 = scmp.ne.s32.totalorder %s653, %s667
      %p669 = scmp.eq.s32.totalorder %s82, 0
      %p670 = por %p668, %p669
      %s672 = sadd.s32 %s671, 1
      %p675 = scmp.eq.s32.totalorder %s76, 1
      %p676 = scmp.ne.s32.totalorder %s671, %s673
      %p677 = scmp.eq.s32.totalorder %s76, 0
      %p678 = por %p676, %p677
      %p679 = scmp.ne.s32.totalorder %s671, %s673
      %p680 = scmp.eq.s32.totalorder %s81, 1
      %p681 = por %p679, %p680
      %p682 = scmp.ne.s32.totalorder %s673, %s674
      %p683 = scmp.eq.s32.totalorder %s81, 0
      %p684 = por %p682, %p683
      %p685 = scmp.ne.s32.totalorder %s673, %s674
      %p686 = scmp.eq.s32.totalorder %s82, 1
      %p687 = por %p685, %p686
      %p689 = scmp.ne.s32.totalorder %s674, %s688
      %p690 = scmp.eq.s32.totalorder %s82, 0
      %p691 = por %p689, %p690
      %s693 = sadd.s32 %s692, 1
      %p696 = scmp.eq.s32.totalorder %s76, 1
      %p697 = scmp.ne.s32.totalorder %s692, %s694
      %p698 = scmp.eq.s32.totalorder %s76, 0
      %p699 = por %p697, %p698
      %p700 = scmp.ne.s32.totalorder %s692, %s694
      %p701 = scmp.eq.s32.totalorder %s81, 1
      %p702 = por %p700, %p701
      %p703 = scmp.ne.s32.totalorder %s694, %s695
      %p704 = scmp.eq.s32.totalorder %s81, 0
      %p705 = por %p703, %p704
      %p706 = scmp.ne.s32.totalorder %s694, %s695
      %p707 = scmp.eq.s32.totalorder %s82, 1
      %p708 = por %p706, %p707
      %p710 = scmp.ne.s32.totalorder %s695, %s709
      %p711 = scmp.eq.s32.totalorder %s82, 0
      %p712 = por %p710, %p711
      %s714 = sadd.s32 %s713, 1
      %p717 = scmp.eq.s32.totalorder %s76, 1
      %p718 = scmp.ne.s32.totalorder %s713, %s715
      %p719 = scmp.eq.s32.totalorder %s76, 0
      %p720 = por %p718, %p719
      %p721 = scmp.ne.s32.totalorder %s713, %s715
      %p722 = scmp.eq.s32.totalorder %s81, 1
      %p723 = por %p721, %p722
      %p724 = scmp.ne.s32.totalorder %s715, %s716
      %p725 = scmp.eq.s32.totalorder %s81, 0
      %p726 = por %p724, %p725
      %p727 = scmp.ne.s32.totalorder %s715, %s716
      %p728 = scmp.eq.s32.totalorder %s82, 1
      %p729 = por %p727, %p728
      %p731 = scmp.ne.s32.totalorder %s716, %s730
      %p732 = scmp.eq.s32.totalorder %s82, 0
      %p733 = por %p731, %p732
      %s735 = sadd.s32 %s734, 1
      %p738 = scmp.eq.s32.totalorder %s76, 1
      %p739 = scmp.ne.s32.totalorder %s734, %s736
      %p740 = scmp.eq.s32.totalorder %s76, 0
      %p741 = por %p739, %p740
      %p742 = scmp.ne.s32.totalorder %s734, %s736
      %p743 = scmp.eq.s32.totalorder %s81, 1
      %p744 = por %p742, %p743
      %p745 = scmp.ne.s32.totalorder %s736, %s737
      %p746 = scmp.eq.s32.totalorder %s81, 0
      %p747 = por %p745, %p746
      %p748 = scmp.ne.s32.totalorder %s736, %s737
      %p749 = scmp.eq.s32.totalorder %s82, 1
      %p750 = por %p748, %p749
      %p752 = scmp.ne.s32.totalorder %s737, %s751
      %p753 = scmp.eq.s32.totalorder %s82, 0
      %p754 = por %p752, %p753
      %s756 = sadd.s32 %s755, 1
      %p759 = scmp.eq.s32.totalorder %s76, 1
      %p760 = scmp.ne.s32.totalorder %s755, %s757
      %p761 = scmp.eq.s32.totalorder %s76, 0
      %p762 = por %p760, %p761
      %p763 = scmp.ne.s32.totalorder %s755, %s757
      %p764 = scmp.eq.s32.totalorder %s81, 1
      %p765 = por %p763, %p764
      %p766 = scmp.ne.s32.totalorder %s757, %s758
      %p767 = scmp.eq.s32.totalorder %s81, 0
      %p768 = por %p766, %p767
      %p769 = scmp.ne.s32.totalorder %s757, %s758
      %p770 = scmp.eq.s32.totalorder %s82, 1
      %p771 = por %p769, %p770
      %p773 = scmp.ne.s32.totalorder %s758, %s772
      %p774 = scmp.eq.s32.totalorder %s82, 0
      %p775 = por %p773, %p774
      %s777 = sadd.s32 %s776, 1
      %p780 = scmp.eq.s32.totalorder %s76, 1
      %p781 = scmp.ne.s32.totalorder %s776, %s778
      %p782 = scmp.eq.s32.totalorder %s76, 0
      %p783 = por %p781, %p782
      %p784 = scmp.ne.s32.totalorder %s776, %s778
      %p785 = scmp.eq.s32.totalorder %s81, 1
      %p786 = por %p784, %p785
      %p787 = scmp.ne.s32.totalorder %s778, %s779
      %p788 = scmp.eq.s32.totalorder %s81, 0
      %p789 = por %p787, %p788
      %p790 = scmp.ne.s32.totalorder %s778, %s779
      %p791 = scmp.eq.s32.totalorder %s82, 1
      %p792 = por %p790, %p791
      %p794 = scmp.ne.s32.totalorder %s779, %s793
      %p795 = scmp.eq.s32.totalorder %s82, 0
      %p796 = por %p794, %p795
      %s797 = ssub.s32 %s76, %s83
      %p798 = scmp.eq.s32.totalorder %s797, 0
      %s800 = sadd.s32 %s799, 1
      %s801 = scalar_select %p798, %s799, %s800
      %p804 = pneg %p798
      %p805 = scmp.eq.s32.totalorder %s76, 1
      %p806 = por %p804, %p805
      %p807 = scmp.ne.s32.totalorder %s799, %s802
      %p808 = scmp.eq.s32.totalorder %s76, 0
      %p809 = por %p807, %p808
      %p810 = scmp.ne.s32.totalorder %s799, %s802
      %p811 = scmp.eq.s32.totalorder %s81, 1
      %p812 = por %p810, %p811
      %p813 = scmp.ne.s32.totalorder %s802, %s803
      %p814 = scmp.eq.s32.totalorder %s81, 0
      %p815 = por %p813, %p814
      %p816 = scmp.ne.s32.totalorder %s802, %s803
      %p817 = scmp.eq.s32.totalorder %s82, 1
      %p818 = por %p816, %p817
      %p820 = scmp.ne.s32.totalorder %s803, %s819
      %p821 = scmp.eq.s32.totalorder %s82, 0
      %p822 = por %p820, %p821
      %p823 = scmp.le.s32.totalorder 1, %s76
      %p824 = scmp.lt.s32.totalorder %s76, 3
      %p825 = pnand %p823, %p824
      %p826 = pneg %p825
      // Predicated region
      $region9: #{transformer_forward.1} parent=5 // pred_check
        _
      $region10: #{transformer_forward.1} parent=5 // pred_check_branch
        %828 = sbr.rel (%p825) target = $region12
      $region11: #{transformer_forward.1} parent=5 // pred_region
        %s829 = ssub.s32 %s76, 1
        // Predicated region
        $region13: #{transformer_forward.1} parent=11 // pred_check
          %p830 = pneg %p149
        $region14: #{transformer_forward.1} parent=11 // pred_check_branch
          %832 = sbr.rel (%p830) target = $region16
        $region15: #{transformer_forward.1} parent=11 // pred_region
          _
        $region16: #{transformer_forward.1} parent=11 // pred_fallthru
          _
        // Predicated region
        $region17: #{transformer_forward.1} parent=11 // pred_check
          %p833 = pneg %p170
        $region18: #{transformer_forward.1} parent=11 // pred_check_branch
          %835 = sbr.rel (%p833) target = $region20
        $region19: #{transformer_forward.1} parent=11 // pred_region
          _
        $region20: #{transformer_forward.1} parent=11 // pred_fallthru
          _
        // Predicated region
        $region21: #{transformer_forward.1} parent=11 // pred_check
          %p836 = pneg %p243
        $region22: #{transformer_forward.1} parent=11 // pred_check_branch
          %838 = sbr.rel (%p836) target = $region24
        $region23: #{transformer_forward.1} parent=11 // pred_region
          _
        $region24: #{transformer_forward.1} parent=11 // pred_fallthru
          _
        // Predicated region
        $region25: #{transformer_forward.1} parent=11 // pred_check
          %p839 = pneg %p264
        $region26: #{transformer_forward.1} parent=11 // pred_check_branch
          %841 = sbr.rel (%p839) target = $region28
        $region27: #{transformer_forward.1} parent=11 // pred_region
          _
        $region28: #{transformer_forward.1} parent=11 // pred_fallthru
          _
        // Predicated region
        $region29: #{transformer_forward.1} parent=11 // pred_check
          %p842 = pneg %p285
        $region30: #{transformer_forward.1} parent=11 // pred_check_branch
          %844 = sbr.rel (%p842) target = $region32
        $region31: #{transformer_forward.1} parent=11 // pred_region
          _
        $region32: #{transformer_forward.1} parent=11 // pred_fallthru
          _
        // Predicated region
        $region33: #{transformer_forward.1} parent=11 // pred_check
          %p845 = pneg %p306
        $region34: #{transformer_forward.1} parent=11 // pred_check_branch
          %847 = sbr.rel (%p845) target = $region36
        $region35: #{transformer_forward.1} parent=11 // pred_region
          _
        $region36: #{transformer_forward.1} parent=11 // pred_fallthru
          _
        // Predicated region
        $region37: #{transformer_forward.1} parent=11 // pred_check
          %p848 = pneg %p327
        $region38: #{transformer_forward.1} parent=11 // pred_check_branch
          %850 = sbr.rel (%p848) target = $region40
        $region39: #{transformer_forward.1} parent=11 // pred_region
          _
        $region40: #{transformer_forward.1} parent=11 // pred_fallthru
          _
        // Predicated region
        $region41: #{transformer_forward.1} parent=11 // pred_check
          %p851 = pneg %p348
        $region42: #{transformer_forward.1} parent=11 // pred_check_branch
          %853 = sbr.rel (%p851) target = $region44
        $region43: #{transformer_forward.1} parent=11 // pred_region
          _
        $region44: #{transformer_forward.1} parent=11 // pred_fallthru
          _
        // Predicated region
        $region45: #{transformer_forward.1} parent=11 // pred_check
          %p854 = pneg %p369
        $region46: #{transformer_forward.1} parent=11 // pred_check_branch
          %856 = sbr.rel (%p854) target = $region48
        $region47: #{transformer_forward.1} parent=11 // pred_region
          _
        $region48: #{transformer_forward.1} parent=11 // pred_fallthru
          _
        // Predicated region
        $region49: #{transformer_forward.1} parent=11 // pred_check
          %p857 = pneg %p390
        $region50: #{transformer_forward.1} parent=11 // pred_check_branch
          %859 = sbr.rel (%p857) target = $region52
        $region51: #{transformer_forward.1} parent=11 // pred_region
          _
        $region52: #{transformer_forward.1} parent=11 // pred_fallthru
          _
        // Predicated region
        $region53: #{transformer_forward.1} parent=11 // pred_check
          %p860 = pneg %p411
        $region54: #{transformer_forward.1} parent=11 // pred_check_branch
          %862 = sbr.rel (%p860) target = $region56
        $region55: #{transformer_forward.1} parent=11 // pred_region
          _
        $region56: #{transformer_forward.1} parent=11 // pred_fallthru
          _
        // Predicated region
        $region57: #{transformer_forward.1} parent=11 // pred_check
          %p863 = pneg %p432
        $region58: #{transformer_forward.1} parent=11 // pred_check_branch
          %865 = sbr.rel (%p863) target = $region60
        $region59: #{transformer_forward.1} parent=11 // pred_region
          _
        $region60: #{transformer_forward.1} parent=11 // pred_fallthru
          _
        // Predicated region
        $region61: #{transformer_forward.1} parent=11 // pred_check
          %p866 = pneg %p453
        $region62: #{transformer_forward.1} parent=11 // pred_check_branch
          %868 = sbr.rel (%p866) target = $region64
        $region63: #{transformer_forward.1} parent=11 // pred_region
          _
        $region64: #{transformer_forward.1} parent=11 // pred_fallthru
          _
        // Predicated region
        $region65: #{transformer_forward.1} parent=11 // pred_check
          %p869 = pneg %p474
        $region66: #{transformer_forward.1} parent=11 // pred_check_branch
          %871 = sbr.rel (%p869) target = $region68
        $region67: #{transformer_forward.1} parent=11 // pred_region
          _
        $region68: #{transformer_forward.1} parent=11 // pred_fallthru
          _
        // Predicated region
        $region69: #{transformer_forward.1} parent=11 // pred_check
          %p872 = pneg %p495
        $region70: #{transformer_forward.1} parent=11 // pred_check_branch
          %874 = sbr.rel (%p872) target = $region72
        $region71: #{transformer_forward.1} parent=11 // pred_region
          _
        $region72: #{transformer_forward.1} parent=11 // pred_fallthru
          _
        // Predicated region
        $region73: #{transformer_forward.1} parent=11 // pred_check
          %p875 = pneg %p516
        $region74: #{transformer_forward.1} parent=11 // pred_check_branch
          %877 = sbr.rel (%p875) target = $region76
        $region75: #{transformer_forward.1} parent=11 // pred_region
          _
        $region76: #{transformer_forward.1} parent=11 // pred_fallthru
          _
        // Predicated region
        $region77: #{transformer_forward.1} parent=11 // pred_check
          %p878 = pneg %p537
        $region78: #{transformer_forward.1} parent=11 // pred_check_branch
          %880 = sbr.rel (%p878) target = $region80
        $region79: #{transformer_forward.1} parent=11 // pred_region
          _
        $region80: #{transformer_forward.1} parent=11 // pred_fallthru
          _
        // Predicated region
        $region81: #{transformer_forward.1} parent=11 // pred_check
          %p881 = pneg %p558
        $region82: #{transformer_forward.1} parent=11 // pred_check_branch
          %883 = sbr.rel (%p881) target = $region84
        $region83: #{transformer_forward.1} parent=11 // pred_region
          _
        $region84: #{transformer_forward.1} parent=11 // pred_fallthru
          _
        // Predicated region
        $region85: #{transformer_forward.1} parent=11 // pred_check
          %p884 = pneg %p579
        $region86: #{transformer_forward.1} parent=11 // pred_check_branch
          %886 = sbr.rel (%p884) target = $region88
        $region87: #{transformer_forward.1} parent=11 // pred_region
          _
        $region88: #{transformer_forward.1} parent=11 // pred_fallthru
          _
        // Predicated region
        $region89: #{transformer_forward.1} parent=11 // pred_check
          %p887 = pneg %p600
        $region90: #{transformer_forward.1} parent=11 // pred_check_branch
          %889 = sbr.rel (%p887) target = $region92
        $region91: #{transformer_forward.1} parent=11 // pred_region
          _
        $region92: #{transformer_forward.1} parent=11 // pred_fallthru
          _
        // Predicated region
        $region93: #{transformer_forward.1} parent=11 // pred_check
          %p890 = pneg %p621
        $region94: #{transformer_forward.1} parent=11 // pred_check_branch
          %892 = sbr.rel (%p890) target = $region96
        $region95: #{transformer_forward.1} parent=11 // pred_region
          _
        $region96: #{transformer_forward.1} parent=11 // pred_fallthru
          _
        // Predicated region
        $region97: #{transformer_forward.1} parent=11 // pred_check
          %p893 = pneg %p642
        $region98: #{transformer_forward.1} parent=11 // pred_check_branch
          %895 = sbr.rel (%p893) target = $region100
        $region99: #{transformer_forward.1} parent=11 // pred_region
          _
        $region100: #{transformer_forward.1} parent=11 // pred_fallthru
          _
        // Predicated region
        $region101: #{transformer_forward.1} parent=11 // pred_check
          %p896 = pneg %p663
        $region102: #{transformer_forward.1} parent=11 // pred_check_branch
          %898 = sbr.rel (%p896) target = $region104
        $region103: #{transformer_forward.1} parent=11 // pred_region
          _
        $region104: #{transformer_forward.1} parent=11 // pred_fallthru
          _
        // Predicated region
        $region105: #{transformer_forward.1} parent=11 // pred_check
          %p899 = pneg %p684
        $region106: #{transformer_forward.1} parent=11 // pred_check_branch
          %901 = sbr.rel (%p899) target = $region108
        $region107: #{transformer_forward.1} parent=11 // pred_region
          _
        $region108: #{transformer_forward.1} parent=11 // pred_fallthru
          _
        // Predicated region
        $region109: #{transformer_forward.1} parent=11 // pred_check
          %p902 = pneg %p705
        $region110: #{transformer_forward.1} parent=11 // pred_check_branch
          %904 = sbr.rel (%p902) target = $region112
        $region111: #{transformer_forward.1} parent=11 // pred_region
          _
        $region112: #{transformer_forward.1} parent=11 // pred_fallthru
          _
        // Predicated region
        $region113: #{transformer_forward.1} parent=11 // pred_check
          %p905 = pneg %p726
        $region114: #{transformer_forward.1} parent=11 // pred_check_branch
          %907 = sbr.rel (%p905) target = $region116
        $region115: #{transformer_forward.1} parent=11 // pred_region
          _
        $region116: #{transformer_forward.1} parent=11 // pred_fallthru
          _
        // Predicated region
        $region117: #{transformer_forward.1} parent=11 // pred_check
          %p908 = pneg %p747
        $region118: #{transformer_forward.1} parent=11 // pred_check_branch
          %910 = sbr.rel (%p908) target = $region120
        $region119: #{transformer_forward.1} parent=11 // pred_region
          _
        $region120: #{transformer_forward.1} parent=11 // pred_fallthru
          _
        // Predicated region
        $region121: #{transformer_forward.1} parent=11 // pred_check
          %p911 = pneg %p768
        $region122: #{transformer_forward.1} parent=11 // pred_check_branch
          %913 = sbr.rel (%p911) target = $region124
        $region123: #{transformer_forward.1} parent=11 // pred_region
          _
        $region124: #{transformer_forward.1} parent=11 // pred_fallthru
          _
        // Predicated region
        $region125: #{transformer_forward.1} parent=11 // pred_check
          %p914 = pneg %p789
        $region126: #{transformer_forward.1} parent=11 // pred_check_branch
          %916 = sbr.rel (%p914) target = $region128
        $region127: #{transformer_forward.1} parent=11 // pred_region
          _
        $region128: #{transformer_forward.1} parent=11 // pred_fallthru
          _
      $region12: #{transformer_forward.1} parent=5 // pred_fallthru
        _
      %p917 = scmp.lt.s32.totalorder %s76, 2
      // Predicated region
      $region129: #{transformer_forward.1} parent=5 // pred_check
        %p918 = pneg %p917
      $region130: #{transformer_forward.1} parent=5 // pred_check_branch
        %920 = sbr.rel (%p918) target = $region132
      $region131: #{transformer_forward.1} parent=5 // pred_region
        // Predicated region
        $region133: #{transformer_forward.1} parent=131 // pred_check
          %p921 = pneg %p96
        $region134: #{transformer_forward.1} parent=131 // pred_check_branch
          %923 = sbr.rel (%p921) target = $region136
        $region135: #{transformer_forward.1} parent=131 // pred_region
          %p924 = scmp.lt.s32.totalorder %s76, 1
          %s925 = scalar_select %p924, %s76, 1
          %s926 = smul.addr %s925, 8
          %s927 = scalar_lea.vmem %s1, %s926
        $region136: #{transformer_forward.1} parent=131 // pred_fallthru
          _
        // Predicated region
        $region137: #{transformer_forward.1} parent=131 // pred_check
          %p928 = pneg %p122
        $region138: #{transformer_forward.1} parent=131 // pred_check_branch
          %930 = sbr.rel (%p928) target = $region140
        $region139: #{transformer_forward.1} parent=131 // pred_region
          %p931 = scmp.lt.s32.totalorder %s76, 1
          %s932 = scalar_select %p931, %s76, 1
          %s933 = smul.addr %s932, 8
          %s934 = scalar_lea.vmem %s3, %s933
        $region140: #{transformer_forward.1} parent=131 // pred_fallthru
          _
        // Predicated region
        $region141: #{transformer_forward.1} parent=131 // pred_check
          %p935 = pneg %p190
        $region142: #{transformer_forward.1} parent=131 // pred_check_branch
          %937 = sbr.rel (%p935) target = $region144
        $region143: #{transformer_forward.1} parent=131 // pred_region
          %p938 = scmp.lt.s32.totalorder %s76, 1
          %s939 = scalar_select %p938, %s76, 1
          %s940 = scalar_lea.vmem %s9, %s939
        $region144: #{transformer_forward.1} parent=131 // pred_fallthru
          _
        // Predicated region
        $region145: #{transformer_forward.1} parent=131 // pred_check
          %p941 = pneg %p216
        $region146: #{transformer_forward.1} parent=131 // pred_check_branch
          %943 = sbr.rel (%p941) target = $region148
        $region147: #{transformer_forward.1} parent=131 // pred_region
          %p944 = scmp.lt.s32.totalorder %s76, 1
          %s945 = scalar_select %p944, %s76, 1
          %s946 = smul.addr %s945, 8
          %s947 = scalar_lea.vmem %s11, %s946
        $region148: #{transformer_forward.1} parent=131 // pred_fallthru
          _
      $region132: #{transformer_forward.1} parent=5 // pred_fallthru
        _
      %p948 = scmp.le.s32.totalorder 1, %s76
      %p949 = scmp.lt.s32.totalorder %s76, 3
      %p950 = pnand %p948, %p949
      %p951 = pneg %p950
      // Predicated region
      $region149: #{transformer_forward.1} parent=5 // pred_check
        _
      $region150: #{transformer_forward.1} parent=5 // pred_check_branch
        %953 = sbr.rel (%p950) target = $region152
      $region151: #{transformer_forward.1} parent=5 // pred_region
        %s954 = ssub.s32 %s76, 1
        %p955 = scmp.lt.s32.totalorder %s81, 1
        %s956 = scalar_select %p955, %s81, 1
        %s957 = smul.addr %s956, 8
        %s958 = scalar_lea.vmem %s1, %s957
        %p959 = pneg %p102
        %p960 = pneg %p99
        %p961 = scmp.lt.s32.totalorder %s81, 1
        %s962 = scalar_select %p961, %s81, 1
        %s963 = smul.addr %s962, 8
        %s964 = scalar_lea.vmem %s3, %s963
        %p965 = pneg %p128
        %p966 = pneg %p125
        %p967 = pneg %p149
        %p968 = pneg %p146
        %p969 = pneg %p170
        %p970 = pneg %p167
        %p971 = scmp.lt.s32.totalorder %s81, 1
        %s972 = scalar_select %p971, %s81, 1
        %s973 = scalar_lea.vmem %s9, %s972
        %p974 = pneg %p196
        %p975 = pneg %p193
        %p976 = scmp.lt.s32.totalorder %s81, 1
        %s977 = scalar_select %p976, %s81, 1
        %s978 = smul.addr %s977, 8
        %s979 = scalar_lea.vmem %s11, %s978
        %p980 = pneg %p222
        %p981 = pneg %p219
        %p982 = pneg %p243
        %p983 = pneg %p240
        %p984 = pneg %p264
        %p985 = pneg %p261
        %p986 = pneg %p285
        %p987 = pneg %p282
        %p988 = pneg %p306
        %p989 = pneg %p303
        %p990 = pneg %p327
        %p991 = pneg %p324
        %p992 = pneg %p348
        %p993 = pneg %p345
        %p994 = pneg %p369
        %p995 = pneg %p366
        %p996 = pneg %p390
        %p997 = pneg %p387
        %p998 = pneg %p411
        %p999 = pneg %p408
        %p1000 = pneg %p432
        %p1001 = pneg %p429
        %p1002 = pneg %p453
        %p1003 = pneg %p450
        %p1004 = pneg %p474
        %p1005 = pneg %p471
        %p1006 = pneg %p495
        %p1007 = pneg %p492
        %p1008 = pneg %p516
        %p1009 = pneg %p513
        %p1010 = pneg %p537
        %p1011 = pneg %p534
        %p1012 = pneg %p558
        %p1013 = pneg %p555
        %p1014 = pneg %p579
        %p1015 = pneg %p576
        %p1016 = pneg %p600
        %p1017 = pneg %p597
        %p1018 = pneg %p621
        %p1019 = pneg %p618
        %p1020 = pneg %p642
        %p1021 = pneg %p639
        %p1022 = pneg %p663
        %p1023 = pneg %p660
        %p1024 = pneg %p684
        %p1025 = pneg %p681
        %p1026 = pneg %p705
        %p1027 = pneg %p702
        %p1028 = pneg %p726
        %p1029 = pneg %p723
        %p1030 = pneg %p747
        %p1031 = pneg %p744
        %p1032 = pneg %p768
        %p1033 = pneg %p765
        %p1034 = pneg %p789
        %p1035 = pneg %p786
        %p1036 = pneg %p815
        %p1037 = pneg %p812
        %s1038 = sand.u32 %s802, 1
        %s1039 = scalar_lea.sflag [#allocation3], %s1038
        %s1040 = sand.u32 %s802, 1
        %s1041 = smul.addr %s1040, 8
        %s1042 = scalar_lea.vmem [#allocation2], %s1041
        %p1043 = scmp.lt.s32.totalorder %s81, 1
        %s1044 = scalar_select %p1043, %s81, 1
        %s1045 = smul.addr %s1044, 8
        %s1046 = scalar_lea.vmem %s1, %s1045
        %p1047 = scmp.lt.s32.totalorder %s81, 1
        %s1048 = scalar_select %p1047, %s81, 1
        %s1049 = smul.addr %s1048, 8
        %s1050 = scalar_lea.vmem %s3, %s1049
        %p1051 = scmp.lt.s32.totalorder %s81, 1
        %s1052 = scalar_select %p1051, %s81, 1
        %s1053 = scalar_lea.vmem %s9, %s1052
        %p1054 = scmp.lt.s32.totalorder %s81, 1
        %s1055 = scalar_select %p1054, %s81, 1
        %s1056 = smul.addr %s1055, 8
        %s1057 = scalar_lea.vmem %s11, %s1056
        %v1058 = vld [vmem:[%s1053] sm:$0x1]
        %vm1059 = vcmp.gt.f32.partialorder %v1058, 0.0
        %v1060 = vld [vmem:[%s1057] sm:$0xff]
        %vm1061 = vcmp.gt.f32.partialorder %v1060, 0.0
        %v1062 = vlaneseq
        %v1063 = vshrl.u32 %v1062, 7
        %v1064 = vlaneseq
        %v1065 = vand.u32 %v1064, 127
        %vm1066 = vcmp.ge.s32.totalorder %v1063, %v1065
        %v1067 = vsel %vm1061, 1, 0
        %1068 = vset.pattern.permute.xlu0 0
        %1069 = vperm.xlu0 %1068, %v1067
        %v1070 = vpop.permute.xlu0 %1069
        %vm1071 = vcmp.eq.s32.totalorder %v1070, 1
        %vm1072 = vmand %vm1071, %vm1066
        %v1073 = vld [vmem:[%s1046] sm:$0xff]
        %v1074 = vmul.f32 %v1073, 5.656854
        %v1075 = vld [vmem:[%s5] sm:$0xff]
        %v1076 = vadd.f32 %v1074, %v1075
        %v1077 = vld [vmem:[%s13] sm:$0xff]
        %v1078 = vld [vmem:[%s13 + $0x8] sm:$0xff]
        %v1079 = vld [vmem:[%s13 + $0x10] sm:$0xff]
        %v1080 = vld [vmem:[%s13 + $0x18] sm:$0xff]
        %v1081 = vld [vmem:[%s15] sm:$0x1]
        %v1082 = vld [vmem:[%s17] sm:$0xff]
        %v1083 = vld [vmem:[%s17 + $0x8] sm:$0xff]
        %v1084 = vld [vmem:[%s17 + $0x10] sm:$0xff]
        %v1085 = vld [vmem:[%s17 + $0x18] sm:$0xff]
        %v1086 = vld [vmem:[%s19] sm:$0x1]
        %v1088 = vperm.slane %v1081, 0
        %vm1090 = vcmask 261120
        %v1092 = vsel %vm1090, %v1076, 0
        %1094 = vmatpush.msra.mxu0 0.0
        %1095 = vmatpush.msra.mxu0 0.0
        %1096 = vmatpush.msra.mxu0 0.0
        %1097 = vmatpush.msra.mxu0 0.0
        %1098 = vmatpush.msra.mxu0 0.0
        %1099 = vmatpush.msra.mxu0 0.0
        %1100 = vmatpush.msra.mxu0 0.0
        %1101 = vmatpush.msra.mxu0 0.0
        %1102 = vmatpush.msra.mxu0 0.0
        %1103 = vmatpush.msra.mxu0 0.0
        %1104 = vmatpush.msra.mxu0 0.0
        %1105 = vmatpush.msra.mxu0 0.0
        %1106 = vmatpush.msra.mxu0 %v1080
        %1107 = vmatpush.msra.mxu0 %v1079
        %1108 = vmatpush.msra.mxu0 %v1078
        %1109 = vmatpush.msra.mxu0 %v1077
        %1110 = vmatmul.f32.gmra.mxu0 %v1092
        %v1111 = vpop.f32.mrf.mxu0
        %v1112 = vadd.f32 %v1088, %v1111
        %1113 = vdwg.mxu0
        %1115 = vrot.lane.b32.xlu0 %v1112, 96
        %v1116 = vpop.permute.xlu0 %1115
        %vm1117 = vcmask 64512
        %v1118 = vsel %vm1117, %v1112, 0
        %v1120 = vsel %vm1117, %v1116, 0
        %1122 = vmatpush.xpose.msra.mxu0 0.0
        %1123 = vmatpush.xpose.msra.mxu0 0.0
        %1124 = vmatpush.xpose.msra.mxu0 0.0
        %1125 = vmatpush.xpose.msra.mxu0 0.0
        %1126 = vmatpush.xpose.msra.mxu0 0.0
        %1127 = vmatpush.xpose.msra.mxu0 0.0
        %1128 = vmatpush.xpose.msra.mxu0 0.0
        %1129 = vmatpush.xpose.msra.mxu0 0.0
        %1130 = vmatpush.xpose.msra.mxu0 0.0
        %1131 = vmatpush.xpose.msra.mxu0 0.0
        %1132 = vmatpush.xpose.msra.mxu0 0.0
        %1133 = vmatpush.xpose.msra.mxu0 0.0
        %1134 = vmatpush.xpose.msra.mxu0 0.0
        %1135 = vmatpush.xpose.msra.mxu0 0.0
        %1136 = vmatpush.xpose.msra.mxu0 0.0
        %1137 = vmatpush.xpose.msra.mxu0 %v1120
        %1138 = vmatmul.f32.gmra.mxu0 %v1118
        %v1139 = vpop.f32.mrf.mxu0
        %v1140 = vadd.f32 0.0, %v1139
        %1141 = vdwg.mxu0
        %v1142 = vmul.f32 %v1140, 0.35355338
        %v1143 = vsel %vm1059, 1, 0
        %v1144 = vperm.slane %v1143, 0
        %vm1145 = vcmp.eq.s32.totalorder %v1144, 1
        %v1146 = vsel %vm1145, %v1142, -1e+09
        %v1147 = vsel %vm1117, %v1146, -inf
        %1148 = vmax.xlane.f32.xlu0 %v1147
        %v1149 = vpop.xlane.xlu0 %1148
        %v1150 = vsub.f32 %v1146, %v1149
        %v1151 = vmul.f32 %v1150, 1.442695
        %v1152 = vpow.pop %v1151
        %v1153 = vsel %vm1117, %v1152, 0.0
        %1154 = vadd.xlane.f32.xlu0 %v1153
        %v1155 = vpop.xlane.xlu0 %1154
        %v1156 = vrcp.pop %v1155
        %v1157 = vmul.f32 %v1152, %v1156
        %1158 = vrot.lane.b32.xlu0 %v1112, 64
        %v1159 = vpop.permute.xlu0 %1158
        %v1162 = vsel %vm1117, %v1157, 0
        %1164 = vmatpush.msra.mxu0 0.0
        %1165 = vmatpush.msra.mxu0 0.0
        %1166 = vmatpush.msra.mxu0 0.0
        %1167 = vmatpush.msra.mxu0 0.0
        %1168 = vmatpush.msra.mxu0 0.0
        %1169 = vmatpush.msra.mxu0 0.0
        %1170 = vmatpush.msra.mxu0 0.0
        %1171 = vmatpush.msra.mxu0 0.0
        %1172 = vmatpush.msra.mxu0 0.0
        %1173 = vmatpush.msra.mxu0 0.0
        %1174 = vmatpush.msra.mxu0 0.0
        %1175 = vmatpush.msra.mxu0 0.0
        %1176 = vmatpush.msra.mxu0 0.0
        %1177 = vmatpush.msra.mxu0 0.0
        %1178 = vmatpush.msra.mxu0 0.0
        %1179 = vmatpush.msra.mxu0 %v1159
        %1180 = vmatmul.f32.gmra.mxu0 %v1162
        %v1181 = vpop.f32.mrf.mxu0
        %v1182 = vadd.f32 0.0, %v1181
        %1183 = vdwg.mxu0
        %1184 = vrot.lane.b32.xlu0 %v1112, 120
        %v1185 = vpop.permute.xlu0 %1184
        %1186 = vrot.lane.b32.xlu0 %v1112, 88
        %v1187 = vpop.permute.xlu0 %1186
        %v1188 = vsel %vm1117, %v1185, 0
        %v1190 = vsel %vm1117, %v1187, 0
        %1192 = vmatpush.xpose.msra.mxu0 0.0
        %1193 = vmatpush.xpose.msra.mxu0 0.0
        %1194 = vmatpush.xpose.msra.mxu0 0.0
        %1195 = vmatpush.xpose.msra.mxu0 0.0
        %1196 = vmatpush.xpose.msra.mxu0 0.0
        %1197 = vmatpush.xpose.msra.mxu0 0.0
        %1198 = vmatpush.xpose.msra.mxu0 0.0
        %1199 = vmatpush.xpose.msra.mxu0 0.0
        %1200 = vmatpush.xpose.msra.mxu0 0.0
        %1201 = vmatpush.xpose.msra.mxu0 0.0
        %1202 = vmatpush.xpose.msra.mxu0 0.0
        %1203 = vmatpush.xpose.msra.mxu0 0.0
        %1204 = vmatpush.xpose.msra.mxu0 0.0
        %1205 = vmatpush.xpose.msra.mxu0 0.0
        %1206 = vmatpush.xpose.msra.mxu0 0.0
        %1207 = vmatpush.xpose.msra.mxu0 %v1190
        %1208 = vmatmul.f32.gmra.mxu0 %v1188
        %v1209 = vpop.f32.mrf.mxu0
        %v1210 = vadd.f32 0.0, %v1209
        %1211 = vdwg.mxu0
        %v1212 = vmul.f32 %v1210, 0.35355338
        %v1213 = vsel %vm1145, %v1212, -1e+09
        %v1214 = vsel %vm1117, %v1213, -inf
        %1215 = vmax.xlane.f32.xlu0 %v1214
        %v1216 = vpop.xlane.xlu0 %1215
        %v1217 = vsub.f32 %v1213, %v1216
        %v1218 = vmul.f32 %v1217, 1.442695
        %v1219 = vpow.pop %v1218
        %v1220 = vsel %vm1117, %v1219, 0.0
        %1221 = vadd.xlane.f32.xlu0 %v1220
        %v1222 = vpop.xlane.xlu0 %1221
        %v1223 = vrcp.pop %v1222
        %v1224 = vmul.f32 %v1219, %v1223
        %1225 = vrot.lane.b32.xlu0 %v1112, 56
        %v1226 = vpop.permute.xlu0 %1225
        %v1229 = vsel %vm1117, %v1224, 0
        %1231 = vmatpush.msra.mxu0 0.0
        %1232 = vmatpush.msra.mxu0 0.0
        %1233 = vmatpush.msra.mxu0 0.0
        %1234 = vmatpush.msra.mxu0 0.0
        %1235 = vmatpush.msra.mxu0 0.0
        %1236 = vmatpush.msra.mxu0 0.0
        %1237 = vmatpush.msra.mxu0 0.0
        %1238 = vmatpush.msra.mxu0 0.0
        %1239 = vmatpush.msra.mxu0 0.0
        %1240 = vmatpush.msra.mxu0 0.0
        %1241 = vmatpush.msra.mxu0 0.0
        %1242 = vmatpush.msra.mxu0 0.0
        %1243 = vmatpush.msra.mxu0 0.0
        %1244 = vmatpush.msra.mxu0 0.0
        %1245 = vmatpush.msra.mxu0 0.0
        %1246 = vmatpush.msra.mxu0 %v1226
        %1247 = vmatmul.f32.gmra.mxu0 %v1229
        %v1248 = vpop.f32.mrf.mxu0
        %v1249 = vadd.f32 0.0, %v1248
        %1250 = vdwg.mxu0
        %1251 = vrot.lane.b32.xlu0 %v1112, 112
        %v1252 = vpop.permute.xlu0 %1251
        %1253 = vrot.lane.b32.xlu0 %v1112, 80
        %v1254 = vpop.permute.xlu0 %1253
        %v1255 = vsel %vm1117, %v1252, 0
        %v1257 = vsel %vm1117, %v1254, 0
        %1259 = vmatpush.xpose.msra.mxu0 0.0
        %1260 = vmatpush.xpose.msra.mxu0 0.0
        %1261 = vmatpush.xpose.msra.mxu0 0.0
        %1262 = vmatpush.xpose.msra.mxu0 0.0
        %1263 = vmatpush.xpose.msra.mxu0 0.0
        %1264 = vmatpush.xpose.msra.mxu0 0.0
        %1265 = vmatpush.xpose.msra.mxu0 0.0
        %1266 = vmatpush.xpose.msra.mxu0 0.0
        %1267 = vmatpush.xpose.msra.mxu0 0.0
        %1268 = vmatpush.xpose.msra.mxu0 0.0
        %1269 = vmatpush.xpose.msra.mxu0 0.0
        %1270 = vmatpush.xpose.msra.mxu0 0.0
        %1271 = vmatpush.xpose.msra.mxu0 0.0
        %1272 = vmatpush.xpose.msra.mxu0 0.0
        %1273 = vmatpush.xpose.msra.mxu0 0.0
        %1274 = vmatpush.xpose.msra.mxu0 %v1257
        %1275 = vmatmul.f32.gmra.mxu0 %v1255
        %v1276 = vpop.f32.mrf.mxu0
        %v1277 = vadd.f32 0.0, %v1276
        %1278 = vdwg.mxu0
        %v1279 = vmul.f32 %v1277, 0.35355338
        %v1280 = vsel %vm1145, %v1279, -1e+09
        %v1281 = vsel %vm1117, %v1280, -inf
        %1282 = vmax.xlane.f32.xlu0 %v1281
        %v1283 = vpop.xlane.xlu0 %1282
        %v1284 = vsub.f32 %v1280, %v1283
        %v1285 = vmul.f32 %v1284, 1.442695
        %v1286 = vpow.pop %v1285
        %v1287 = vsel %vm1117, %v1286, 0.0
        %1288 = vadd.xlane.f32.xlu0 %v1287
        %v1289 = vpop.xlane.xlu0 %1288
        %v1290 = vrcp.pop %v1289
        %v1291 = vmul.f32 %v1286, %v1290
        %1292 = vrot.lane.b32.xlu0 %v1112, 48
        %v1293 = vpop.permute.xlu0 %1292
        %v1296 = vsel %vm1117, %v1291, 0
        %1298 = vmatpush.msra.mxu0 0.0
        %1299 = vmatpush.msra.mxu0 0.0
        %1300 = vmatpush.msra.mxu0 0.0
        %1301 = vmatpush.msra.mxu0 0.0
        %1302 = vmatpush.msra.mxu0 0.0
        %1303 = vmatpush.msra.mxu0 0.0
        %1304 = vmatpush.msra.mxu0 0.0
        %1305 = vmatpush.msra.mxu0 0.0
        %1306 = vmatpush.msra.mxu0 0.0
        %1307 = vmatpush.msra.mxu0 0.0
        %1308 = vmatpush.msra.mxu0 0.0
        %1309 = vmatpush.msra.mxu0 0.0
        %1310 = vmatpush.msra.mxu0 0.0
        %1311 = vmatpush.msra.mxu0 0.0
        %1312 = vmatpush.msra.mxu0 0.0
        %1313 = vmatpush.msra.mxu0 %v1293
        %1314 = vmatmul.f32.gmra.mxu0 %v1296
        %v1315 = vpop.f32.mrf.mxu0
        %v1316 = vadd.f32 0.0, %v1315
        %1317 = vdwg.mxu0
        %1318 = vrot.lane.b32.xlu0 %v1112, 104
        %v1319 = vpop.permute.xlu0 %1318
        %1320 = vrot.lane.b32.xlu0 %v1112, 72
        %v1321 = vpop.permute.xlu0 %1320
        %v1322 = vsel %vm1117, %v1319, 0
        %v1324 = vsel %vm1117, %v1321, 0
        %1326 = vmatpush.xpose.msra.mxu0 0.0
        %1327 = vmatpush.xpose.msra.mxu0 0.0
        %1328 = vmatpush.xpose.msra.mxu0 0.0
        %1329 = vmatpush.xpose.msra.mxu0 0.0
        %1330 = vmatpush.xpose.msra.mxu0 0.0
        %1331 = vmatpush.xpose.msra.mxu0 0.0
        %1332 = vmatpush.xpose.msra.mxu0 0.0
        %1333 = vmatpush.xpose.msra.mxu0 0.0
        %1334 = vmatpush.xpose.msra.mxu0 0.0
        %1335 = vmatpush.xpose.msra.mxu0 0.0
        %1336 = vmatpush.xpose.msra.mxu0 0.0
        %1337 = vmatpush.xpose.msra.mxu0 0.0
        %1338 = vmatpush.xpose.msra.mxu0 0.0
        %1339 = vmatpush.xpose.msra.mxu0 0.0
        %1340 = vmatpush.xpose.msra.mxu0 0.0
        %1341 = vmatpush.xpose.msra.mxu0 %v1324
        %1342 = vmatmul.f32.gmra.mxu0 %v1322
        %v1343 = vpop.f32.mrf.mxu0
        %v1344 = vadd.f32 0.0, %v1343
        %1345 = vdwg.mxu0
        %v1346 = vmul.f32 %v1344, 0.35355338
        %v1347 = vsel %vm1145, %v1346, -1e+09
        %v1348 = vsel %vm1117, %v1347, -inf
        %1349 = vmax.xlane.f32.xlu0 %v1348
        %v1350 = vpop.xlane.xlu0 %1349
        %v1351 = vsub.f32 %v1347, %v1350
        %v1352 = vmul.f32 %v1351, 1.442695
        %v1353 = vpow.pop %v1352
        %v1354 = vsel %vm1117, %v1353, 0.0
        %1355 = vadd.xlane.f32.xlu0 %v1354
        %v1356 = vpop.xlane.xlu0 %1355
        %v1357 = vrcp.pop %v1356
        %v1358 = vmul.f32 %v1353, %v1357
        %1359 = vrot.lane.b32.xlu0 %v1112, 40
        %v1360 = vpop.permute.xlu0 %1359
        %v1363 = vsel %vm1117, %v1358, 0
        %1365 = vmatpush.msra.mxu0 0.0
        %1366 = vmatpush.msra.mxu0 0.0
        %1367 = vmatpush.msra.mxu0 0.0
        %1368 = vmatpush.msra.mxu0 0.0
        %1369 = vmatpush.msra.mxu0 0.0
        %1370 = vmatpush.msra.mxu0 0.0
        %1371 = vmatpush.msra.mxu0 0.0
        %1372 = vmatpush.msra.mxu0 0.0
        %1373 = vmatpush.msra.mxu0 0.0
        %1374 = vmatpush.msra.mxu0 0.0
        %1375 = vmatpush.msra.mxu0 0.0
        %1376 = vmatpush.msra.mxu0 0.0
        %1377 = vmatpush.msra.mxu0 0.0
        %1378 = vmatpush.msra.mxu0 0.0
        %1379 = vmatpush.msra.mxu0 0.0
        %1380 = vmatpush.msra.mxu0 %v1360
        %1381 = vmatmul.f32.gmra.mxu0 %v1363
        %v1382 = vpop.f32.mrf.mxu0
        %v1383 = vadd.f32 0.0, %v1382
        %1384 = vdwg.mxu0
        %1386 = vrot.lane.b32.xlu0 %v1249, 8
        %v1387 = vpop.permute.xlu0 %1386
        %1390 = vrot.lane.b32.xlu0 %v1316, 16
        %v1391 = vpop.permute.xlu0 %1390
        %1394 = vrot.lane.b32.xlu0 %v1383, 24
        %v1395 = vpop.permute.xlu0 %1394
        %v1397 = vsel %vm1117, %v1182, %v1387
        %vm1398 = vcmask 130048
        %v1399 = vsel %vm1398, %v1397, %v1391
        %vm1400 = vcmask 195584
        %v1401 = vsel %vm1400, %v1399, %v1395
        %v1403 = vperm.slane %v1086, 0
        %v1406 = vsel %vm1090, %v1401, 0
        %1408 = vmatpush.msra.mxu0 0.0
        %1409 = vmatpush.msra.mxu0 0.0
        %1410 = vmatpush.msra.mxu0 0.0
        %1411 = vmatpush.msra.mxu0 0.0
        %1412 = vmatpush.msra.mxu0 0.0
        %1413 = vmatpush.msra.mxu0 0.0
        %1414 = vmatpush.msra.mxu0 0.0
        %1415 = vmatpush.msra.mxu0 0.0
        %1416 = vmatpush.msra.mxu0 0.0
        %1417 = vmatpush.msra.mxu0 0.0
        %1418 = vmatpush.msra.mxu0 0.0
        %1419 = vmatpush.msra.mxu0 0.0
        %1420 = vmatpush.msra.mxu0 %v1085
        %1421 = vmatpush.msra.mxu0 %v1084
        %1422 = vmatpush.msra.mxu0 %v1083
        %1423 = vmatpush.msra.mxu0 %v1082
        %1424 = vmatmul.f32.gmra.mxu0 %v1406
        %v1425 = vpop.f32.mrf.mxu0
        %v1426 = vadd.f32 %v1403, %v1425
        %1427 = vdwg.mxu0
        %v1428 = vld [vmem:[%s21] sm:$0x3]
        %v1429 = vadd.f32 %v1076, %v1426
        %v1430 = vsel %vm1090, %v1429, 0.0
        %1431 = vadd.xlane.f32.xlu0 %v1430
        %v1432 = vpop.xlane.xlu0 %1431
        %v1433 = vrcp.pop 32.0
        %v1434 = vmul.f32 32.0, %v1433
        %v1435 = vsub.f32 1.0, %v1434
        %v1436 = vmul.f32 %v1433, %v1435
        %v1437 = vadd.f32 %v1433, %v1436
        %vm1438 = vweird.f32 %v1433
        %v1439 = vsel %vm1438, %v1433, %v1437
        %v1440 = vmul.f32 %v1432, %v1439
        %v1441 = vsub.f32 %v1429, %v1440
        %v1442 = vmul.f32 %v1441, %v1441
        %v1443 = vsel %vm1090, %v1442, 0.0
        %1444 = vadd.xlane.f32.xlu0 %v1443
        %v1445 = vpop.xlane.xlu0 %1444
        %v1446 = vmul.f32 %v1445, %v1439
        %v1447 = vadd.f32 %v1446, 1e-05
        %v1448 = vrsqrt.pop %v1447
        %v1449 = vmul.f32 %v1448, %v1447
        %v1450 = vmul.f32 %v1449, %v1448
        %v1451 = vmul.f32 0.5, %v1450
        %v1452 = vsub.f32 1.5, %v1451
        %v1453 = vmul.f32 %v1448, %v1452
        %vm1454 = vweird.f32 %v1447
        %vm1455 = vweird.f32 %v1448
        %vm1456 = vmor %vm1454, %vm1455
        %v1457 = vsel %vm1456, %v1448, %v1453
        %v1458 = vmul.f32 %v1441, %v1457
        %v1459 = vperm.slane %v1428, 0
        %v1460 = vmul.f32 %v1458, %v1459
        %v1461 = vperm.slane %v1428, 1
        %v1462 = vadd.f32 %v1460, %v1461
        %v1463 = vld [vmem:[%s23] sm:$0xff]
        %v1464 = vld [vmem:[%s23 + $0x8] sm:$0xff]
        %v1465 = vld [vmem:[%s23 + $0x10] sm:$0xff]
        %v1466 = vld [vmem:[%s23 + $0x18] sm:$0xff]
        %v1467 = vld [vmem:[%s25] sm:$0x1]
        %v1468 = vld [vmem:[%s27] sm:$0xff]
        %v1469 = vld [vmem:[%s27 + $0x8] sm:$0xff]
        %v1470 = vld [vmem:[%s27 + $0x10] sm:$0xff]
        %v1471 = vld [vmem:[%s27 + $0x18] sm:$0xff]
        %v1472 = vld [vmem:[%s27 + $0x20] sm:$0xff]
        %v1473 = vld [vmem:[%s27 + $0x28] sm:$0xff]
        %v1474 = vld [vmem:[%s27 + $0x30] sm:$0xff]
        %v1475 = vld [vmem:[%s27 + $0x38] sm:$0xff]
        %v1476 = vld [vmem:[%s29] sm:$0x1]
        %v1478 = vperm.slane %v1467, 0
        %v1481 = vsel %vm1090, %v1462, 0
        %1483 = vmatpush.msra.mxu0 0.0
        %1484 = vmatpush.msra.mxu0 0.0
        %1485 = vmatpush.msra.mxu0 0.0
        %1486 = vmatpush.msra.mxu0 0.0
        %1487 = vmatpush.msra.mxu0 0.0
        %1488 = vmatpush.msra.mxu0 0.0
        %1489 = vmatpush.msra.mxu0 0.0
        %1490 = vmatpush.msra.mxu0 0.0
        %1491 = vmatpush.msra.mxu0 0.0
        %1492 = vmatpush.msra.mxu0 0.0
        %1493 = vmatpush.msra.mxu0 0.0
        %1494 = vmatpush.msra.mxu0 0.0
        %1495 = vmatpush.msra.mxu0 %v1466
        %1496 = vmatpush.msra.mxu0 %v1465
        %1497 = vmatpush.msra.mxu0 %v1464
        %1498 = vmatpush.msra.mxu0 %v1463
        %1499 = vmatmul.f32.gmra.mxu0 %v1481
        %v1500 = vpop.f32.mrf.mxu0
        %v1501 = vadd.f32 %v1478, %v1500
        %1502 = vdwg.mxu0
        %v1503 = vmax.f32 %v1501, 0.0
        %v1505 = vperm.slane %v1476, 0
        %vm1507 = vcmask 523264
        %v1509 = vsel %vm1507, %v1503, 0
        %1511 = vmatpush.msra.mxu0 0.0
        %1512 = vmatpush.msra.mxu0 0.0
        %1513 = vmatpush.msra.mxu0 0.0
        %1514 = vmatpush.msra.mxu0 0.0
        %1515 = vmatpush.msra.mxu0 0.0
        %1516 = vmatpush.msra.mxu0 0.0
        %1517 = vmatpush.msra.mxu0 0.0
        %1518 = vmatpush.msra.mxu0 0.0
        %1519 = vmatpush.msra.mxu0 %v1475
        %1520 = vmatpush.msra.mxu0 %v1474
        %1521 = vmatpush.msra.mxu0 %v1473
        %1522 = vmatpush.msra.mxu0 %v1472
        %1523 = vmatpush.msra.mxu0 %v1471
        %1524 = vmatpush.msra.mxu0 %v1470
        %1525 = vmatpush.msra.mxu0 %v1469
        %1526 = vmatpush.msra.mxu0 %v1468
        %1527 = vmatmul.f32.gmra.mxu0 %v1509
        %v1528 = vpop.f32.mrf.mxu0
        %v1529 = vadd.f32 %v1505, %v1528
        %1530 = vdwg.mxu0
        %v1531 = vld [vmem:[%s31] sm:$0x3]
        %v1532 = vadd.f32 %v1462, %v1529
        %v1533 = vsel %vm1090, %v1532, 0.0
        %1534 = vadd.xlane.f32.xlu0 %v1533
        %v1535 = vpop.xlane.xlu0 %1534
        %v1536 = vmul.f32 %v1535, %v1439
        %v1537 = vsub.f32 %v1532, %v1536
        %v1538 = vmul.f32 %v1537, %v1537
        %v1539 = vsel %vm1090, %v1538, 0.0
        %1540 = vadd.xlane.f32.xlu0 %v1539
        %v1541 = vpop.xlane.xlu0 %1540
        %v1542 = vmul.f32 %v1541, %v1439
        %v1543 = vadd.f32 %v1542, 1e-05
        %v1544 = vrsqrt.pop %v1543
        %v1545 = vmul.f32 %v1544, %v1543
        %v1546 = vmul.f32 %v1545, %v1544
        %v1547 = vmul.f32 0.5, %v1546
        %v1548 = vsub.f32 1.5, %v1547
        %v1549 = vmul.f32 %v1544, %v1548
        %vm1550 = vweird.f32 %v1543
        %vm1551 = vweird.f32 %v1544
        %vm1552 = vmor %vm1550, %vm1551
        %v1553 = vsel %vm1552, %v1544, %v1549
        %v1554 = vmul.f32 %v1537, %v1553
        %v1555 = vperm.slane %v1531, 0
        %v1556 = vmul.f32 %v1554, %v1555
        %v1557 = vperm.slane %v1531, 1
        %v1558 = vadd.f32 %v1556, %v1557
        %s1559 = scalar_lea.vmem %s13, 32
        %v1560 = vld [vmem:[%s1559] sm:$0xff]
        %v1561 = vld [vmem:[%s1559 + $0x8] sm:$0xff]
        %v1562 = vld [vmem:[%s1559 + $0x10] sm:$0xff]
        %v1563 = vld [vmem:[%s1559 + $0x18] sm:$0xff]
        %s1564 = scalar_lea.vmem %s15, 1
        %v1565 = vld [vmem:[%s1564] sm:$0x1]
        %s1566 = scalar_lea.vmem %s17, 32
        %v1567 = vld [vmem:[%s1566] sm:$0xff]
        %v1568 = vld [vmem:[%s1566 + $0x8] sm:$0xff]
        %v1569 = vld [vmem:[%s1566 + $0x10] sm:$0xff]
        %v1570 = vld [vmem:[%s1566 + $0x18] sm:$0xff]
        %s1571 = scalar_lea.vmem %s19, 1
        %v1572 = vld [vmem:[%s1571] sm:$0x1]
        %v1574 = vperm.slane %v1565, 0
        %v1577 = vsel %vm1090, %v1558, 0
        %1579 = vmatpush.msra.mxu0 0.0
        %1580 = vmatpush.msra.mxu0 0.0
        %1581 = vmatpush.msra.mxu0 0.0
        %1582 = vmatpush.msra.mxu0 0.0
        %1583 = vmatpush.msra.mxu0 0.0
        %1584 = vmatpush.msra.mxu0 0.0
        %1585 = vmatpush.msra.mxu0 0.0
        %1586 = vmatpush.msra.mxu0 0.0
        %1587 = vmatpush.msra.mxu0 0.0
        %1588 = vmatpush.msra.mxu0 0.0
        %1589 = vmatpush.msra.mxu0 0.0
        %1590 = vmatpush.msra.mxu0 0.0
        %1591 = vmatpush.msra.mxu0 %v1563
        %1592 = vmatpush.msra.mxu0 %v1562
        %1593 = vmatpush.msra.mxu0 %v1561
        %1594 = vmatpush.msra.mxu0 %v1560
        %1595 = vmatmul.f32.gmra.mxu0 %v1577
        %v1596 = vpop.f32.mrf.mxu0
        %v1597 = vadd.f32 %v1574, %v1596
        %1598 = vdwg.mxu0
        %1600 = vrot.lane.b32.xlu0 %v1597, 96
        %v1601 = vpop.permute.xlu0 %1600
        %v1602 = vsel %vm1117, %v1597, 0
        %v1604 = vsel %vm1117, %v1601, 0
        %1606 = vmatpush.xpose.msra.mxu0 0.0
        %1607 = vmatpush.xpose.msra.mxu0 0.0
        %1608 = vmatpush.xpose.msra.mxu0 0.0
        %1609 = vmatpush.xpose.msra.mxu0 0.0
        %1610 = vmatpush.xpose.msra.mxu0 0.0
        %1611 = vmatpush.xpose.msra.mxu0 0.0
        %1612 = vmatpush.xpose.msra.mxu0 0.0
        %1613 = vmatpush.xpose.msra.mxu0 0.0
        %1614 = vmatpush.xpose.msra.mxu0 0.0
        %1615 = vmatpush.xpose.msra.mxu0 0.0
        %1616 = vmatpush.xpose.msra.mxu0 0.0
        %1617 = vmatpush.xpose.msra.mxu0 0.0
        %1618 = vmatpush.xpose.msra.mxu0 0.0
        %1619 = vmatpush.xpose.msra.mxu0 0.0
        %1620 = vmatpush.xpose.msra.mxu0 0.0
        %1621 = vmatpush.xpose.msra.mxu0 %v1604
        %1622 = vmatmul.f32.gmra.mxu0 %v1602
        %v1623 = vpop.f32.mrf.mxu0
        %v1624 = vadd.f32 0.0, %v1623
        %1625 = vdwg.mxu0
        %v1626 = vmul.f32 %v1624, 0.35355338
        %v1627 = vsel %vm1145, %v1626, -1e+09
        %v1628 = vsel %vm1117, %v1627, -inf
        %1629 = vmax.xlane.f32.xlu0 %v1628
        %v1630 = vpop.xlane.xlu0 %1629
        %v1631 = vsub.f32 %v1627, %v1630
        %v1632 = vmul.f32 %v1631, 1.442695
        %v1633 = vpow.pop %v1632
        %v1634 = vsel %vm1117, %v1633, 0.0
        %1635 = vadd.xlane.f32.xlu0 %v1634
        %v1636 = vpop.xlane.xlu0 %1635
        %v1637 = vrcp.pop %v1636
        %v1638 = vmul.f32 %v1633, %v1637
        %1639 = vrot.lane.b32.xlu0 %v1597, 64
        %v1640 = vpop.permute.xlu0 %1639
        %v1643 = vsel %vm1117, %v1638, 0
        %1645 = vmatpush.msra.mxu0 0.0
        %1646 = vmatpush.msra.mxu0 0.0
        %1647 = vmatpush.msra.mxu0 0.0
        %1648 = vmatpush.msra.mxu0 0.0
        %1649 = vmatpush.msra.mxu0 0.0
        %1650 = vmatpush.msra.mxu0 0.0
        %1651 = vmatpush.msra.mxu0 0.0
        %1652 = vmatpush.msra.mxu0 0.0
        %1653 = vmatpush.msra.mxu0 0.0
        %1654 = vmatpush.msra.mxu0 0.0
        %1655 = vmatpush.msra.mxu0 0.0
        %1656 = vmatpush.msra.mxu0 0.0
        %1657 = vmatpush.msra.mxu0 0.0
        %1658 = vmatpush.msra.mxu0 0.0
        %1659 = vmatpush.msra.mxu0 0.0
        %1660 = vmatpush.msra.mxu0 %v1640
        %1661 = vmatmul.f32.gmra.mxu0 %v1643
        %v1662 = vpop.f32.mrf.mxu0
        %v1663 = vadd.f32 0.0, %v1662
        %1664 = vdwg.mxu0
        %1665 = vrot.lane.b32.xlu0 %v1597, 120
        %v1666 = vpop.permute.xlu0 %1665
        %1667 = vrot.lane.b32.xlu0 %v1597, 88
        %v1668 = vpop.permute.xlu0 %1667
        %v1669 = vsel %vm1117, %v1666, 0
        %v1671 = vsel %vm1117, %v1668, 0
        %1673 = vmatpush.xpose.msra.mxu0 0.0
        %1674 = vmatpush.xpose.msra.mxu0 0.0
        %1675 = vmatpush.xpose.msra.mxu0 0.0
        %1676 = vmatpush.xpose.msra.mxu0 0.0
        %1677 = vmatpush.xpose.msra.mxu0 0.0
        %1678 = vmatpush.xpose.msra.mxu0 0.0
        %1679 = vmatpush.xpose.msra.mxu0 0.0
        %1680 = vmatpush.xpose.msra.mxu0 0.0
        %1681 = vmatpush.xpose.msra.mxu0 0.0
        %1682 = vmatpush.xpose.msra.mxu0 0.0
        %1683 = vmatpush.xpose.msra.mxu0 0.0
        %1684 = vmatpush.xpose.msra.mxu0 0.0
        %1685 = vmatpush.xpose.msra.mxu0 0.0
        %1686 = vmatpush.xpose.msra.mxu0 0.0
        %1687 = vmatpush.xpose.msra.mxu0 0.0
        %1688 = vmatpush.xpose.msra.mxu0 %v1671
        %1689 = vmatmul.f32.gmra.mxu0 %v1669
        %v1690 = vpop.f32.mrf.mxu0
        %v1691 = vadd.f32 0.0, %v1690
        %1692 = vdwg.mxu0
        %v1693 = vmul.f32 %v1691, 0.35355338
        %v1694 = vsel %vm1145, %v1693, -1e+09
        %v1695 = vsel %vm1117, %v1694, -inf
        %1696 = vmax.xlane.f32.xlu0 %v1695
        %v1697 = vpop.xlane.xlu0 %1696
        %v1698 = vsub.f32 %v1694, %v1697
        %v1699 = vmul.f32 %v1698, 1.442695
        %v1700 = vpow.pop %v1699
        %v1701 = vsel %vm1117, %v1700, 0.0
        %1702 = vadd.xlane.f32.xlu0 %v1701
        %v1703 = vpop.xlane.xlu0 %1702
        %v1704 = vrcp.pop %v1703
        %v1705 = vmul.f32 %v1700, %v1704
        %1706 = vrot.lane.b32.xlu0 %v1597, 56
        %v1707 = vpop.permute.xlu0 %1706
        %v1710 = vsel %vm1117, %v1705, 0
        %1712 = vmatpush.msra.mxu0 0.0
        %1713 = vmatpush.msra.mxu0 0.0
        %1714 = vmatpush.msra.mxu0 0.0
        %1715 = vmatpush.msra.mxu0 0.0
        %1716 = vmatpush.msra.mxu0 0.0
        %1717 = vmatpush.msra.mxu0 0.0
        %1718 = vmatpush.msra.mxu0 0.0
        %1719 = vmatpush.msra.mxu0 0.0
        %1720 = vmatpush.msra.mxu0 0.0
        %1721 = vmatpush.msra.mxu0 0.0
        %1722 = vmatpush.msra.mxu0 0.0
        %1723 = vmatpush.msra.mxu0 0.0
        %1724 = vmatpush.msra.mxu0 0.0
        %1725 = vmatpush.msra.mxu0 0.0
        %1726 = vmatpush.msra.mxu0 0.0
        %1727 = vmatpush.msra.mxu0 %v1707
        %1728 = vmatmul.f32.gmra.mxu0 %v1710
        %v1729 = vpop.f32.mrf.mxu0
        %v1730 = vadd.f32 0.0, %v1729
        %1731 = vdwg.mxu0
        %1732 = vrot.lane.b32.xlu0 %v1597, 112
        %v1733 = vpop.permute.xlu0 %1732
        %1734 = vrot.lane.b32.xlu0 %v1597, 80
        %v1735 = vpop.permute.xlu0 %1734
        %v1736 = vsel %vm1117, %v1733, 0
        %v1738 = vsel %vm1117, %v1735, 0
        %1740 = vmatpush.xpose.msra.mxu0 0.0
        %1741 = vmatpush.xpose.msra.mxu0 0.0
        %1742 = vmatpush.xpose.msra.mxu0 0.0
        %1743 = vmatpush.xpose.msra.mxu0 0.0
        %1744 = vmatpush.xpose.msra.mxu0 0.0
        %1745 = vmatpush.xpose.msra.mxu0 0.0
        %1746 = vmatpush.xpose.msra.mxu0 0.0
        %1747 = vmatpush.xpose.msra.mxu0 0.0
        %1748 = vmatpush.xpose.msra.mxu0 0.0
        %1749 = vmatpush.xpose.msra.mxu0 0.0
        %1750 = vmatpush.xpose.msra.mxu0 0.0
        %1751 = vmatpush.xpose.msra.mxu0 0.0
        %1752 = vmatpush.xpose.msra.mxu0 0.0
        %1753 = vmatpush.xpose.msra.mxu0 0.0
        %1754 = vmatpush.xpose.msra.mxu0 0.0
        %1755 = vmatpush.xpose.msra.mxu0 %v1738
        %1756 = vmatmul.f32.gmra.mxu0 %v1736
        %v1757 = vpop.f32.mrf.mxu0
        %v1758 = vadd.f32 0.0, %v1757
        %1759 = vdwg.mxu0
        %v1760 = vmul.f32 %v1758, 0.35355338
        %v1761 = vsel %vm1145, %v1760, -1e+09
        %v1762 = vsel %vm1117, %v1761, -inf
        %1763 = vmax.xlane.f32.xlu0 %v1762
        %v1764 = vpop.xlane.xlu0 %1763
        %v1765 = vsub.f32 %v1761, %v1764
        %v1766 = vmul.f32 %v1765, 1.442695
        %v1767 = vpow.pop %v1766
        %v1768 = vsel %vm1117, %v1767, 0.0
        %1769 = vadd.xlane.f32.xlu0 %v1768
        %v1770 = vpop.xlane.xlu0 %1769
        %v1771 = vrcp.pop %v1770
        %v1772 = vmul.f32 %v1767, %v1771
        %1773 = vrot.lane.b32.xlu0 %v1597, 48
        %v1774 = vpop.permute.xlu0 %1773
        %v1777 = vsel %vm1117, %v1772, 0
        %1779 = vmatpush.msra.mxu0 0.0
        %1780 = vmatpush.msra.mxu0 0.0
        %1781 = vmatpush.msra.mxu0 0.0
        %1782 = vmatpush.msra.mxu0 0.0
        %1783 = vmatpush.msra.mxu0 0.0
        %1784 = vmatpush.msra.mxu0 0.0
        %1785 = vmatpush.msra.mxu0 0.0
        %1786 = vmatpush.msra.mxu0 0.0
        %1787 = vmatpush.msra.mxu0 0.0
        %1788 = vmatpush.msra.mxu0 0.0
        %1789 = vmatpush.msra.mxu0 0.0
        %1790 = vmatpush.msra.mxu0 0.0
        %1791 = vmatpush.msra.mxu0 0.0
        %1792 = vmatpush.msra.mxu0 0.0
        %1793 = vmatpush.msra.mxu0 0.0
        %1794 = vmatpush.msra.mxu0 %v1774
        %1795 = vmatmul.f32.gmra.mxu0 %v1777
        %v1796 = vpop.f32.mrf.mxu0
        %v1797 = vadd.f32 0.0, %v1796
        %1798 = vdwg.mxu0
        %1799 = vrot.lane.b32.xlu0 %v1597, 104
        %v1800 = vpop.permute.xlu0 %1799
        %1801 = vrot.lane.b32.xlu0 %v1597, 72
        %v1802 = vpop.permute.xlu0 %1801
        %v1803 = vsel %vm1117, %v1800, 0
        %v1805 = vsel %vm1117, %v1802, 0
        %1807 = vmatpush.xpose.msra.mxu0 0.0
        %1808 = vmatpush.xpose.msra.mxu0 0.0
        %1809 = vmatpush.xpose.msra.mxu0 0.0
        %1810 = vmatpush.xpose.msra.mxu0 0.0
        %1811 = vmatpush.xpose.msra.mxu0 0.0
        %1812 = vmatpush.xpose.msra.mxu0 0.0
        %1813 = vmatpush.xpose.msra.mxu0 0.0
        %1814 = vmatpush.xpose.msra.mxu0 0.0
        %1815 = vmatpush.xpose.msra.mxu0 0.0
        %1816 = vmatpush.xpose.msra.mxu0 0.0
        %1817 = vmatpush.xpose.msra.mxu0 0.0
        %1818 = vmatpush.xpose.msra.mxu0 0.0
        %1819 = vmatpush.xpose.msra.mxu0 0.0
        %1820 = vmatpush.xpose.msra.mxu0 0.0
        %1821 = vmatpush.xpose.msra.mxu0 0.0
        %1822 = vmatpush.xpose.msra.mxu0 %v1805
        %1823 = vmatmul.f32.gmra.mxu0 %v1803
        %v1824 = vpop.f32.mrf.mxu0
        %v1825 = vadd.f32 0.0, %v1824
        %1826 = vdwg.mxu0
        %v1827 = vmul.f32 %v1825, 0.35355338
        %v1828 = vsel %vm1145, %v1827, -1e+09
        %v1829 = vsel %vm1117, %v1828, -inf
        %1830 = vmax.xlane.f32.xlu0 %v1829
        %v1831 = vpop.xlane.xlu0 %1830
        %v1832 = vsub.f32 %v1828, %v1831
        %v1833 = vmul.f32 %v1832, 1.442695
        %v1834 = vpow.pop %v1833
        %v1835 = vsel %vm1117, %v1834, 0.0
        %1836 = vadd.xlane.f32.xlu0 %v1835
        %v1837 = vpop.xlane.xlu0 %1836
        %v1838 = vrcp.pop %v1837
        %v1839 = vmul.f32 %v1834, %v1838
        %1840 = vrot.lane.b32.xlu0 %v1597, 40
        %v1841 = vpop.permute.xlu0 %1840
        %v1844 = vsel %vm1117, %v1839, 0
        %1846 = vmatpush.msra.mxu0 0.0
        %1847 = vmatpush.msra.mxu0 0.0
        %1848 = vmatpush.msra.mxu0 0.0
        %1849 = vmatpush.msra.mxu0 0.0
        %1850 = vmatpush.msra.mxu0 0.0
        %1851 = vmatpush.msra.mxu0 0.0
        %1852 = vmatpush.msra.mxu0 0.0
        %1853 = vmatpush.msra.mxu0 0.0
        %1854 = vmatpush.msra.mxu0 0.0
        %1855 = vmatpush.msra.mxu0 0.0
        %1856 = vmatpush.msra.mxu0 0.0
        %1857 = vmatpush.msra.mxu0 0.0
        %1858 = vmatpush.msra.mxu0 0.0
        %1859 = vmatpush.msra.mxu0 0.0
        %1860 = vmatpush.msra.mxu0 0.0
        %1861 = vmatpush.msra.mxu0 %v1841
        %1862 = vmatmul.f32.gmra.mxu0 %v1844
        %v1863 = vpop.f32.mrf.mxu0
        %v1864 = vadd.f32 0.0, %v1863
        %1865 = vdwg.mxu0
        %1867 = vrot.lane.b32.xlu0 %v1730, 8
        %v1868 = vpop.permute.xlu0 %1867
        %1871 = vrot.lane.b32.xlu0 %v1797, 16
        %v1872 = vpop.permute.xlu0 %1871
        %1875 = vrot.lane.b32.xlu0 %v1864, 24
        %v1876 = vpop.permute.xlu0 %1875
        %v1878 = vsel %vm1117, %v1663, %v1868
        %v1879 = vsel %vm1398, %v1878, %v1872
        %v1880 = vsel %vm1400, %v1879, %v1876
        %v1882 = vperm.slane %v1572, 0
        %v1885 = vsel %vm1090, %v1880, 0
        %1887 = vmatpush.msra.mxu0 0.0
        %1888 = vmatpush.msra.mxu0 0.0
        %1889 = vmatpush.msra.mxu0 0.0
        %1890 = vmatpush.msra.mxu0 0.0
        %1891 = vmatpush.msra.mxu0 0.0
        %1892 = vmatpush.msra.mxu0 0.0
        %1893 = vmatpush.msra.mxu0 0.0
        %1894 = vmatpush.msra.mxu0 0.0
        %1895 = vmatpush.msra.mxu0 0.0
        %1896 = vmatpush.msra.mxu0 0.0
        %1897 = vmatpush.msra.mxu0 0.0
        %1898 = vmatpush.msra.mxu0 0.0
        %1899 = vmatpush.msra.mxu0 %v1570
        %1900 = vmatpush.msra.mxu0 %v1569
        %1901 = vmatpush.msra.mxu0 %v1568
        %1902 = vmatpush.msra.mxu0 %v1567
        %1903 = vmatmul.f32.gmra.mxu0 %v1885
        %v1904 = vpop.f32.mrf.mxu0
        %v1905 = vadd.f32 %v1882, %v1904
        %1906 = vdwg.mxu0
        %s1907 = scalar_lea.vmem %s21, 2
        %v1908 = vld [vmem:[%s1907] sm:$0x3]
        %v1909 = vadd.f32 %v1558, %v1905
        %v1910 = vsel %vm1090, %v1909, 0.0
        %1911 = vadd.xlane.f32.xlu0 %v1910
        %v1912 = vpop.xlane.xlu0 %1911
        %v1913 = vmul.f32 %v1912, %v1439
        %v1914 = vsub.f32 %v1909, %v1913
        %v1915 = vmul.f32 %v1914, %v1914
        %v1916 = vsel %vm1090, %v1915, 0.0
        %1917 = vadd.xlane.f32.xlu0 %v1916
        %v1918 = vpop.xlane.xlu0 %1917
        %v1919 = vmul.f32 %v1918, %v1439
        %v1920 = vadd.f32 %v1919, 1e-05
        %v1921 = vrsqrt.pop %v1920
        %v1922 = vmul.f32 %v1921, %v1920
        %v1923 = vmul.f32 %v1922, %v1921
        %v1924 = vmul.f32 0.5, %v1923
        %v1925 = vsub.f32 1.5, %v1924
        %v1926 = vmul.f32 %v1921, %v1925
        %vm1927 = vweird.f32 %v1920
        %vm1928 = vweird.f32 %v1921
        %vm1929 = vmor %vm1927, %vm1928
        %v1930 = vsel %vm1929, %v1921, %v1926
        %v1931 = vmul.f32 %v1914, %v1930
        %v1932 = vperm.slane %v1908, 0
        %v1933 = vmul.f32 %v1931, %v1932
        %v1934 = vperm.slane %v1908, 1
        %v1935 = vadd.f32 %v1933, %v1934
        %s1936 = scalar_lea.vmem %s23, 32
        %v1937 = vld [vmem:[%s1936] sm:$0xff]
        %v1938 = vld [vmem:[%s1936 + $0x8] sm:$0xff]
        %v1939 = vld [vmem:[%s1936 + $0x10] sm:$0xff]
        %v1940 = vld [vmem:[%s1936 + $0x18] sm:$0xff]
        %s1941 = scalar_lea.vmem %s25, 1
        %v1942 = vld [vmem:[%s1941] sm:$0x1]
        %s1943 = scalar_lea.vmem %s27, 64
        %v1944 = vld [vmem:[%s1943] sm:$0xff]
        %v1945 = vld [vmem:[%s1943 + $0x8] sm:$0xff]
        %v1946 = vld [vmem:[%s1943 + $0x10] sm:$0xff]
        %v1947 = vld [vmem:[%s1943 + $0x18] sm:$0xff]
        %v1948 = vld [vmem:[%s1943 + $0x20] sm:$0xff]
        %v1949 = vld [vmem:[%s1943 + $0x28] sm:$0xff]
        %v1950 = vld [vmem:[%s1943 + $0x30] sm:$0xff]
        %v1951 = vld [vmem:[%s1943 + $0x38] sm:$0xff]
        %s1952 = scalar_lea.vmem %s29, 1
        %v1953 = vld [vmem:[%s1952] sm:$0x1]
        %v1955 = vperm.slane %v1942, 0
        %v1958 = vsel %vm1090, %v1935, 0
        %1960 = vmatpush.msra.mxu0 0.0
        %1961 = vmatpush.msra.mxu0 0.0
        %1962 = vmatpush.msra.mxu0 0.0
        %1963 = vmatpush.msra.mxu0 0.0
        %1964 = vmatpush.msra.mxu0 0.0
        %1965 = vmatpush.msra.mxu0 0.0
        %1966 = vmatpush.msra.mxu0 0.0
        %1967 = vmatpush.msra.mxu0 0.0
        %1968 = vmatpush.msra.mxu0 0.0
        %1969 = vmatpush.msra.mxu0 0.0
        %1970 = vmatpush.msra.mxu0 0.0
        %1971 = vmatpush.msra.mxu0 0.0
        %1972 = vmatpush.msra.mxu0 %v1940
        %1973 = vmatpush.msra.mxu0 %v1939
        %1974 = vmatpush.msra.mxu0 %v1938
        %1975 = vmatpush.msra.mxu0 %v1937
        %1976 = vmatmul.f32.gmra.mxu0 %v1958
        %v1977 = vpop.f32.mrf.mxu0
        %v1978 = vadd.f32 %v1955, %v1977
        %1979 = vdwg.mxu0
        %v1980 = vmax.f32 %v1978, 0.0
        %v1982 = vperm.slane %v1953, 0
        %v1985 = vsel %vm1507, %v1980, 0
        %1987 = vmatpush.msra.mxu0 0.0
        %1988 = vmatpush.msra.mxu0 0.0
        %1989 = vmatpush.msra.mxu0 0.0
        %1990 = vmatpush.msra.mxu0 0.0
        %1991 = vmatpush.msra.mxu0 0.0
        %1992 = vmatpush.msra.mxu0 0.0
        %1993 = vmatpush.msra.mxu0 0.0
        %1994 = vmatpush.msra.mxu0 0.0
        %1995 = vmatpush.msra.mxu0 %v1951
        %1996 = vmatpush.msra.mxu0 %v1950
        %1997 = vmatpush.msra.mxu0 %v1949
        %1998 = vmatpush.msra.mxu0 %v1948
        %1999 = vmatpush.msra.mxu0 %v1947
        %2000 = vmatpush.msra.mxu0 %v1946
        %2001 = vmatpush.msra.mxu0 %v1945
        %2002 = vmatpush.msra.mxu0 %v1944
        %2003 = vmatmul.f32.gmra.mxu0 %v1985
        %v2004 = vpop.f32.mrf.mxu0
        %v2005 = vadd.f32 %v1982, %v2004
        %2006 = vdwg.mxu0
        %s2007 = scalar_lea.vmem %s31, 2
        %v2008 = vld [vmem:[%s2007] sm:$0x3]
        %v2009 = vadd.f32 %v1935, %v2005
        %v2010 = vsel %vm1090, %v2009, 0.0
        %2011 = vadd.xlane.f32.xlu0 %v2010
        %v2012 = vpop.xlane.xlu0 %2011
        %v2013 = vmul.f32 %v2012, %v1439
        %v2014 = vsub.f32 %v2009, %v2013
        %v2015 = vmul.f32 %v2014, %v2014
        %v2016 = vsel %vm1090, %v2015, 0.0
        %2017 = vadd.xlane.f32.xlu0 %v2016
        %v2018 = vpop.xlane.xlu0 %2017
        %v2019 = vmul.f32 %v2018, %v1439
        %v2020 = vadd.f32 %v2019, 1e-05
        %v2021 = vrsqrt.pop %v2020
        %v2022 = vmul.f32 %v2021, %v2020
        %v2023 = vmul.f32 %v2022, %v2021
        %v2024 = vmul.f32 0.5, %v2023
        %v2025 = vsub.f32 1.5, %v2024
        %v2026 = vmul.f32 %v2021, %v2025
        %vm2027 = vweird.f32 %v2020
        %vm2028 = vweird.f32 %v2021
        %vm2029 = vmor %vm2027, %vm2028
        %v2030 = vsel %vm2029, %v2021, %v2026
        %v2031 = vmul.f32 %v2014, %v2030
        %v2032 = vperm.slane %v2008, 0
        %v2033 = vmul.f32 %v2031, %v2032
        %v2034 = vperm.slane %v2008, 1
        %v2035 = vadd.f32 %v2033, %v2034
        %v2036 = vld [vmem:[%s1050] sm:$0xff]
        %v2037 = vmul.f32 %v2036, 5.656854
        %v2038 = vld [vmem:[%s7] sm:$0xff]
        %v2039 = vadd.f32 %v2037, %v2038
        %v2040 = vld [vmem:[%s33] sm:$0xff]
        %v2041 = vld [vmem:[%s33 + $0x8] sm:$0xff]
        %v2042 = vld [vmem:[%s33 + $0x10] sm:$0xff]
        %v2043 = vld [vmem:[%s33 + $0x18] sm:$0xff]
        %v2044 = vld [vmem:[%s35] sm:$0x1]
        %v2045 = vld [vmem:[%s37] sm:$0xff]
        %v2046 = vld [vmem:[%s37 + $0x8] sm:$0xff]
        %v2047 = vld [vmem:[%s37 + $0x10] sm:$0xff]
        %v2048 = vld [vmem:[%s37 + $0x18] sm:$0xff]
        %v2049 = vld [vmem:[%s39] sm:$0x1]
        %v2051 = vperm.slane %v2044, 0
        %v2054 = vsel %vm1090, %v2039, 0
        %2056 = vmatpush.msra.mxu0 0.0
        %2057 = vmatpush.msra.mxu0 0.0
        %2058 = vmatpush.msra.mxu0 0.0
        %2059 = vmatpush.msra.mxu0 0.0
        %2060 = vmatpush.msra.mxu0 0.0
        %2061 = vmatpush.msra.mxu0 0.0
        %2062 = vmatpush.msra.mxu0 0.0
        %2063 = vmatpush.msra.mxu0 0.0
        %2064 = vmatpush.msra.mxu0 0.0
        %2065 = vmatpush.msra.mxu0 0.0
        %2066 = vmatpush.msra.mxu0 0.0
        %2067 = vmatpush.msra.mxu0 0.0
        %2068 = vmatpush.msra.mxu0 %v2043
        %2069 = vmatpush.msra.mxu0 %v2042
        %2070 = vmatpush.msra.mxu0 %v2041
        %2071 = vmatpush.msra.mxu0 %v2040
        %2072 = vmatmul.f32.gmra.mxu0 %v2054
        %v2073 = vpop.f32.mrf.mxu0
        %v2074 = vadd.f32 %v2051, %v2073
        %2075 = vdwg.mxu0
        %2077 = vrot.lane.b32.xlu0 %v2074, 96
        %v2078 = vpop.permute.xlu0 %2077
        %v2079 = vsel %vm1117, %v2074, 0
        %v2081 = vsel %vm1117, %v2078, 0
        %2083 = vmatpush.xpose.msra.mxu0 0.0
        %2084 = vmatpush.xpose.msra.mxu0 0.0
        %2085 = vmatpush.xpose.msra.mxu0 0.0
        %2086 = vmatpush.xpose.msra.mxu0 0.0
        %2087 = vmatpush.xpose.msra.mxu0 0.0
        %2088 = vmatpush.xpose.msra.mxu0 0.0
        %2089 = vmatpush.xpose.msra.mxu0 0.0
        %2090 = vmatpush.xpose.msra.mxu0 0.0
        %2091 = vmatpush.xpose.msra.mxu0 0.0
        %2092 = vmatpush.xpose.msra.mxu0 0.0
        %2093 = vmatpush.xpose.msra.mxu0 0.0
        %2094 = vmatpush.xpose.msra.mxu0 0.0
        %2095 = vmatpush.xpose.msra.mxu0 0.0
        %2096 = vmatpush.xpose.msra.mxu0 0.0
        %2097 = vmatpush.xpose.msra.mxu0 0.0
        %2098 = vmatpush.xpose.msra.mxu0 %v2081
        %2099 = vmatmul.f32.gmra.mxu0 %v2079
        %v2100 = vpop.f32.mrf.mxu0
        %v2101 = vadd.f32 0.0, %v2100
        %2102 = vdwg.mxu0
        %v2103 = vmul.f32 %v2101, 0.35355338
        %v2104 = vsel %vm1072, %v2103, -1e+09
        %v2105 = vsel %vm1117, %v2104, -inf
        %2106 = vmax.xlane.f32.xlu0 %v2105
        %v2107 = vpop.xlane.xlu0 %2106
        %v2108 = vsub.f32 %v2104, %v2107
        %v2109 = vmul.f32 %v2108, 1.442695
        %v2110 = vpow.pop %v2109
        %v2111 = vsel %vm1117, %v2110, 0.0
        %2112 = vadd.xlane.f32.xlu0 %v2111
        %v2113 = vpop.xlane.xlu0 %2112
        %v2114 = vrcp.pop %v2113
        %v2115 = vmul.f32 %v2110, %v2114
        %2116 = vrot.lane.b32.xlu0 %v2074, 64
        %v2117 = vpop.permute.xlu0 %2116
        %v2120 = vsel %vm1117, %v2115, 0
        %2122 = vmatpush.msra.mxu0 0.0
        %2123 = vmatpush.msra.mxu0 0.0
        %2124 = vmatpush.msra.mxu0 0.0
        %2125 = vmatpush.msra.mxu0 0.0
        %2126 = vmatpush.msra.mxu0 0.0
        %2127 = vmatpush.msra.mxu0 0.0
        %2128 = vmatpush.msra.mxu0 0.0
        %2129 = vmatpush.msra.mxu0 0.0
        %2130 = vmatpush.msra.mxu0 0.0
        %2131 = vmatpush.msra.mxu0 0.0
        %2132 = vmatpush.msra.mxu0 0.0
        %2133 = vmatpush.msra.mxu0 0.0
        %2134 = vmatpush.msra.mxu0 0.0
        %2135 = vmatpush.msra.mxu0 0.0
        %2136 = vmatpush.msra.mxu0 0.0
        %2137 = vmatpush.msra.mxu0 %v2117
        %2138 = vmatmul.f32.gmra.mxu0 %v2120
        %v2139 = vpop.f32.mrf.mxu0
        %v2140 = vadd.f32 0.0, %v2139
        %2141 = vdwg.mxu0
        %2142 = vrot.lane.b32.xlu0 %v2074, 120
        %v2143 = vpop.permute.xlu0 %2142
        %2144 = vrot.lane.b32.xlu0 %v2074, 88
        %v2145 = vpop.permute.xlu0 %2144
        %v2146 = vsel %vm1117, %v2143, 0
        %v2148 = vsel %vm1117, %v2145, 0
        %2150 = vmatpush.xpose.msra.mxu0 0.0
        %2151 = vmatpush.xpose.msra.mxu0 0.0
        %2152 = vmatpush.xpose.msra.mxu0 0.0
        %2153 = vmatpush.xpose.msra.mxu0 0.0
        %2154 = vmatpush.xpose.msra.mxu0 0.0
        %2155 = vmatpush.xpose.msra.mxu0 0.0
        %2156 = vmatpush.xpose.msra.mxu0 0.0
        %2157 = vmatpush.xpose.msra.mxu0 0.0
        %2158 = vmatpush.xpose.msra.mxu0 0.0
        %2159 = vmatpush.xpose.msra.mxu0 0.0
        %2160 = vmatpush.xpose.msra.mxu0 0.0
        %2161 = vmatpush.xpose.msra.mxu0 0.0
        %2162 = vmatpush.xpose.msra.mxu0 0.0
        %2163 = vmatpush.xpose.msra.mxu0 0.0
        %2164 = vmatpush.xpose.msra.mxu0 0.0
        %2165 = vmatpush.xpose.msra.mxu0 %v2148
        %2166 = vmatmul.f32.gmra.mxu0 %v2146
        %v2167 = vpop.f32.mrf.mxu0
        %v2168 = vadd.f32 0.0, %v2167
        %2169 = vdwg.mxu0
        %v2170 = vmul.f32 %v2168, 0.35355338
        %v2171 = vsel %vm1072, %v2170, -1e+09
        %v2172 = vsel %vm1117, %v2171, -inf
        %2173 = vmax.xlane.f32.xlu0 %v2172
        %v2174 = vpop.xlane.xlu0 %2173
        %v2175 = vsub.f32 %v2171, %v2174
        %v2176 = vmul.f32 %v2175, 1.442695
        %v2177 = vpow.pop %v2176
        %v2178 = vsel %vm1117, %v2177, 0.0
        %2179 = vadd.xlane.f32.xlu0 %v2178
        %v2180 = vpop.xlane.xlu0 %2179
        %v2181 = vrcp.pop %v2180
        %v2182 = vmul.f32 %v2177, %v2181
        %2183 = vrot.lane.b32.xlu0 %v2074, 56
        %v2184 = vpop.permute.xlu0 %2183
        %v2187 = vsel %vm1117, %v2182, 0
        %2189 = vmatpush.msra.mxu0 0.0
        %2190 = vmatpush.msra.mxu0 0.0
        %2191 = vmatpush.msra.mxu0 0.0
        %2192 = vmatpush.msra.mxu0 0.0
        %2193 = vmatpush.msra.mxu0 0.0
        %2194 = vmatpush.msra.mxu0 0.0
        %2195 = vmatpush.msra.mxu0 0.0
        %2196 = vmatpush.msra.mxu0 0.0
        %2197 = vmatpush.msra.mxu0 0.0
        %2198 = vmatpush.msra.mxu0 0.0
        %2199 = vmatpush.msra.mxu0 0.0
        %2200 = vmatpush.msra.mxu0 0.0
        %2201 = vmatpush.msra.mxu0 0.0
        %2202 = vmatpush.msra.mxu0 0.0
        %2203 = vmatpush.msra.mxu0 0.0
        %2204 = vmatpush.msra.mxu0 %v2184
        %2205 = vmatmul.f32.gmra.mxu0 %v2187
        %v2206 = vpop.f32.mrf.mxu0
        %v2207 = vadd.f32 0.0, %v2206
        %2208 = vdwg.mxu0
        %2209 = vrot.lane.b32.xlu0 %v2074, 112
        %v2210 = vpop.permute.xlu0 %2209
        %2211 = vrot.lane.b32.xlu0 %v2074, 80
        %v2212 = vpop.permute.xlu0 %2211
        %v2213 = vsel %vm1117, %v2210, 0
        %v2215 = vsel %vm1117, %v2212, 0
        %2217 = vmatpush.xpose.msra.mxu0 0.0
        %2218 = vmatpush.xpose.msra.mxu0 0.0
        %2219 = vmatpush.xpose.msra.mxu0 0.0
        %2220 = vmatpush.xpose.msra.mxu0 0.0
        %2221 = vmatpush.xpose.msra.mxu0 0.0
        %2222 = vmatpush.xpose.msra.mxu0 0.0
        %2223 = vmatpush.xpose.msra.mxu0 0.0
        %2224 = vmatpush.xpose.msra.mxu0 0.0
        %2225 = vmatpush.xpose.msra.mxu0 0.0
        %2226 = vmatpush.xpose.msra.mxu0 0.0
        %2227 = vmatpush.xpose.msra.mxu0 0.0
        %2228 = vmatpush.xpose.msra.mxu0 0.0
        %2229 = vmatpush.xpose.msra.mxu0 0.0
        %2230 = vmatpush.xpose.msra.mxu0 0.0
        %2231 = vmatpush.xpose.msra.mxu0 0.0
        %2232 = vmatpush.xpose.msra.mxu0 %v2215
        %2233 = vmatmul.f32.gmra.mxu0 %v2213
        %v2234 = vpop.f32.mrf.mxu0
        %v2235 = vadd.f32 0.0, %v2234
        %2236 = vdwg.mxu0
        %v2237 = vmul.f32 %v2235, 0.35355338
        %v2238 = vsel %vm1072, %v2237, -1e+09
        %v2239 = vsel %vm1117, %v2238, -inf
        %2240 = vmax.xlane.f32.xlu0 %v2239
        %v2241 = vpop.xlane.xlu0 %2240
        %v2242 = vsub.f32 %v2238, %v2241
        %v2243 = vmul.f32 %v2242, 1.442695
        %v2244 = vpow.pop %v2243
        %v2245 = vsel %vm1117, %v2244, 0.0
        %2246 = vadd.xlane.f32.xlu0 %v2245
        %v2247 = vpop.xlane.xlu0 %2246
        %v2248 = vrcp.pop %v2247
        %v2249 = vmul.f32 %v2244, %v2248
        %2250 = vrot.lane.b32.xlu0 %v2074, 48
        %v2251 = vpop.permute.xlu0 %2250
        %v2254 = vsel %vm1117, %v2249, 0
        %2256 = vmatpush.msra.mxu0 0.0
        %2257 = vmatpush.msra.mxu0 0.0
        %2258 = vmatpush.msra.mxu0 0.0
        %2259 = vmatpush.msra.mxu0 0.0
        %2260 = vmatpush.msra.mxu0 0.0
        %2261 = vmatpush.msra.mxu0 0.0
        %2262 = vmatpush.msra.mxu0 0.0
        %2263 = vmatpush.msra.mxu0 0.0
        %2264 = vmatpush.msra.mxu0 0.0
        %2265 = vmatpush.msra.mxu0 0.0
        %2266 = vmatpush.msra.mxu0 0.0
        %2267 = vmatpush.msra.mxu0 0.0
        %2268 = vmatpush.msra.mxu0 0.0
        %2269 = vmatpush.msra.mxu0 0.0
        %2270 = vmatpush.msra.mxu0 0.0
        %2271 = vmatpush.msra.mxu0 %v2251
        %2272 = vmatmul.f32.gmra.mxu0 %v2254
        %v2273 = vpop.f32.mrf.mxu0
        %v2274 = vadd.f32 0.0, %v2273
        %2275 = vdwg.mxu0
        %2276 = vrot.lane.b32.xlu0 %v2074, 104
        %v2277 = vpop.permute.xlu0 %2276
        %2278 = vrot.lane.b32.xlu0 %v2074, 72
        %v2279 = vpop.permute.xlu0 %2278
        %v2280 = vsel %vm1117, %v2277, 0
        %v2282 = vsel %vm1117, %v2279, 0
        %2284 = vmatpush.xpose.msra.mxu0 0.0
        %2285 = vmatpush.xpose.msra.mxu0 0.0
        %2286 = vmatpush.xpose.msra.mxu0 0.0
        %2287 = vmatpush.xpose.msra.mxu0 0.0
        %2288 = vmatpush.xpose.msra.mxu0 0.0
        %2289 = vmatpush.xpose.msra.mxu0 0.0
        %2290 = vmatpush.xpose.msra.mxu0 0.0
        %2291 = vmatpush.xpose.msra.mxu0 0.0
        %2292 = vmatpush.xpose.msra.mxu0 0.0
        %2293 = vmatpush.xpose.msra.mxu0 0.0
        %2294 = vmatpush.xpose.msra.mxu0 0.0
        %2295 = vmatpush.xpose.msra.mxu0 0.0
        %2296 = vmatpush.xpose.msra.mxu0 0.0
        %2297 = vmatpush.xpose.msra.mxu0 0.0
        %2298 = vmatpush.xpose.msra.mxu0 0.0
        %2299 = vmatpush.xpose.msra.mxu0 %v2282
        %2300 = vmatmul.f32.gmra.mxu0 %v2280
        %v2301 = vpop.f32.mrf.mxu0
        %v2302 = vadd.f32 0.0, %v2301
        %2303 = vdwg.mxu0
        %v2304 = vmul.f32 %v2302, 0.35355338
        %v2305 = vsel %vm1072, %v2304, -1e+09
        %v2306 = vsel %vm1117, %v2305, -inf
        %2307 = vmax.xlane.f32.xlu0 %v2306
        %v2308 = vpop.xlane.xlu0 %2307
        %v2309 = vsub.f32 %v2305, %v2308
        %v2310 = vmul.f32 %v2309, 1.442695
        %v2311 = vpow.pop %v2310
        %v2312 = vsel %vm1117, %v2311, 0.0
        %2313 = vadd.xlane.f32.xlu0 %v2312
        %v2314 = vpop.xlane.xlu0 %2313
        %v2315 = vrcp.pop %v2314
        %v2316 = vmul.f32 %v2311, %v2315
        %2317 = vrot.lane.b32.xlu0 %v2074, 40
        %v2318 = vpop.permute.xlu0 %2317
        %v2321 = vsel %vm1117, %v2316, 0
        %2323 = vmatpush.msra.mxu0 0.0
        %2324 = vmatpush.msra.mxu0 0.0
        %2325 = vmatpush.msra.mxu0 0.0
        %2326 = vmatpush.msra.mxu0 0.0
        %2327 = vmatpush.msra.mxu0 0.0
        %2328 = vmatpush.msra.mxu0 0.0
        %2329 = vmatpush.msra.mxu0 0.0
        %2330 = vmatpush.msra.mxu0 0.0
        %2331 = vmatpush.msra.mxu0 0.0
        %2332 = vmatpush.msra.mxu0 0.0
        %2333 = vmatpush.msra.mxu0 0.0
        %2334 = vmatpush.msra.mxu0 0.0
        %2335 = vmatpush.msra.mxu0 0.0
        %2336 = vmatpush.msra.mxu0 0.0
        %2337 = vmatpush.msra.mxu0 0.0
        %2338 = vmatpush.msra.mxu0 %v2318
        %2339 = vmatmul.f32.gmra.mxu0 %v2321
        %v2340 = vpop.f32.mrf.mxu0
        %v2341 = vadd.f32 0.0, %v2340
        %2342 = vdwg.mxu0
        %2344 = vrot.lane.b32.xlu0 %v2207, 8
        %v2345 = vpop.permute.xlu0 %2344
        %2348 = vrot.lane.b32.xlu0 %v2274, 16
        %v2349 = vpop.permute.xlu0 %2348
        %2352 = vrot.lane.b32.xlu0 %v2341, 24
        %v2353 = vpop.permute.xlu0 %2352
        %v2355 = vsel %vm1117, %v2140, %v2345
        %v2356 = vsel %vm1398, %v2355, %v2349
        %v2357 = vsel %vm1400, %v2356, %v2353
        %v2359 = vperm.slane %v2049, 0
        %v2362 = vsel %vm1090, %v2357, 0
        %2364 = vmatpush.msra.mxu0 0.0
        %2365 = vmatpush.msra.mxu0 0.0
        %2366 = vmatpush.msra.mxu0 0.0
        %2367 = vmatpush.msra.mxu0 0.0
        %2368 = vmatpush.msra.mxu0 0.0
        %2369 = vmatpush.msra.mxu0 0.0
        %2370 = vmatpush.msra.mxu0 0.0
        %2371 = vmatpush.msra.mxu0 0.0
        %2372 = vmatpush.msra.mxu0 0.0
        %2373 = vmatpush.msra.mxu0 0.0
        %2374 = vmatpush.msra.mxu0 0.0
        %2375 = vmatpush.msra.mxu0 0.0
        %2376 = vmatpush.msra.mxu0 %v2048
        %2377 = vmatpush.msra.mxu0 %v2047
        %2378 = vmatpush.msra.mxu0 %v2046
        %2379 = vmatpush.msra.mxu0 %v2045
        %2380 = vmatmul.f32.gmra.mxu0 %v2362
        %v2381 = vpop.f32.mrf.mxu0
        %v2382 = vadd.f32 %v2359, %v2381
        %2383 = vdwg.mxu0
        %v2384 = vld [vmem:[%s41] sm:$0x3]
        %v2385 = vadd.f32 %v2039, %v2382
        %v2386 = vsel %vm1090, %v2385, 0.0
        %2387 = vadd.xlane.f32.xlu0 %v2386
        %v2388 = vpop.xlane.xlu0 %2387
        %v2389 = vmul.f32 %v2388, %v1439
        %v2390 = vsub.f32 %v2385, %v2389
        %v2391 = vmul.f32 %v2390, %v2390
        %v2392 = vsel %vm1090, %v2391, 0.0
        %2393 = vadd.xlane.f32.xlu0 %v2392
        %v2394 = vpop.xlane.xlu0 %2393
        %v2395 = vmul.f32 %v2394, %v1439
        %v2396 = vadd.f32 %v2395, 1e-05
        %v2397 = vrsqrt.pop %v2396
        %v2398 = vmul.f32 %v2397, %v2396
        %v2399 = vmul.f32 %v2398, %v2397
        %v2400 = vmul.f32 0.5, %v2399
        %v2401 = vsub.f32 1.5, %v2400
        %v2402 = vmul.f32 %v2397, %v2401
        %vm2403 = vweird.f32 %v2396
        %vm2404 = vweird.f32 %v2397
        %vm2405 = vmor %vm2403, %vm2404
        %v2406 = vsel %vm2405, %v2397, %v2402
        %v2407 = vmul.f32 %v2390, %v2406
        %v2408 = vperm.slane %v2384, 0
        %v2409 = vmul.f32 %v2407, %v2408
        %v2410 = vperm.slane %v2384, 1
        %v2411 = vadd.f32 %v2409, %v2410
        %v2412 = vld [vmem:[%s43] sm:$0xff]
        %v2413 = vld [vmem:[%s43 + $0x8] sm:$0xff]
        %v2414 = vld [vmem:[%s43 + $0x10] sm:$0xff]
        %v2415 = vld [vmem:[%s43 + $0x18] sm:$0xff]
        %v2416 = vld [vmem:[%s45] sm:$0x1]
        %v2417 = vld [vmem:[%s47] sm:$0xff]
        %v2418 = vld [vmem:[%s47 + $0x8] sm:$0xff]
        %v2419 = vld [vmem:[%s47 + $0x10] sm:$0xff]
        %v2420 = vld [vmem:[%s47 + $0x18] sm:$0xff]
        %v2421 = vld [vmem:[%s49] sm:$0x1]
        %v2423 = vperm.slane %v2416, 0
        %v2426 = vsel %vm1090, %v2411, 0
        %2428 = vmatpush.msra.mxu0 0.0
        %2429 = vmatpush.msra.mxu0 0.0
        %2430 = vmatpush.msra.mxu0 0.0
        %2431 = vmatpush.msra.mxu0 0.0
        %2432 = vmatpush.msra.mxu0 0.0
        %2433 = vmatpush.msra.mxu0 0.0
        %2434 = vmatpush.msra.mxu0 0.0
        %2435 = vmatpush.msra.mxu0 0.0
        %2436 = vmatpush.msra.mxu0 0.0
        %2437 = vmatpush.msra.mxu0 0.0
        %2438 = vmatpush.msra.mxu0 0.0
        %2439 = vmatpush.msra.mxu0 0.0
        %2440 = vmatpush.msra.mxu0 %v2415
        %2441 = vmatpush.msra.mxu0 %v2414
        %2442 = vmatpush.msra.mxu0 %v2413
        %2443 = vmatpush.msra.mxu0 %v2412
        %2444 = vmatmul.f32.gmra.mxu0 %v2426
        %v2445 = vpop.f32.mrf.mxu0
        %v2446 = vadd.f32 %v2423, %v2445
        %2447 = vdwg.mxu0
        %2452 = vrot.lane.b32.xlu0 %v2412, 96
        %v2453 = vpop.permute.xlu0 %2452
        %2454 = vrot.lane.b32.xlu0 %v2413, 96
        %v2455 = vpop.permute.xlu0 %2454
        %2456 = vrot.lane.b32.xlu0 %v2414, 96
        %v2457 = vpop.permute.xlu0 %2456
        %2458 = vrot.lane.b32.xlu0 %v2415, 96
        %v2459 = vpop.permute.xlu0 %2458
        %2464 = vrot.lane.b32.xlu0 %v2423, 96
        %v2465 = vpop.permute.xlu0 %2464
        %v2468 = vsel %vm1090, %v2035, 0
        %2470 = vmatpush.msra.mxu0 0.0
        %2471 = vmatpush.msra.mxu0 0.0
        %2472 = vmatpush.msra.mxu0 0.0
        %2473 = vmatpush.msra.mxu0 0.0
        %2474 = vmatpush.msra.mxu0 0.0
        %2475 = vmatpush.msra.mxu0 0.0
        %2476 = vmatpush.msra.mxu0 0.0
        %2477 = vmatpush.msra.mxu0 0.0
        %2478 = vmatpush.msra.mxu0 0.0
        %2479 = vmatpush.msra.mxu0 0.0
        %2480 = vmatpush.msra.mxu0 0.0
        %2481 = vmatpush.msra.mxu0 0.0
        %2482 = vmatpush.msra.mxu0 %v2459
        %2483 = vmatpush.msra.mxu0 %v2457
        %2484 = vmatpush.msra.mxu0 %v2455
        %2485 = vmatpush.msra.mxu0 %v2453
        %2486 = vmatmul.f32.gmra.mxu0 %v2468
        %v2487 = vpop.f32.mrf.mxu0
        %v2488 = vadd.f32 %v2465, %v2487
        %2489 = vdwg.mxu0
        %v2491 = vsel %vm1117, %v2446, 0
        %v2494 = vsel %vm1117, %v2488, 0
        %2496 = vmatpush.xpose.msra.mxu0 0.0
        %2497 = vmatpush.xpose.msra.mxu0 0.0
        %2498 = vmatpush.xpose.msra.mxu0 0.0
        %2499 = vmatpush.xpose.msra.mxu0 0.0
        %2500 = vmatpush.xpose.msra.mxu0 0.0
        %2501 = vmatpush.xpose.msra.mxu0 0.0
        %2502 = vmatpush.xpose.msra.mxu0 0.0
        %2503 = vmatpush.xpose.msra.mxu0 0.0
        %2504 = vmatpush.xpose.msra.mxu0 0.0
        %2505 = vmatpush.xpose.msra.mxu0 0.0
        %2506 = vmatpush.xpose.msra.mxu0 0.0
        %2507 = vmatpush.xpose.msra.mxu0 0.0
        %2508 = vmatpush.xpose.msra.mxu0 0.0
        %2509 = vmatpush.xpose.msra.mxu0 0.0
        %2510 = vmatpush.xpose.msra.mxu0 0.0
        %2511 = vmatpush.xpose.msra.mxu0 %v2494
        %2512 = vmatmul.f32.gmra.mxu0 %v2491
        %v2513 = vpop.f32.mrf.mxu0
        %v2514 = vadd.f32 0.0, %v2513
        %2515 = vdwg.mxu0
        %v2516 = vmul.f32 %v2514, 0.35355338
        %v2517 = vsel %vm1145, %v2516, -1e+09
        %v2518 = vsel %vm1117, %v2517, -inf
        %2519 = vmax.xlane.f32.xlu0 %v2518
        %v2520 = vpop.xlane.xlu0 %2519
        %v2521 = vsub.f32 %v2517, %v2520
        %v2522 = vmul.f32 %v2521, 1.442695
        %v2523 = vpow.pop %v2522
        %v2524 = vsel %vm1117, %v2523, 0.0
        %2525 = vadd.xlane.f32.xlu0 %v2524
        %v2526 = vpop.xlane.xlu0 %2525
        %v2527 = vrcp.pop %v2526
        %v2528 = vmul.f32 %v2523, %v2527
        %2529 = vrot.lane.b32.xlu0 %v2488, 96
        %v2530 = vpop.permute.xlu0 %2529
        %v2533 = vsel %vm1117, %v2528, 0
        %2535 = vmatpush.msra.mxu0 0.0
        %2536 = vmatpush.msra.mxu0 0.0
        %2537 = vmatpush.msra.mxu0 0.0
        %2538 = vmatpush.msra.mxu0 0.0
        %2539 = vmatpush.msra.mxu0 0.0
        %2540 = vmatpush.msra.mxu0 0.0
        %2541 = vmatpush.msra.mxu0 0.0
        %2542 = vmatpush.msra.mxu0 0.0
        %2543 = vmatpush.msra.mxu0 0.0
        %2544 = vmatpush.msra.mxu0 0.0
        %2545 = vmatpush.msra.mxu0 0.0
        %2546 = vmatpush.msra.mxu0 0.0
        %2547 = vmatpush.msra.mxu0 0.0
        %2548 = vmatpush.msra.mxu0 0.0
        %2549 = vmatpush.msra.mxu0 0.0
        %2550 = vmatpush.msra.mxu0 %v2530
        %2551 = vmatmul.f32.gmra.mxu0 %v2533
        %v2552 = vpop.f32.mrf.mxu0
        %v2553 = vadd.f32 0.0, %v2552
        %2554 = vdwg.mxu0
        %2555 = vrot.lane.b32.xlu0 %v2446, 120
        %v2556 = vpop.permute.xlu0 %2555
        %2557 = vrot.lane.b32.xlu0 %v2488, 120
        %v2558 = vpop.permute.xlu0 %2557
        %v2559 = vsel %vm1117, %v2556, 0
        %v2561 = vsel %vm1117, %v2558, 0
        %2563 = vmatpush.xpose.msra.mxu0 0.0
        %2564 = vmatpush.xpose.msra.mxu0 0.0
        %2565 = vmatpush.xpose.msra.mxu0 0.0
        %2566 = vmatpush.xpose.msra.mxu0 0.0
        %2567 = vmatpush.xpose.msra.mxu0 0.0
        %2568 = vmatpush.xpose.msra.mxu0 0.0
        %2569 = vmatpush.xpose.msra.mxu0 0.0
        %2570 = vmatpush.xpose.msra.mxu0 0.0
        %2571 = vmatpush.xpose.msra.mxu0 0.0
        %2572 = vmatpush.xpose.msra.mxu0 0.0
        %2573 = vmatpush.xpose.msra.mxu0 0.0
        %2574 = vmatpush.xpose.msra.mxu0 0.0
        %2575 = vmatpush.xpose.msra.mxu0 0.0
        %2576 = vmatpush.xpose.msra.mxu0 0.0
        %2577 = vmatpush.xpose.msra.mxu0 0.0
        %2578 = vmatpush.xpose.msra.mxu0 %v2561
        %2579 = vmatmul.f32.gmra.mxu0 %v2559
        %v2580 = vpop.f32.mrf.mxu0
        %v2581 = vadd.f32 0.0, %v2580
        %2582 = vdwg.mxu0
        %v2583 = vmul.f32 %v2581, 0.35355338
        %v2584 = vsel %vm1145, %v2583, -1e+09
        %v2585 = vsel %vm1117, %v2584, -inf
        %2586 = vmax.xlane.f32.xlu0 %v2585
        %v2587 = vpop.xlane.xlu0 %2586
        %v2588 = vsub.f32 %v2584, %v2587
        %v2589 = vmul.f32 %v2588, 1.442695
        %v2590 = vpow.pop %v2589
        %v2591 = vsel %vm1117, %v2590, 0.0
        %2592 = vadd.xlane.f32.xlu0 %v2591
        %v2593 = vpop.xlane.xlu0 %2592
        %v2594 = vrcp.pop %v2593
        %v2595 = vmul.f32 %v2590, %v2594
        %2596 = vrot.lane.b32.xlu0 %v2488, 88
        %v2597 = vpop.permute.xlu0 %2596
        %v2600 = vsel %vm1117, %v2595, 0
        %2602 = vmatpush.msra.mxu0 0.0
        %2603 = vmatpush.msra.mxu0 0.0
        %2604 = vmatpush.msra.mxu0 0.0
        %2605 = vmatpush.msra.mxu0 0.0
        %2606 = vmatpush.msra.mxu0 0.0
        %2607 = vmatpush.msra.mxu0 0.0
        %2608 = vmatpush.msra.mxu0 0.0
        %2609 = vmatpush.msra.mxu0 0.0
        %2610 = vmatpush.msra.mxu0 0.0
        %2611 = vmatpush.msra.mxu0 0.0
        %2612 = vmatpush.msra.mxu0 0.0
        %2613 = vmatpush.msra.mxu0 0.0
        %2614 = vmatpush.msra.mxu0 0.0
        %2615 = vmatpush.msra.mxu0 0.0
        %2616 = vmatpush.msra.mxu0 0.0
        %2617 = vmatpush.msra.mxu0 %v2597
        %2618 = vmatmul.f32.gmra.mxu0 %v2600
        %v2619 = vpop.f32.mrf.mxu0
        %v2620 = vadd.f32 0.0, %v2619
        %2621 = vdwg.mxu0
        %2622 = vrot.lane.b32.xlu0 %v2446, 112
        %v2623 = vpop.permute.xlu0 %2622
        %2624 = vrot.lane.b32.xlu0 %v2488, 112
        %v2625 = vpop.permute.xlu0 %2624
        %v2626 = vsel %vm1117, %v2623, 0
        %v2628 = vsel %vm1117, %v2625, 0
        %2630 = vmatpush.xpose.msra.mxu0 0.0
        %2631 = vmatpush.xpose.msra.mxu0 0.0
        %2632 = vmatpush.xpose.msra.mxu0 0.0
        %2633 = vmatpush.xpose.msra.mxu0 0.0
        %2634 = vmatpush.xpose.msra.mxu0 0.0
        %2635 = vmatpush.xpose.msra.mxu0 0.0
        %2636 = vmatpush.xpose.msra.mxu0 0.0
        %2637 = vmatpush.xpose.msra.mxu0 0.0
        %2638 = vmatpush.xpose.msra.mxu0 0.0
        %2639 = vmatpush.xpose.msra.mxu0 0.0
        %2640 = vmatpush.xpose.msra.mxu0 0.0
        %2641 = vmatpush.xpose.msra.mxu0 0.0
        %2642 = vmatpush.xpose.msra.mxu0 0.0
        %2643 = vmatpush.xpose.msra.mxu0 0.0
        %2644 = vmatpush.xpose.msra.mxu0 0.0
        %2645 = vmatpush.xpose.msra.mxu0 %v2628
        %2646 = vmatmul.f32.gmra.mxu0 %v2626
        %v2647 = vpop.f32.mrf.mxu0
        %v2648 = vadd.f32 0.0, %v2647
        %2649 = vdwg.mxu0
        %v2650 = vmul.f32 %v2648, 0.35355338
        %v2651 = vsel %vm1145, %v2650, -1e+09
        %v2652 = vsel %vm1117, %v2651, -inf
        %2653 = vmax.xlane.f32.xlu0 %v2652
        %v2654 = vpop.xlane.xlu0 %2653
        %v2655 = vsub.f32 %v2651, %v2654
        %v2656 = vmul.f32 %v2655, 1.442695
        %v2657 = vpow.pop %v2656
        %v2658 = vsel %vm1117, %v2657, 0.0
        %2659 = vadd.xlane.f32.xlu0 %v2658
        %v2660 = vpop.xlane.xlu0 %2659
        %v2661 = vrcp.pop %v2660
        %v2662 = vmul.f32 %v2657, %v2661
        %2663 = vrot.lane.b32.xlu0 %v2488, 80
        %v2664 = vpop.permute.xlu0 %2663
        %v2667 = vsel %vm1117, %v2662, 0
        %2669 = vmatpush.msra.mxu0 0.0
        %2670 = vmatpush.msra.mxu0 0.0
        %2671 = vmatpush.msra.mxu0 0.0
        %2672 = vmatpush.msra.mxu0 0.0
        %2673 = vmatpush.msra.mxu0 0.0
        %2674 = vmatpush.msra.mxu0 0.0
        %2675 = vmatpush.msra.mxu0 0.0
        %2676 = vmatpush.msra.mxu0 0.0
        %2677 = vmatpush.msra.mxu0 0.0
        %2678 = vmatpush.msra.mxu0 0.0
        %2679 = vmatpush.msra.mxu0 0.0
        %2680 = vmatpush.msra.mxu0 0.0
        %2681 = vmatpush.msra.mxu0 0.0
        %2682 = vmatpush.msra.mxu0 0.0
        %2683 = vmatpush.msra.mxu0 0.0
        %2684 = vmatpush.msra.mxu0 %v2664
        %2685 = vmatmul.f32.gmra.mxu0 %v2667
        %v2686 = vpop.f32.mrf.mxu0
        %v2687 = vadd.f32 0.0, %v2686
        %2688 = vdwg.mxu0
        %2689 = vrot.lane.b32.xlu0 %v2446, 104
        %v2690 = vpop.permute.xlu0 %2689
        %2691 = vrot.lane.b32.xlu0 %v2488, 104
        %v2692 = vpop.permute.xlu0 %2691
        %v2693 = vsel %vm1117, %v2690, 0
        %v2695 = vsel %vm1117, %v2692, 0
        %2697 = vmatpush.xpose.msra.mxu0 0.0
        %2698 = vmatpush.xpose.msra.mxu0 0.0
        %2699 = vmatpush.xpose.msra.mxu0 0.0
        %2700 = vmatpush.xpose.msra.mxu0 0.0
        %2701 = vmatpush.xpose.msra.mxu0 0.0
        %2702 = vmatpush.xpose.msra.mxu0 0.0
        %2703 = vmatpush.xpose.msra.mxu0 0.0
        %2704 = vmatpush.xpose.msra.mxu0 0.0
        %2705 = vmatpush.xpose.msra.mxu0 0.0
        %2706 = vmatpush.xpose.msra.mxu0 0.0
        %2707 = vmatpush.xpose.msra.mxu0 0.0
        %2708 = vmatpush.xpose.msra.mxu0 0.0
        %2709 = vmatpush.xpose.msra.mxu0 0.0
        %2710 = vmatpush.xpose.msra.mxu0 0.0
        %2711 = vmatpush.xpose.msra.mxu0 0.0
        %2712 = vmatpush.xpose.msra.mxu0 %v2695
        %2713 = vmatmul.f32.gmra.mxu0 %v2693
        %v2714 = vpop.f32.mrf.mxu0
        %v2715 = vadd.f32 0.0, %v2714
        %2716 = vdwg.mxu0
        %v2717 = vmul.f32 %v2715, 0.35355338
        %v2718 = vsel %vm1145, %v2717, -1e+09
        %v2719 = vsel %vm1117, %v2718, -inf
        %2720 = vmax.xlane.f32.xlu0 %v2719
        %v2721 = vpop.xlane.xlu0 %2720
        %v2722 = vsub.f32 %v2718, %v2721
        %v2723 = vmul.f32 %v2722, 1.442695
        %v2724 = vpow.pop %v2723
        %v2725 = vsel %vm1117, %v2724, 0.0
        %2726 = vadd.xlane.f32.xlu0 %v2725
        %v2727 = vpop.xlane.xlu0 %2726
        %v2728 = vrcp.pop %v2727
        %v2729 = vmul.f32 %v2724, %v2728
        %2730 = vrot.lane.b32.xlu0 %v2488, 72
        %v2731 = vpop.permute.xlu0 %2730
        %v2734 = vsel %vm1117, %v2729, 0
        %2736 = vmatpush.msra.mxu0 0.0
        %2737 = vmatpush.msra.mxu0 0.0
        %2738 = vmatpush.msra.mxu0 0.0
        %2739 = vmatpush.msra.mxu0 0.0
        %2740 = vmatpush.msra.mxu0 0.0
        %2741 = vmatpush.msra.mxu0 0.0
        %2742 = vmatpush.msra.mxu0 0.0
        %2743 = vmatpush.msra.mxu0 0.0
        %2744 = vmatpush.msra.mxu0 0.0
        %2745 = vmatpush.msra.mxu0 0.0
        %2746 = vmatpush.msra.mxu0 0.0
        %2747 = vmatpush.msra.mxu0 0.0
        %2748 = vmatpush.msra.mxu0 0.0
        %2749 = vmatpush.msra.mxu0 0.0
        %2750 = vmatpush.msra.mxu0 0.0
        %2751 = vmatpush.msra.mxu0 %v2731
        %2752 = vmatmul.f32.gmra.mxu0 %v2734
        %v2753 = vpop.f32.mrf.mxu0
        %v2754 = vadd.f32 0.0, %v2753
        %2755 = vdwg.mxu0
        %2757 = vrot.lane.b32.xlu0 %v2620, 8
        %v2758 = vpop.permute.xlu0 %2757
        %2761 = vrot.lane.b32.xlu0 %v2687, 16
        %v2762 = vpop.permute.xlu0 %2761
        %2765 = vrot.lane.b32.xlu0 %v2754, 24
        %v2766 = vpop.permute.xlu0 %2765
        %v2768 = vsel %vm1117, %v2553, %v2758
        %v2769 = vsel %vm1398, %v2768, %v2762
        %v2770 = vsel %vm1400, %v2769, %v2766
        %v2772 = vperm.slane %v2421, 0
        %v2775 = vsel %vm1090, %v2770, 0
        %2777 = vmatpush.msra.mxu0 0.0
        %2778 = vmatpush.msra.mxu0 0.0
        %2779 = vmatpush.msra.mxu0 0.0
        %2780 = vmatpush.msra.mxu0 0.0
        %2781 = vmatpush.msra.mxu0 0.0
        %2782 = vmatpush.msra.mxu0 0.0
        %2783 = vmatpush.msra.mxu0 0.0
        %2784 = vmatpush.msra.mxu0 0.0
        %2785 = vmatpush.msra.mxu0 0.0
        %2786 = vmatpush.msra.mxu0 0.0
        %2787 = vmatpush.msra.mxu0 0.0
        %2788 = vmatpush.msra.mxu0 0.0
        %2789 = vmatpush.msra.mxu0 %v2420
        %2790 = vmatpush.msra.mxu0 %v2419
        %2791 = vmatpush.msra.mxu0 %v2418
        %2792 = vmatpush.msra.mxu0 %v2417
        %2793 = vmatmul.f32.gmra.mxu0 %v2775
        %v2794 = vpop.f32.mrf.mxu0
        %v2795 = vadd.f32 %v2772, %v2794
        %2796 = vdwg.mxu0
        %v2797 = vld [vmem:[%s51] sm:$0x3]
        %v2798 = vadd.f32 %v2411, %v2795
        %v2799 = vsel %vm1090, %v2798, 0.0
        %2800 = vadd.xlane.f32.xlu0 %v2799
        %v2801 = vpop.xlane.xlu0 %2800
        %v2802 = vmul.f32 %v2801, %v1439
        %v2803 = vsub.f32 %v2798, %v2802
        %v2804 = vmul.f32 %v2803, %v2803
        %v2805 = vsel %vm1090, %v2804, 0.0
        %2806 = vadd.xlane.f32.xlu0 %v2805
        %v2807 = vpop.xlane.xlu0 %2806
        %v2808 = vmul.f32 %v2807, %v1439
        %v2809 = vadd.f32 %v2808, 1e-05
        %v2810 = vrsqrt.pop %v2809
        %v2811 = vmul.f32 %v2810, %v2809
        %v2812 = vmul.f32 %v2811, %v2810
        %v2813 = vmul.f32 0.5, %v2812
        %v2814 = vsub.f32 1.5, %v2813
        %v2815 = vmul.f32 %v2810, %v2814
        %vm2816 = vweird.f32 %v2809
        %vm2817 = vweird.f32 %v2810
        %vm2818 = vmor %vm2816, %vm2817
        %v2819 = vsel %vm2818, %v2810, %v2815
        %v2820 = vmul.f32 %v2803, %v2819
        %v2821 = vperm.slane %v2797, 0
        %v2822 = vmul.f32 %v2820, %v2821
        %v2823 = vperm.slane %v2797, 1
        %v2824 = vadd.f32 %v2822, %v2823
        %v2825 = vld [vmem:[%s53] sm:$0xff]
        %v2826 = vld [vmem:[%s53 + $0x8] sm:$0xff]
        %v2827 = vld [vmem:[%s53 + $0x10] sm:$0xff]
        %v2828 = vld [vmem:[%s53 + $0x18] sm:$0xff]
        %v2829 = vld [vmem:[%s55] sm:$0x1]
        %v2830 = vld [vmem:[%s57] sm:$0xff]
        %v2831 = vld [vmem:[%s57 + $0x8] sm:$0xff]
        %v2832 = vld [vmem:[%s57 + $0x10] sm:$0xff]
        %v2833 = vld [vmem:[%s57 + $0x18] sm:$0xff]
        %v2834 = vld [vmem:[%s57 + $0x20] sm:$0xff]
        %v2835 = vld [vmem:[%s57 + $0x28] sm:$0xff]
        %v2836 = vld [vmem:[%s57 + $0x30] sm:$0xff]
        %v2837 = vld [vmem:[%s57 + $0x38] sm:$0xff]
        %v2838 = vld [vmem:[%s59] sm:$0x1]
        %v2840 = vperm.slane %v2829, 0
        %v2843 = vsel %vm1090, %v2824, 0
        %2845 = vmatpush.msra.mxu0 0.0
        %2846 = vmatpush.msra.mxu0 0.0
        %2847 = vmatpush.msra.mxu0 0.0
        %2848 = vmatpush.msra.mxu0 0.0
        %2849 = vmatpush.msra.mxu0 0.0
        %2850 = vmatpush.msra.mxu0 0.0
        %2851 = vmatpush.msra.mxu0 0.0
        %2852 = vmatpush.msra.mxu0 0.0
        %2853 = vmatpush.msra.mxu0 0.0
        %2854 = vmatpush.msra.mxu0 0.0
        %2855 = vmatpush.msra.mxu0 0.0
        %2856 = vmatpush.msra.mxu0 0.0
        %2857 = vmatpush.msra.mxu0 %v2828
        %2858 = vmatpush.msra.mxu0 %v2827
        %2859 = vmatpush.msra.mxu0 %v2826
        %2860 = vmatpush.msra.mxu0 %v2825
        %2861 = vmatmul.f32.gmra.mxu0 %v2843
        %v2862 = vpop.f32.mrf.mxu0
        %v2863 = vadd.f32 %v2840, %v2862
        %2864 = vdwg.mxu0
        %v2865 = vmax.f32 %v2863, 0.0
        %v2867 = vperm.slane %v2838, 0
        %v2870 = vsel %vm1507, %v2865, 0
        %2872 = vmatpush.msra.mxu0 0.0
        %2873 = vmatpush.msra.mxu0 0.0
        %2874 = vmatpush.msra.mxu0 0.0
        %2875 = vmatpush.msra.mxu0 0.0
        %2876 = vmatpush.msra.mxu0 0.0
        %2877 = vmatpush.msra.mxu0 0.0
        %2878 = vmatpush.msra.mxu0 0.0
        %2879 = vmatpush.msra.mxu0 0.0
        %2880 = vmatpush.msra.mxu0 %v2837
        %2881 = vmatpush.msra.mxu0 %v2836
        %2882 = vmatpush.msra.mxu0 %v2835
        %2883 = vmatpush.msra.mxu0 %v2834
        %2884 = vmatpush.msra.mxu0 %v2833
        %2885 = vmatpush.msra.mxu0 %v2832
        %2886 = vmatpush.msra.mxu0 %v2831
        %2887 = vmatpush.msra.mxu0 %v2830
        %2888 = vmatmul.f32.gmra.mxu0 %v2870
        %v2889 = vpop.f32.mrf.mxu0
        %v2890 = vadd.f32 %v2867, %v2889
        %2891 = vdwg.mxu0
        %v2892 = vld [vmem:[%s61] sm:$0x3]
        %v2893 = vadd.f32 %v2824, %v2890
        %v2894 = vsel %vm1090, %v2893, 0.0
        %2895 = vadd.xlane.f32.xlu0 %v2894
        %v2896 = vpop.xlane.xlu0 %2895
        %v2897 = vmul.f32 %v2896, %v1439
        %v2898 = vsub.f32 %v2893, %v2897
        %v2899 = vmul.f32 %v2898, %v2898
        %v2900 = vsel %vm1090, %v2899, 0.0
        %2901 = vadd.xlane.f32.xlu0 %v2900
        %v2902 = vpop.xlane.xlu0 %2901
        %v2903 = vmul.f32 %v2902, %v1439
        %v2904 = vadd.f32 %v2903, 1e-05
        %v2905 = vrsqrt.pop %v2904
        %v2906 = vmul.f32 %v2905, %v2904
        %v2907 = vmul.f32 %v2906, %v2905
        %v2908 = vmul.f32 0.5, %v2907
        %v2909 = vsub.f32 1.5, %v2908
        %v2910 = vmul.f32 %v2905, %v2909
        %vm2911 = vweird.f32 %v2904
        %vm2912 = vweird.f32 %v2905
        %vm2913 = vmor %vm2911, %vm2912
        %v2914 = vsel %vm2913, %v2905, %v2910
        %v2915 = vmul.f32 %v2898, %v2914
        %v2916 = vperm.slane %v2892, 0
        %v2917 = vmul.f32 %v2915, %v2916
        %v2918 = vperm.slane %v2892, 1
        %v2919 = vadd.f32 %v2917, %v2918
        %s2920 = scalar_lea.vmem %s33, 32
        %v2921 = vld [vmem:[%s2920] sm:$0xff]
        %v2922 = vld [vmem:[%s2920 + $0x8] sm:$0xff]
        %v2923 = vld [vmem:[%s2920 + $0x10] sm:$0xff]
        %v2924 = vld [vmem:[%s2920 + $0x18] sm:$0xff]
        %s2925 = scalar_lea.vmem %s35, 1
        %v2926 = vld [vmem:[%s2925] sm:$0x1]
        %s2927 = scalar_lea.vmem %s37, 32
        %v2928 = vld [vmem:[%s2927] sm:$0xff]
        %v2929 = vld [vmem:[%s2927 + $0x8] sm:$0xff]
        %v2930 = vld [vmem:[%s2927 + $0x10] sm:$0xff]
        %v2931 = vld [vmem:[%s2927 + $0x18] sm:$0xff]
        %s2932 = scalar_lea.vmem %s39, 1
        %v2933 = vld [vmem:[%s2932] sm:$0x1]
        %v2935 = vperm.slane %v2926, 0
        %v2938 = vsel %vm1090, %v2919, 0
        %2940 = vmatpush.msra.mxu0 0.0
        %2941 = vmatpush.msra.mxu0 0.0
        %2942 = vmatpush.msra.mxu0 0.0
        %2943 = vmatpush.msra.mxu0 0.0
        %2944 = vmatpush.msra.mxu0 0.0
        %2945 = vmatpush.msra.mxu0 0.0
        %2946 = vmatpush.msra.mxu0 0.0
        %2947 = vmatpush.msra.mxu0 0.0
        %2948 = vmatpush.msra.mxu0 0.0
        %2949 = vmatpush.msra.mxu0 0.0
        %2950 = vmatpush.msra.mxu0 0.0
        %2951 = vmatpush.msra.mxu0 0.0
        %2952 = vmatpush.msra.mxu0 %v2924
        %2953 = vmatpush.msra.mxu0 %v2923
        %2954 = vmatpush.msra.mxu0 %v2922
        %2955 = vmatpush.msra.mxu0 %v2921
        %2956 = vmatmul.f32.gmra.mxu0 %v2938
        %v2957 = vpop.f32.mrf.mxu0
        %v2958 = vadd.f32 %v2935, %v2957
        %2959 = vdwg.mxu0
        %2961 = vrot.lane.b32.xlu0 %v2958, 96
        %v2962 = vpop.permute.xlu0 %2961
        %v2963 = vsel %vm1117, %v2958, 0
        %v2965 = vsel %vm1117, %v2962, 0
        %2967 = vmatpush.xpose.msra.mxu0 0.0
        %2968 = vmatpush.xpose.msra.mxu0 0.0
        %2969 = vmatpush.xpose.msra.mxu0 0.0
        %2970 = vmatpush.xpose.msra.mxu0 0.0
        %2971 = vmatpush.xpose.msra.mxu0 0.0
        %2972 = vmatpush.xpose.msra.mxu0 0.0
        %2973 = vmatpush.xpose.msra.mxu0 0.0
        %2974 = vmatpush.xpose.msra.mxu0 0.0
        %2975 = vmatpush.xpose.msra.mxu0 0.0
        %2976 = vmatpush.xpose.msra.mxu0 0.0
        %2977 = vmatpush.xpose.msra.mxu0 0.0
        %2978 = vmatpush.xpose.msra.mxu0 0.0
        %2979 = vmatpush.xpose.msra.mxu0 0.0
        %2980 = vmatpush.xpose.msra.mxu0 0.0
        %2981 = vmatpush.xpose.msra.mxu0 0.0
        %2982 = vmatpush.xpose.msra.mxu0 %v2965
        %2983 = vmatmul.f32.gmra.mxu0 %v2963
        %v2984 = vpop.f32.mrf.mxu0
        %v2985 = vadd.f32 0.0, %v2984
        %2986 = vdwg.mxu0
        %v2987 = vmul.f32 %v2985, 0.35355338
        %v2988 = vsel %vm1072, %v2987, -1e+09
        %v2989 = vsel %vm1117, %v2988, -inf
        %2990 = vmax.xlane.f32.xlu0 %v2989
        %v2991 = vpop.xlane.xlu0 %2990
        %v2992 = vsub.f32 %v2988, %v2991
        %v2993 = vmul.f32 %v2992, 1.442695
        %v2994 = vpow.pop %v2993
        %v2995 = vsel %vm1117, %v2994, 0.0
        %2996 = vadd.xlane.f32.xlu0 %v2995
        %v2997 = vpop.xlane.xlu0 %2996
        %v2998 = vrcp.pop %v2997
        %v2999 = vmul.f32 %v2994, %v2998
        %3000 = vrot.lane.b32.xlu0 %v2958, 64
        %v3001 = vpop.permute.xlu0 %3000
        %v3004 = vsel %vm1117, %v2999, 0
        %3006 = vmatpush.msra.mxu0 0.0
        %3007 = vmatpush.msra.mxu0 0.0
        %3008 = vmatpush.msra.mxu0 0.0
        %3009 = vmatpush.msra.mxu0 0.0
        %3010 = vmatpush.msra.mxu0 0.0
        %3011 = vmatpush.msra.mxu0 0.0
        %3012 = vmatpush.msra.mxu0 0.0
        %3013 = vmatpush.msra.mxu0 0.0
        %3014 = vmatpush.msra.mxu0 0.0
        %3015 = vmatpush.msra.mxu0 0.0
        %3016 = vmatpush.msra.mxu0 0.0
        %3017 = vmatpush.msra.mxu0 0.0
        %3018 = vmatpush.msra.mxu0 0.0
        %3019 = vmatpush.msra.mxu0 0.0
        %3020 = vmatpush.msra.mxu0 0.0
        %3021 = vmatpush.msra.mxu0 %v3001
        %3022 = vmatmul.f32.gmra.mxu0 %v3004
        %v3023 = vpop.f32.mrf.mxu0
        %v3024 = vadd.f32 0.0, %v3023
        %3025 = vdwg.mxu0
        %3026 = vrot.lane.b32.xlu0 %v2958, 120
        %v3027 = vpop.permute.xlu0 %3026
        %3028 = vrot.lane.b32.xlu0 %v2958, 88
        %v3029 = vpop.permute.xlu0 %3028
        %v3030 = vsel %vm1117, %v3027, 0
        %v3032 = vsel %vm1117, %v3029, 0
        %3034 = vmatpush.xpose.msra.mxu0 0.0
        %3035 = vmatpush.xpose.msra.mxu0 0.0
        %3036 = vmatpush.xpose.msra.mxu0 0.0
        %3037 = vmatpush.xpose.msra.mxu0 0.0
        %3038 = vmatpush.xpose.msra.mxu0 0.0
        %3039 = vmatpush.xpose.msra.mxu0 0.0
        %3040 = vmatpush.xpose.msra.mxu0 0.0
        %3041 = vmatpush.xpose.msra.mxu0 0.0
        %3042 = vmatpush.xpose.msra.mxu0 0.0
        %3043 = vmatpush.xpose.msra.mxu0 0.0
        %3044 = vmatpush.xpose.msra.mxu0 0.0
        %3045 = vmatpush.xpose.msra.mxu0 0.0
        %3046 = vmatpush.xpose.msra.mxu0 0.0
        %3047 = vmatpush.xpose.msra.mxu0 0.0
        %3048 = vmatpush.xpose.msra.mxu0 0.0
        %3049 = vmatpush.xpose.msra.mxu0 %v3032
        %3050 = vmatmul.f32.gmra.mxu0 %v3030
        %v3051 = vpop.f32.mrf.mxu0
        %v3052 = vadd.f32 0.0, %v3051
        %3053 = vdwg.mxu0
        %v3054 = vmul.f32 %v3052, 0.35355338
        %v3055 = vsel %vm1072, %v3054, -1e+09
        %v3056 = vsel %vm1117, %v3055, -inf
        %3057 = vmax.xlane.f32.xlu0 %v3056
        %v3058 = vpop.xlane.xlu0 %3057
        %v3059 = vsub.f32 %v3055, %v3058
        %v3060 = vmul.f32 %v3059, 1.442695
        %v3061 = vpow.pop %v3060
        %v3062 = vsel %vm1117, %v3061, 0.0
        %3063 = vadd.xlane.f32.xlu0 %v3062
        %v3064 = vpop.xlane.xlu0 %3063
        %v3065 = vrcp.pop %v3064
        %v3066 = vmul.f32 %v3061, %v3065
        %3067 = vrot.lane.b32.xlu0 %v2958, 56
        %v3068 = vpop.permute.xlu0 %3067
        %v3071 = vsel %vm1117, %v3066, 0
        %3073 = vmatpush.msra.mxu0 0.0
        %3074 = vmatpush.msra.mxu0 0.0
        %3075 = vmatpush.msra.mxu0 0.0
        %3076 = vmatpush.msra.mxu0 0.0
        %3077 = vmatpush.msra.mxu0 0.0
        %3078 = vmatpush.msra.mxu0 0.0
        %3079 = vmatpush.msra.mxu0 0.0
        %3080 = vmatpush.msra.mxu0 0.0
        %3081 = vmatpush.msra.mxu0 0.0
        %3082 = vmatpush.msra.mxu0 0.0
        %3083 = vmatpush.msra.mxu0 0.0
        %3084 = vmatpush.msra.mxu0 0.0
        %3085 = vmatpush.msra.mxu0 0.0
        %3086 = vmatpush.msra.mxu0 0.0
        %3087 = vmatpush.msra.mxu0 0.0
        %3088 = vmatpush.msra.mxu0 %v3068
        %3089 = vmatmul.f32.gmra.mxu0 %v3071
        %v3090 = vpop.f32.mrf.mxu0
        %v3091 = vadd.f32 0.0, %v3090
        %3092 = vdwg.mxu0
        %3093 = vrot.lane.b32.xlu0 %v2958, 112
        %v3094 = vpop.permute.xlu0 %3093
        %3095 = vrot.lane.b32.xlu0 %v2958, 80
        %v3096 = vpop.permute.xlu0 %3095
        %v3097 = vsel %vm1117, %v3094, 0
        %v3099 = vsel %vm1117, %v3096, 0
        %3101 = vmatpush.xpose.msra.mxu0 0.0
        %3102 = vmatpush.xpose.msra.mxu0 0.0
        %3103 = vmatpush.xpose.msra.mxu0 0.0
        %3104 = vmatpush.xpose.msra.mxu0 0.0
        %3105 = vmatpush.xpose.msra.mxu0 0.0
        %3106 = vmatpush.xpose.msra.mxu0 0.0
        %3107 = vmatpush.xpose.msra.mxu0 0.0
        %3108 = vmatpush.xpose.msra.mxu0 0.0
        %3109 = vmatpush.xpose.msra.mxu0 0.0
        %3110 = vmatpush.xpose.msra.mxu0 0.0
        %3111 = vmatpush.xpose.msra.mxu0 0.0
        %3112 = vmatpush.xpose.msra.mxu0 0.0
        %3113 = vmatpush.xpose.msra.mxu0 0.0
        %3114 = vmatpush.xpose.msra.mxu0 0.0
        %3115 = vmatpush.xpose.msra.mxu0 0.0
        %3116 = vmatpush.xpose.msra.mxu0 %v3099
        %3117 = vmatmul.f32.gmra.mxu0 %v3097
        %v3118 = vpop.f32.mrf.mxu0
        %v3119 = vadd.f32 0.0, %v3118
        %3120 = vdwg.mxu0
        %v3121 = vmul.f32 %v3119, 0.35355338
        %v3122 = vsel %vm1072, %v3121, -1e+09
        %v3123 = vsel %vm1117, %v3122, -inf
        %3124 = vmax.xlane.f32.xlu0 %v3123
        %v3125 = vpop.xlane.xlu0 %3124
        %v3126 = vsub.f32 %v3122, %v3125
        %v3127 = vmul.f32 %v3126, 1.442695
        %v3128 = vpow.pop %v3127
        %v3129 = vsel %vm1117, %v3128, 0.0
        %3130 = vadd.xlane.f32.xlu0 %v3129
        %v3131 = vpop.xlane.xlu0 %3130
        %v3132 = vrcp.pop %v3131
        %v3133 = vmul.f32 %v3128, %v3132
        %3134 = vrot.lane.b32.xlu0 %v2958, 48
        %v3135 = vpop.permute.xlu0 %3134
        %v3138 = vsel %vm1117, %v3133, 0
        %3140 = vmatpush.msra.mxu0 0.0
        %3141 = vmatpush.msra.mxu0 0.0
        %3142 = vmatpush.msra.mxu0 0.0
        %3143 = vmatpush.msra.mxu0 0.0
        %3144 = vmatpush.msra.mxu0 0.0
        %3145 = vmatpush.msra.mxu0 0.0
        %3146 = vmatpush.msra.mxu0 0.0
        %3147 = vmatpush.msra.mxu0 0.0
        %3148 = vmatpush.msra.mxu0 0.0
        %3149 = vmatpush.msra.mxu0 0.0
        %3150 = vmatpush.msra.mxu0 0.0
        %3151 = vmatpush.msra.mxu0 0.0
        %3152 = vmatpush.msra.mxu0 0.0
        %3153 = vmatpush.msra.mxu0 0.0
        %3154 = vmatpush.msra.mxu0 0.0
        %3155 = vmatpush.msra.mxu0 %v3135
        %3156 = vmatmul.f32.gmra.mxu0 %v3138
        %v3157 = vpop.f32.mrf.mxu0
        %v3158 = vadd.f32 0.0, %v3157
        %3159 = vdwg.mxu0
        %3160 = vrot.lane.b32.xlu0 %v2958, 104
        %v3161 = vpop.permute.xlu0 %3160
        %3162 = vrot.lane.b32.xlu0 %v2958, 72
        %v3163 = vpop.permute.xlu0 %3162
        %v3164 = vsel %vm1117, %v3161, 0
        %v3166 = vsel %vm1117, %v3163, 0
        %3168 = vmatpush.xpose.msra.mxu0 0.0
        %3169 = vmatpush.xpose.msra.mxu0 0.0
        %3170 = vmatpush.xpose.msra.mxu0 0.0
        %3171 = vmatpush.xpose.msra.mxu0 0.0
        %3172 = vmatpush.xpose.msra.mxu0 0.0
        %3173 = vmatpush.xpose.msra.mxu0 0.0
        %3174 = vmatpush.xpose.msra.mxu0 0.0
        %3175 = vmatpush.xpose.msra.mxu0 0.0
        %3176 = vmatpush.xpose.msra.mxu0 0.0
        %3177 = vmatpush.xpose.msra.mxu0 0.0
        %3178 = vmatpush.xpose.msra.mxu0 0.0
        %3179 = vmatpush.xpose.msra.mxu0 0.0
        %3180 = vmatpush.xpose.msra.mxu0 0.0
        %3181 = vmatpush.xpose.msra.mxu0 0.0
        %3182 = vmatpush.xpose.msra.mxu0 0.0
        %3183 = vmatpush.xpose.msra.mxu0 %v3166
        %3184 = vmatmul.f32.gmra.mxu0 %v3164
        %v3185 = vpop.f32.mrf.mxu0
        %v3186 = vadd.f32 0.0, %v3185
        %3187 = vdwg.mxu0
        %v3188 = vmul.f32 %v3186, 0.35355338
        %v3189 = vsel %vm1072, %v3188, -1e+09
        %v3190 = vsel %vm1117, %v3189, -inf
        %3191 = vmax.xlane.f32.xlu0 %v3190
        %v3192 = vpop.xlane.xlu0 %3191
        %v3193 = vsub.f32 %v3189, %v3192
        %v3194 = vmul.f32 %v3193, 1.442695
        %v3195 = vpow.pop %v3194
        %v3196 = vsel %vm1117, %v3195, 0.0
        %3197 = vadd.xlane.f32.xlu0 %v3196
        %v3198 = vpop.xlane.xlu0 %3197
        %v3199 = vrcp.pop %v3198
        %v3200 = vmul.f32 %v3195, %v3199
        %3201 = vrot.lane.b32.xlu0 %v2958, 40
        %v3202 = vpop.permute.xlu0 %3201
        %v3205 = vsel %vm1117, %v3200, 0
        %3207 = vmatpush.msra.mxu0 0.0
        %3208 = vmatpush.msra.mxu0 0.0
        %3209 = vmatpush.msra.mxu0 0.0
        %3210 = vmatpush.msra.mxu0 0.0
        %3211 = vmatpush.msra.mxu0 0.0
        %3212 = vmatpush.msra.mxu0 0.0
        %3213 = vmatpush.msra.mxu0 0.0
        %3214 = vmatpush.msra.mxu0 0.0
        %3215 = vmatpush.msra.mxu0 0.0
        %3216 = vmatpush.msra.mxu0 0.0
        %3217 = vmatpush.msra.mxu0 0.0
        %3218 = vmatpush.msra.mxu0 0.0
        %3219 = vmatpush.msra.mxu0 0.0
        %3220 = vmatpush.msra.mxu0 0.0
        %3221 = vmatpush.msra.mxu0 0.0
        %3222 = vmatpush.msra.mxu0 %v3202
        %3223 = vmatmul.f32.gmra.mxu0 %v3205
        %v3224 = vpop.f32.mrf.mxu0
        %v3225 = vadd.f32 0.0, %v3224
        %3226 = vdwg.mxu0
        %3228 = vrot.lane.b32.xlu0 %v3091, 8
        %v3229 = vpop.permute.xlu0 %3228
        %3232 = vrot.lane.b32.xlu0 %v3158, 16
        %v3233 = vpop.permute.xlu0 %3232
        %3236 = vrot.lane.b32.xlu0 %v3225, 24
        %v3237 = vpop.permute.xlu0 %3236
        %v3239 = vsel %vm1117, %v3024, %v3229
        %v3240 = vsel %vm1398, %v3239, %v3233
        %v3241 = vsel %vm1400, %v3240, %v3237
        %v3243 = vperm.slane %v2933, 0
        %v3246 = vsel %vm1090, %v3241, 0
        %3248 = vmatpush.msra.mxu0 0.0
        %3249 = vmatpush.msra.mxu0 0.0
        %3250 = vmatpush.msra.mxu0 0.0
        %3251 = vmatpush.msra.mxu0 0.0
        %3252 = vmatpush.msra.mxu0 0.0
        %3253 = vmatpush.msra.mxu0 0.0
        %3254 = vmatpush.msra.mxu0 0.0
        %3255 = vmatpush.msra.mxu0 0.0
        %3256 = vmatpush.msra.mxu0 0.0
        %3257 = vmatpush.msra.mxu0 0.0
        %3258 = vmatpush.msra.mxu0 0.0
        %3259 = vmatpush.msra.mxu0 0.0
        %3260 = vmatpush.msra.mxu0 %v2931
        %3261 = vmatpush.msra.mxu0 %v2930
        %3262 = vmatpush.msra.mxu0 %v2929
        %3263 = vmatpush.msra.mxu0 %v2928
        %3264 = vmatmul.f32.gmra.mxu0 %v3246
        %v3265 = vpop.f32.mrf.mxu0
        %v3266 = vadd.f32 %v3243, %v3265
        %3267 = vdwg.mxu0
        %s3268 = scalar_lea.vmem %s41, 2
        %v3269 = vld [vmem:[%s3268] sm:$0x3]
        %v3270 = vadd.f32 %v2919, %v3266
        %v3271 = vsel %vm1090, %v3270, 0.0
        %3272 = vadd.xlane.f32.xlu0 %v3271
        %v3273 = vpop.xlane.xlu0 %3272
        %v3274 = vmul.f32 %v3273, %v1439
        %v3275 = vsub.f32 %v3270, %v3274
        %v3276 = vmul.f32 %v3275, %v3275
        %v3277 = vsel %vm1090, %v3276, 0.0
        %3278 = vadd.xlane.f32.xlu0 %v3277
        %v3279 = vpop.xlane.xlu0 %3278
        %v3280 = vmul.f32 %v3279, %v1439
        %v3281 = vadd.f32 %v3280, 1e-05
        %v3282 = vrsqrt.pop %v3281
        %v3283 = vmul.f32 %v3282, %v3281
        %v3284 = vmul.f32 %v3283, %v3282
        %v3285 = vmul.f32 0.5, %v3284
        %v3286 = vsub.f32 1.5, %v3285
        %v3287 = vmul.f32 %v3282, %v3286
        %vm3288 = vweird.f32 %v3281
        %vm3289 = vweird.f32 %v3282
        %vm3290 = vmor %vm3288, %vm3289
        %v3291 = vsel %vm3290, %v3282, %v3287
        %v3292 = vmul.f32 %v3275, %v3291
        %v3293 = vperm.slane %v3269, 0
        %v3294 = vmul.f32 %v3292, %v3293
        %v3295 = vperm.slane %v3269, 1
        %v3296 = vadd.f32 %v3294, %v3295
        %s3297 = scalar_lea.vmem %s43, 32
        %v3298 = vld [vmem:[%s3297] sm:$0xff]
        %v3299 = vld [vmem:[%s3297 + $0x8] sm:$0xff]
        %v3300 = vld [vmem:[%s3297 + $0x10] sm:$0xff]
        %v3301 = vld [vmem:[%s3297 + $0x18] sm:$0xff]
        %s3302 = scalar_lea.vmem %s45, 1
        %v3303 = vld [vmem:[%s3302] sm:$0x1]
        %s3304 = scalar_lea.vmem %s47, 32
        %v3305 = vld [vmem:[%s3304] sm:$0xff]
        %v3306 = vld [vmem:[%s3304 + $0x8] sm:$0xff]
        %v3307 = vld [vmem:[%s3304 + $0x10] sm:$0xff]
        %v3308 = vld [vmem:[%s3304 + $0x18] sm:$0xff]
        %s3309 = scalar_lea.vmem %s49, 1
        %v3310 = vld [vmem:[%s3309] sm:$0x1]
        %v3312 = vperm.slane %v3303, 0
        %v3315 = vsel %vm1090, %v3296, 0
        %3317 = vmatpush.msra.mxu0 0.0
        %3318 = vmatpush.msra.mxu0 0.0
        %3319 = vmatpush.msra.mxu0 0.0
        %3320 = vmatpush.msra.mxu0 0.0
        %3321 = vmatpush.msra.mxu0 0.0
        %3322 = vmatpush.msra.mxu0 0.0
        %3323 = vmatpush.msra.mxu0 0.0
        %3324 = vmatpush.msra.mxu0 0.0
        %3325 = vmatpush.msra.mxu0 0.0
        %3326 = vmatpush.msra.mxu0 0.0
        %3327 = vmatpush.msra.mxu0 0.0
        %3328 = vmatpush.msra.mxu0 0.0
        %3329 = vmatpush.msra.mxu0 %v3301
        %3330 = vmatpush.msra.mxu0 %v3300
        %3331 = vmatpush.msra.mxu0 %v3299
        %3332 = vmatpush.msra.mxu0 %v3298
        %3333 = vmatmul.f32.gmra.mxu0 %v3315
        %v3334 = vpop.f32.mrf.mxu0
        %v3335 = vadd.f32 %v3312, %v3334
        %3336 = vdwg.mxu0
        %3341 = vrot.lane.b32.xlu0 %v3298, 96
        %v3342 = vpop.permute.xlu0 %3341
        %3343 = vrot.lane.b32.xlu0 %v3299, 96
        %v3344 = vpop.permute.xlu0 %3343
        %3345 = vrot.lane.b32.xlu0 %v3300, 96
        %v3346 = vpop.permute.xlu0 %3345
        %3347 = vrot.lane.b32.xlu0 %v3301, 96
        %v3348 = vpop.permute.xlu0 %3347
        %3353 = vrot.lane.b32.xlu0 %v3312, 96
        %v3354 = vpop.permute.xlu0 %3353
        %3356 = vmatpush.msra.mxu0 0.0
        %3357 = vmatpush.msra.mxu0 0.0
        %3358 = vmatpush.msra.mxu0 0.0
        %3359 = vmatpush.msra.mxu0 0.0
        %3360 = vmatpush.msra.mxu0 0.0
        %3361 = vmatpush.msra.mxu0 0.0
        %3362 = vmatpush.msra.mxu0 0.0
        %3363 = vmatpush.msra.mxu0 0.0
        %3364 = vmatpush.msra.mxu0 0.0
        %3365 = vmatpush.msra.mxu0 0.0
        %3366 = vmatpush.msra.mxu0 0.0
        %3367 = vmatpush.msra.mxu0 0.0
        %3368 = vmatpush.msra.mxu0 %v3348
        %3369 = vmatpush.msra.mxu0 %v3346
        %3370 = vmatpush.msra.mxu0 %v3344
        %3371 = vmatpush.msra.mxu0 %v3342
        %3372 = vmatmul.f32.gmra.mxu0 %v2468
        %v3373 = vpop.f32.mrf.mxu0
        %v3374 = vadd.f32 %v3354, %v3373
        %3375 = vdwg.mxu0
        %v3377 = vsel %vm1117, %v3335, 0
        %v3380 = vsel %vm1117, %v3374, 0
        %3382 = vmatpush.xpose.msra.mxu0 0.0
        %3383 = vmatpush.xpose.msra.mxu0 0.0
        %3384 = vmatpush.xpose.msra.mxu0 0.0
        %3385 = vmatpush.xpose.msra.mxu0 0.0
        %3386 = vmatpush.xpose.msra.mxu0 0.0
        %3387 = vmatpush.xpose.msra.mxu0 0.0
        %3388 = vmatpush.xpose.msra.mxu0 0.0
        %3389 = vmatpush.xpose.msra.mxu0 0.0
        %3390 = vmatpush.xpose.msra.mxu0 0.0
        %3391 = vmatpush.xpose.msra.mxu0 0.0
        %3392 = vmatpush.xpose.msra.mxu0 0.0
        %3393 = vmatpush.xpose.msra.mxu0 0.0
        %3394 = vmatpush.xpose.msra.mxu0 0.0
        %3395 = vmatpush.xpose.msra.mxu0 0.0
        %3396 = vmatpush.xpose.msra.mxu0 0.0
        %3397 = vmatpush.xpose.msra.mxu0 %v3380
        %3398 = vmatmul.f32.gmra.mxu0 %v3377
        %v3399 = vpop.f32.mrf.mxu0
        %v3400 = vadd.f32 0.0, %v3399
        %3401 = vdwg.mxu0
        %v3402 = vmul.f32 %v3400, 0.35355338
        %v3403 = vsel %vm1145, %v3402, -1e+09
        %v3404 = vsel %vm1117, %v3403, -inf
        %3405 = vmax.xlane.f32.xlu0 %v3404
        %v3406 = vpop.xlane.xlu0 %3405
        %v3407 = vsub.f32 %v3403, %v3406
        %v3408 = vmul.f32 %v3407, 1.442695
        %v3409 = vpow.pop %v3408
        %v3410 = vsel %vm1117, %v3409, 0.0
        %3411 = vadd.xlane.f32.xlu0 %v3410
        %v3412 = vpop.xlane.xlu0 %3411
        %v3413 = vrcp.pop %v3412
        %v3414 = vmul.f32 %v3409, %v3413
        %3415 = vrot.lane.b32.xlu0 %v3374, 96
        %v3416 = vpop.permute.xlu0 %3415
        %v3419 = vsel %vm1117, %v3414, 0
        %3421 = vmatpush.msra.mxu0 0.0
        %3422 = vmatpush.msra.mxu0 0.0
        %3423 = vmatpush.msra.mxu0 0.0
        %3424 = vmatpush.msra.mxu0 0.0
        %3425 = vmatpush.msra.mxu0 0.0
        %3426 = vmatpush.msra.mxu0 0.0
        %3427 = vmatpush.msra.mxu0 0.0
        %3428 = vmatpush.msra.mxu0 0.0
        %3429 = vmatpush.msra.mxu0 0.0
        %3430 = vmatpush.msra.mxu0 0.0
        %3431 = vmatpush.msra.mxu0 0.0
        %3432 = vmatpush.msra.mxu0 0.0
        %3433 = vmatpush.msra.mxu0 0.0
        %3434 = vmatpush.msra.mxu0 0.0
        %3435 = vmatpush.msra.mxu0 0.0
        %3436 = vmatpush.msra.mxu0 %v3416
        %3437 = vmatmul.f32.gmra.mxu0 %v3419
        %v3438 = vpop.f32.mrf.mxu0
        %v3439 = vadd.f32 0.0, %v3438
        %3440 = vdwg.mxu0
        %3441 = vrot.lane.b32.xlu0 %v3335, 120
        %v3442 = vpop.permute.xlu0 %3441
        %3443 = vrot.lane.b32.xlu0 %v3374, 120
        %v3444 = vpop.permute.xlu0 %3443
        %v3445 = vsel %vm1117, %v3442, 0
        %v3447 = vsel %vm1117, %v3444, 0
        %3449 = vmatpush.xpose.msra.mxu0 0.0
        %3450 = vmatpush.xpose.msra.mxu0 0.0
        %3451 = vmatpush.xpose.msra.mxu0 0.0
        %3452 = vmatpush.xpose.msra.mxu0 0.0
        %3453 = vmatpush.xpose.msra.mxu0 0.0
        %3454 = vmatpush.xpose.msra.mxu0 0.0
        %3455 = vmatpush.xpose.msra.mxu0 0.0
        %3456 = vmatpush.xpose.msra.mxu0 0.0
        %3457 = vmatpush.xpose.msra.mxu0 0.0
        %3458 = vmatpush.xpose.msra.mxu0 0.0
        %3459 = vmatpush.xpose.msra.mxu0 0.0
        %3460 = vmatpush.xpose.msra.mxu0 0.0
        %3461 = vmatpush.xpose.msra.mxu0 0.0
        %3462 = vmatpush.xpose.msra.mxu0 0.0
        %3463 = vmatpush.xpose.msra.mxu0 0.0
        %3464 = vmatpush.xpose.msra.mxu0 %v3447
        %3465 = vmatmul.f32.gmra.mxu0 %v3445
        %v3466 = vpop.f32.mrf.mxu0
        %v3467 = vadd.f32 0.0, %v3466
        %3468 = vdwg.mxu0
        %v3469 = vmul.f32 %v3467, 0.35355338
        %v3470 = vsel %vm1145, %v3469, -1e+09
        %v3471 = vsel %vm1117, %v3470, -inf
        %3472 = vmax.xlane.f32.xlu0 %v3471
        %v3473 = vpop.xlane.xlu0 %3472
        %v3474 = vsub.f32 %v3470, %v3473
        %v3475 = vmul.f32 %v3474, 1.442695
        %v3476 = vpow.pop %v3475
        %v3477 = vsel %vm1117, %v3476, 0.0
        %3478 = vadd.xlane.f32.xlu0 %v3477
        %v3479 = vpop.xlane.xlu0 %3478
        %v3480 = vrcp.pop %v3479
        %v3481 = vmul.f32 %v3476, %v3480
        %3482 = vrot.lane.b32.xlu0 %v3374, 88
        %v3483 = vpop.permute.xlu0 %3482
        %v3486 = vsel %vm1117, %v3481, 0
        %3488 = vmatpush.msra.mxu0 0.0
        %3489 = vmatpush.msra.mxu0 0.0
        %3490 = vmatpush.msra.mxu0 0.0
        %3491 = vmatpush.msra.mxu0 0.0
        %3492 = vmatpush.msra.mxu0 0.0
        %3493 = vmatpush.msra.mxu0 0.0
        %3494 = vmatpush.msra.mxu0 0.0
        %3495 = vmatpush.msra.mxu0 0.0
        %3496 = vmatpush.msra.mxu0 0.0
        %3497 = vmatpush.msra.mxu0 0.0
        %3498 = vmatpush.msra.mxu0 0.0
        %3499 = vmatpush.msra.mxu0 0.0
        %3500 = vmatpush.msra.mxu0 0.0
        %3501 = vmatpush.msra.mxu0 0.0
        %3502 = vmatpush.msra.mxu0 0.0
        %3503 = vmatpush.msra.mxu0 %v3483
        %3504 = vmatmul.f32.gmra.mxu0 %v3486
        %v3505 = vpop.f32.mrf.mxu0
        %v3506 = vadd.f32 0.0, %v3505
        %3507 = vdwg.mxu0
        %3508 = vrot.lane.b32.xlu0 %v3335, 112
        %v3509 = vpop.permute.xlu0 %3508
        %3510 = vrot.lane.b32.xlu0 %v3374, 112
        %v3511 = vpop.permute.xlu0 %3510
        %v3512 = vsel %vm1117, %v3509, 0
        %v3514 = vsel %vm1117, %v3511, 0
        %3516 = vmatpush.xpose.msra.mxu0 0.0
        %3517 = vmatpush.xpose.msra.mxu0 0.0
        %3518 = vmatpush.xpose.msra.mxu0 0.0
        %3519 = vmatpush.xpose.msra.mxu0 0.0
        %3520 = vmatpush.xpose.msra.mxu0 0.0
        %3521 = vmatpush.xpose.msra.mxu0 0.0
        %3522 = vmatpush.xpose.msra.mxu0 0.0
        %3523 = vmatpush.xpose.msra.mxu0 0.0
        %3524 = vmatpush.xpose.msra.mxu0 0.0
        %3525 = vmatpush.xpose.msra.mxu0 0.0
        %3526 = vmatpush.xpose.msra.mxu0 0.0
        %3527 = vmatpush.xpose.msra.mxu0 0.0
        %3528 = vmatpush.xpose.msra.mxu0 0.0
        %3529 = vmatpush.xpose.msra.mxu0 0.0
        %3530 = vmatpush.xpose.msra.mxu0 0.0
        %3531 = vmatpush.xpose.msra.mxu0 %v3514
        %3532 = vmatmul.f32.gmra.mxu0 %v3512
        %v3533 = vpop.f32.mrf.mxu0
        %v3534 = vadd.f32 0.0, %v3533
        %3535 = vdwg.mxu0
        %v3536 = vmul.f32 %v3534, 0.35355338
        %v3537 = vsel %vm1145, %v3536, -1e+09
        %v3538 = vsel %vm1117, %v3537, -inf
        %3539 = vmax.xlane.f32.xlu0 %v3538
        %v3540 = vpop.xlane.xlu0 %3539
        %v3541 = vsub.f32 %v3537, %v3540
        %v3542 = vmul.f32 %v3541, 1.442695
        %v3543 = vpow.pop %v3542
        %v3544 = vsel %vm1117, %v3543, 0.0
        %3545 = vadd.xlane.f32.xlu0 %v3544
        %v3546 = vpop.xlane.xlu0 %3545
        %v3547 = vrcp.pop %v3546
        %v3548 = vmul.f32 %v3543, %v3547
        %3549 = vrot.lane.b32.xlu0 %v3374, 80
        %v3550 = vpop.permute.xlu0 %3549
        %v3553 = vsel %vm1117, %v3548, 0
        %3555 = vmatpush.msra.mxu0 0.0
        %3556 = vmatpush.msra.mxu0 0.0
        %3557 = vmatpush.msra.mxu0 0.0
        %3558 = vmatpush.msra.mxu0 0.0
        %3559 = vmatpush.msra.mxu0 0.0
        %3560 = vmatpush.msra.mxu0 0.0
        %3561 = vmatpush.msra.mxu0 0.0
        %3562 = vmatpush.msra.mxu0 0.0
        %3563 = vmatpush.msra.mxu0 0.0
        %3564 = vmatpush.msra.mxu0 0.0
        %3565 = vmatpush.msra.mxu0 0.0
        %3566 = vmatpush.msra.mxu0 0.0
        %3567 = vmatpush.msra.mxu0 0.0
        %3568 = vmatpush.msra.mxu0 0.0
        %3569 = vmatpush.msra.mxu0 0.0
        %3570 = vmatpush.msra.mxu0 %v3550
        %3571 = vmatmul.f32.gmra.mxu0 %v3553
        %v3572 = vpop.f32.mrf.mxu0
        %v3573 = vadd.f32 0.0, %v3572
        %3574 = vdwg.mxu0
        %3575 = vrot.lane.b32.xlu0 %v3335, 104
        %v3576 = vpop.permute.xlu0 %3575
        %3577 = vrot.lane.b32.xlu0 %v3374, 104
        %v3578 = vpop.permute.xlu0 %3577
        %v3579 = vsel %vm1117, %v3576, 0
        %v3581 = vsel %vm1117, %v3578, 0
        %3583 = vmatpush.xpose.msra.mxu0 0.0
        %3584 = vmatpush.xpose.msra.mxu0 0.0
        %3585 = vmatpush.xpose.msra.mxu0 0.0
        %3586 = vmatpush.xpose.msra.mxu0 0.0
        %3587 = vmatpush.xpose.msra.mxu0 0.0
        %3588 = vmatpush.xpose.msra.mxu0 0.0
        %3589 = vmatpush.xpose.msra.mxu0 0.0
        %3590 = vmatpush.xpose.msra.mxu0 0.0
        %3591 = vmatpush.xpose.msra.mxu0 0.0
        %3592 = vmatpush.xpose.msra.mxu0 0.0
        %3593 = vmatpush.xpose.msra.mxu0 0.0
        %3594 = vmatpush.xpose.msra.mxu0 0.0
        %3595 = vmatpush.xpose.msra.mxu0 0.0
        %3596 = vmatpush.xpose.msra.mxu0 0.0
        %3597 = vmatpush.xpose.msra.mxu0 0.0
        %3598 = vmatpush.xpose.msra.mxu0 %v3581
        %3599 = vmatmul.f32.gmra.mxu0 %v3579
        %v3600 = vpop.f32.mrf.mxu0
        %v3601 = vadd.f32 0.0, %v3600
        %3602 = vdwg.mxu0
        %v3603 = vmul.f32 %v3601, 0.35355338
        %v3604 = vsel %vm1145, %v3603, -1e+09
        %v3605 = vsel %vm1117, %v3604, -inf
        %3606 = vmax.xlane.f32.xlu0 %v3605
        %v3607 = vpop.xlane.xlu0 %3606
        %v3608 = vsub.f32 %v3604, %v3607
        %v3609 = vmul.f32 %v3608, 1.442695
        %v3610 = vpow.pop %v3609
        %v3611 = vsel %vm1117, %v3610, 0.0
        %3612 = vadd.xlane.f32.xlu0 %v3611
        %v3613 = vpop.xlane.xlu0 %3612
        %v3614 = vrcp.pop %v3613
        %v3615 = vmul.f32 %v3610, %v3614
        %3616 = vrot.lane.b32.xlu0 %v3374, 72
        %v3617 = vpop.permute.xlu0 %3616
        %v3620 = vsel %vm1117, %v3615, 0
        %3622 = vmatpush.msra.mxu0 0.0
        %3623 = vmatpush.msra.mxu0 0.0
        %3624 = vmatpush.msra.mxu0 0.0
        %3625 = vmatpush.msra.mxu0 0.0
        %3626 = vmatpush.msra.mxu0 0.0
        %3627 = vmatpush.msra.mxu0 0.0
        %3628 = vmatpush.msra.mxu0 0.0
        %3629 = vmatpush.msra.mxu0 0.0
        %3630 = vmatpush.msra.mxu0 0.0
        %3631 = vmatpush.msra.mxu0 0.0
        %3632 = vmatpush.msra.mxu0 0.0
        %3633 = vmatpush.msra.mxu0 0.0
        %3634 = vmatpush.msra.mxu0 0.0
        %3635 = vmatpush.msra.mxu0 0.0
        %3636 = vmatpush.msra.mxu0 0.0
        %3637 = vmatpush.msra.mxu0 %v3617
        %3638 = vmatmul.f32.gmra.mxu0 %v3620
        %v3639 = vpop.f32.mrf.mxu0
        %v3640 = vadd.f32 0.0, %v3639
        %3641 = vdwg.mxu0
        %3643 = vrot.lane.b32.xlu0 %v3506, 8
        %v3644 = vpop.permute.xlu0 %3643
        %3647 = vrot.lane.b32.xlu0 %v3573, 16
        %v3648 = vpop.permute.xlu0 %3647
        %3651 = vrot.lane.b32.xlu0 %v3640, 24
        %v3652 = vpop.permute.xlu0 %3651
        %v3654 = vsel %vm1117, %v3439, %v3644
        %v3655 = vsel %vm1398, %v3654, %v3648
        %v3656 = vsel %vm1400, %v3655, %v3652
        %v3658 = vperm.slane %v3310, 0
        %v3661 = vsel %vm1090, %v3656, 0
        %3663 = vmatpush.msra.mxu0 0.0
        %3664 = vmatpush.msra.mxu0 0.0
        %3665 = vmatpush.msra.mxu0 0.0
        %3666 = vmatpush.msra.mxu0 0.0
        %3667 = vmatpush.msra.mxu0 0.0
        %3668 = vmatpush.msra.mxu0 0.0
        %3669 = vmatpush.msra.mxu0 0.0
        %3670 = vmatpush.msra.mxu0 0.0
        %3671 = vmatpush.msra.mxu0 0.0
        %3672 = vmatpush.msra.mxu0 0.0
        %3673 = vmatpush.msra.mxu0 0.0
        %3674 = vmatpush.msra.mxu0 0.0
        %3675 = vmatpush.msra.mxu0 %v3308
        %3676 = vmatpush.msra.mxu0 %v3307
        %3677 = vmatpush.msra.mxu0 %v3306
        %3678 = vmatpush.msra.mxu0 %v3305
        %3679 = vmatmul.f32.gmra.mxu0 %v3661
        %v3680 = vpop.f32.mrf.mxu0
        %v3681 = vadd.f32 %v3658, %v3680
        %3682 = vdwg.mxu0
        %s3683 = scalar_lea.vmem %s51, 2
        %v3684 = vld [vmem:[%s3683] sm:$0x3]
        %v3685 = vadd.f32 %v3296, %v3681
        %v3686 = vsel %vm1090, %v3685, 0.0
        %3687 = vadd.xlane.f32.xlu0 %v3686
        %v3688 = vpop.xlane.xlu0 %3687
        %v3689 = vmul.f32 %v3688, %v1439
        %v3690 = vsub.f32 %v3685, %v3689
        %v3691 = vmul.f32 %v3690, %v3690
        %v3692 = vsel %vm1090, %v3691, 0.0
        %3693 = vadd.xlane.f32.xlu0 %v3692
        %v3694 = vpop.xlane.xlu0 %3693
        %v3695 = vmul.f32 %v3694, %v1439
        %v3696 = vadd.f32 %v3695, 1e-05
        %v3697 = vrsqrt.pop %v3696
        %v3698 = vmul.f32 %v3697, %v3696
        %v3699 = vmul.f32 %v3698, %v3697
        %v3700 = vmul.f32 0.5, %v3699
        %v3701 = vsub.f32 1.5, %v3700
        %v3702 = vmul.f32 %v3697, %v3701
        %vm3703 = vweird.f32 %v3696
        %vm3704 = vweird.f32 %v3697
        %vm3705 = vmor %vm3703, %vm3704
        %v3706 = vsel %vm3705, %v3697, %v3702
        %v3707 = vmul.f32 %v3690, %v3706
        %v3708 = vperm.slane %v3684, 0
        %v3709 = vmul.f32 %v3707, %v3708
        %v3710 = vperm.slane %v3684, 1
        %v3711 = vadd.f32 %v3709, %v3710
        %s3712 = scalar_lea.vmem %s53, 32
        %v3713 = vld [vmem:[%s3712] sm:$0xff]
        %v3714 = vld [vmem:[%s3712 + $0x8] sm:$0xff]
        %v3715 = vld [vmem:[%s3712 + $0x10] sm:$0xff]
        %v3716 = vld [vmem:[%s3712 + $0x18] sm:$0xff]
        %s3717 = scalar_lea.vmem %s55, 1
        %v3718 = vld [vmem:[%s3717] sm:$0x1]
        %s3719 = scalar_lea.vmem %s57, 64
        %v3720 = vld [vmem:[%s3719] sm:$0xff]
        %v3721 = vld [vmem:[%s3719 + $0x8] sm:$0xff]
        %v3722 = vld [vmem:[%s3719 + $0x10] sm:$0xff]
        %v3723 = vld [vmem:[%s3719 + $0x18] sm:$0xff]
        %v3724 = vld [vmem:[%s3719 + $0x20] sm:$0xff]
        %v3725 = vld [vmem:[%s3719 + $0x28] sm:$0xff]
        %v3726 = vld [vmem:[%s3719 + $0x30] sm:$0xff]
        %v3727 = vld [vmem:[%s3719 + $0x38] sm:$0xff]
        %s3728 = scalar_lea.vmem %s59, 1
        %v3729 = vld [vmem:[%s3728] sm:$0x1]
        %v3731 = vperm.slane %v3718, 0
        %v3734 = vsel %vm1090, %v3711, 0
        %3736 = vmatpush.msra.mxu0 0.0
        %3737 = vmatpush.msra.mxu0 0.0
        %3738 = vmatpush.msra.mxu0 0.0
        %3739 = vmatpush.msra.mxu0 0.0
        %3740 = vmatpush.msra.mxu0 0.0
        %3741 = vmatpush.msra.mxu0 0.0
        %3742 = vmatpush.msra.mxu0 0.0
        %3743 = vmatpush.msra.mxu0 0.0
        %3744 = vmatpush.msra.mxu0 0.0
        %3745 = vmatpush.msra.mxu0 0.0
        %3746 = vmatpush.msra.mxu0 0.0
        %3747 = vmatpush.msra.mxu0 0.0
        %3748 = vmatpush.msra.mxu0 %v3716
        %3749 = vmatpush.msra.mxu0 %v3715
        %3750 = vmatpush.msra.mxu0 %v3714
        %3751 = vmatpush.msra.mxu0 %v3713
        %3752 = vmatmul.f32.gmra.mxu0 %v3734
        %v3753 = vpop.f32.mrf.mxu0
        %v3754 = vadd.f32 %v3731, %v3753
        %3755 = vdwg.mxu0
        %v3756 = vmax.f32 %v3754, 0.0
        %v3758 = vperm.slane %v3729, 0
        %v3761 = vsel %vm1507, %v3756, 0
        %3763 = vmatpush.msra.mxu0 0.0
        %3764 = vmatpush.msra.mxu0 0.0
        %3765 = vmatpush.msra.mxu0 0.0
        %3766 = vmatpush.msra.mxu0 0.0
        %3767 = vmatpush.msra.mxu0 0.0
        %3768 = vmatpush.msra.mxu0 0.0
        %3769 = vmatpush.msra.mxu0 0.0
        %3770 = vmatpush.msra.mxu0 0.0
        %3771 = vmatpush.msra.mxu0 %v3727
        %3772 = vmatpush.msra.mxu0 %v3726
        %3773 = vmatpush.msra.mxu0 %v3725
        %3774 = vmatpush.msra.mxu0 %v3724
        %3775 = vmatpush.msra.mxu0 %v3723
        %3776 = vmatpush.msra.mxu0 %v3722
        %3777 = vmatpush.msra.mxu0 %v3721
        %3778 = vmatpush.msra.mxu0 %v3720
        %3779 = vmatmul.f32.gmra.mxu0 %v3761
        %v3780 = vpop.f32.mrf.mxu0
        %v3781 = vadd.f32 %v3758, %v3780
        %3782 = vdwg.mxu0
        %s3783 = scalar_lea.vmem %s61, 2
        %v3784 = vld [vmem:[%s3783] sm:$0x3]
        %v3785 = vadd.f32 %v3711, %v3781
        %v3786 = vsel %vm1090, %v3785, 0.0
        %3787 = vadd.xlane.f32.xlu0 %v3786
        %v3788 = vpop.xlane.xlu0 %3787
        %v3789 = vmul.f32 %v3788, %v1439
        %v3790 = vsub.f32 %v3785, %v3789
        %v3791 = vmul.f32 %v3790, %v3790
        %v3792 = vsel %vm1090, %v3791, 0.0
        %3793 = vadd.xlane.f32.xlu0 %v3792
        %v3794 = vpop.xlane.xlu0 %3793
        %v3795 = vmul.f32 %v3794, %v1439
        %v3796 = vadd.f32 %v3795, 1e-05
        %v3797 = vrsqrt.pop %v3796
        %v3798 = vmul.f32 %v3797, %v3796
        %v3799 = vmul.f32 %v3798, %v3797
        %v3800 = vmul.f32 0.5, %v3799
        %v3801 = vsub.f32 1.5, %v3800
        %v3802 = vmul.f32 %v3797, %v3801
        %vm3803 = vweird.f32 %v3796
        %vm3804 = vweird.f32 %v3797
        %vm3805 = vmor %vm3803, %vm3804
        %v3806 = vsel %vm3805, %v3797, %v3802
        %v3807 = vmul.f32 %v3790, %v3806
        %v3808 = vperm.slane %v3784, 0
        %v3809 = vmul.f32 %v3807, %v3808
        %v3810 = vperm.slane %v3784, 1
        %v3811 = vadd.f32 %v3809, %v3810
        %v3812 = vld [vmem:[%s63] sm:$0xff]
        %v3813 = vld [vmem:[%s63 + $0x8] sm:$0xff]
        %v3814 = vld [vmem:[%s63 + $0x10] sm:$0xff]
        %v3815 = vld [vmem:[%s63 + $0x18] sm:$0xff]
        %v3816 = vld [vmem:[%s65] sm:$0x1]
        %v3818 = vperm.slane %v3816, 0
        %v3821 = vsel %vm1090, %v3811, 0
        %3823 = vmatpush.msra.mxu0 0.0
        %3824 = vmatpush.msra.mxu0 0.0
        %3825 = vmatpush.msra.mxu0 0.0
        %3826 = vmatpush.msra.mxu0 0.0
        %3827 = vmatpush.msra.mxu0 0.0
        %3828 = vmatpush.msra.mxu0 0.0
        %3829 = vmatpush.msra.mxu0 0.0
        %3830 = vmatpush.msra.mxu0 0.0
        %3831 = vmatpush.msra.mxu0 0.0
        %3832 = vmatpush.msra.mxu0 0.0
        %3833 = vmatpush.msra.mxu0 0.0
        %3834 = vmatpush.msra.mxu0 0.0
        %3835 = vmatpush.msra.mxu0 %v3815
        %3836 = vmatpush.msra.mxu0 %v3814
        %3837 = vmatpush.msra.mxu0 %v3813
        %3838 = vmatpush.msra.mxu0 %v3812
        %3839 = vmatmul.f32.gmra.mxu0 %v3821
        %v3840 = vpop.f32.mrf.mxu0
        %v3841 = vadd.f32 %v3818, %v3840
        %3842 = vdwg.mxu0
        %3843 = vst [vmem:[%s1042] sm:$0xff] %v3841
        %s3844 = sand.u32 %s802, 1
        %s3845 = scalar_lea.sflag [#allocation3], %s3844
        %s3846 = sand.u32 %s802, 1
        %s3847 = smul.addr %s3846, 8
        %s3848 = scalar_lea.vmem [#allocation2], %s3847
        // Predicated region
        $region153: #{transformer_forward.1} parent=151 // pred_check
          %p3849 = pneg %p812
        $region154: #{transformer_forward.1} parent=151 // pred_check_branch
          %3851 = sbr.rel (%p3849) target = $region156
        $region155: #{transformer_forward.1} parent=151 // pred_region
          %3853 = vsyncadd %s3845, 0
          %s3854 = smul.addr %s81, 8
          %s3855 = scalar_lea.hbm %s67, %s3854
          %s3857 = sshll.u32 %s3848, 4
          %s3858 = int_to_ptr.vmem [resolvable:$true] %s3857
          %s3859 = sshll.u32 %s3855, 4
          %s3860 = int_to_ptr.hbm [resolvable:$true] %s3859
          %3862 = dma.vmem_to_hbm [thread:$0]  %s3858, 128, %s3860, %s3845
        $region156: #{transformer_forward.1} parent=151 // pred_fallthru
          _
      $region152: #{transformer_forward.1} parent=5 // pred_fallthru
        _
      %p3863 = scmp.le.s32.totalorder 2, %s76
      // Predicated region
      $region157: #{transformer_forward.1} parent=5 // pred_check
        %p3864 = pneg %p3863
      $region158: #{transformer_forward.1} parent=5 // pred_check_branch
        %3866 = sbr.rel (%p3864) target = $region160
      $region159: #{transformer_forward.1} parent=5 // pred_region
        %s3867 = ssub.s32 %s76, 2
        // Predicated region
        $region161: #{transformer_forward.1} parent=159 // pred_check
          %p3868 = pneg %p818
        $region162: #{transformer_forward.1} parent=159 // pred_check_branch
          %3870 = sbr.rel (%p3868) target = $region164
        $region163: #{transformer_forward.1} parent=159 // pred_region
          %s3871 = sand.u32 %s803, 1
          %s3872 = scalar_lea.sflag [#allocation3], %s3871
          %s3873 = sand.u32 %s803, 1
          %s3874 = smul.addr %s3873, 8
          %s3875 = scalar_lea.vmem [#allocation2], %s3874
          %3877 = dma.done %s3872, 128
        $region164: #{transformer_forward.1} parent=159 // pred_fallthru
          _
      $region160: #{transformer_forward.1} parent=5 // pred_fallthru
        _
    $region6: #{transformer_forward.1} parent=1 // loop_footer
      %s80 = sadd.s32 1, %s76
    $region7: #{transformer_forward.1} parent=1 // loop_footer_branch
      %75 = sbr.rel target = $region3
    $region8: #{transformer_forward.1} parent=1 // loop_exit
      _
    %3878 = vsyncpa [#allocation3], 1
    %s3879 = scalar_lea.sflag [#allocation3], 1
    %3880 = vsyncpa %s3879, 1

</llo_original>
